<compile_context>
chip_gen: v7x
topology: tpu7x:2x2x1
jax: 0.10.0
libtpu: 0.0.40
codegen_flags: <defaults>
</compile_context>

<pallas_src>
import jax
import jax.numpy as jnp
from jax.experimental import pallas as pl
from jax.experimental.pallas import tpu as pltpu

_LANE = 128


def _conv3x3_relu_kernel(x_ref, w_ref, b_ref, o_ref, acc_ref):
    """One (image, row-tile, cout-tile) grid step.

    x_ref  : (TH+2, W+2, Cin)  bf16 halo row-tile (VMEM, auto-pipelined)
    w_ref  : (3, 3, Cin, TCout) bf16 weight tile (VMEM)
    b_ref  : (1, TCout)         f32 bias tile (VMEM)
    o_ref  : (TH, W, TCout)     output tile (VMEM)
    acc_ref: (TH*W, TCout)      f32 VMEM accumulator scratch
    """
    TH, W, tcout = o_ref.shape
    cin = x_ref.shape[-1]

    # 9 shifted matmuls accumulated in f32.  Patches are sliced straight from
    # the VMEM halo tile per tap so live values stay small.
    # TODO(synk): for tiny Cin the 9 taps could be folded into the contraction
    # dim (im2col, K=9*Cin) for better MXU depth utilization, but unaligned
    # lane-dim concatenation of Cin-wide pieces does not lower reliably in
    # Mosaic, so the 9-matmul form is kept.
    first = True
    for kh in range(3):
        for kw in range(3):
            patch = x_ref[kh:kh + TH, kw:kw + W, :]          # (TH, W, Cin) bf16
            partial = jnp.dot(patch.reshape(TH * W, cin), w_ref[kh, kw],
                              preferred_element_type=jnp.float32)
            if first:
                acc_ref[...] = partial
                first = False
            else:
                acc_ref[...] += partial

    out = jnp.maximum(acc_ref[...] + b_ref[...], 0.0)        # bias + ReLU (f32)
    o_ref[...] = out.reshape(TH, W, tcout).astype(o_ref.dtype)


def conv_layer_forward(x_nchw, weight, bias, *, row_tile=None):
    """Equivalent of ConvLayer.forward (Conv2d 3x3, padding=1, then ReLU).

    x_nchw : (N, Cin, H, W)     float32
    weight : (Cout, Cin, 3, 3)  float32 (PyTorch OIHW layout)
    bias   : (Cout,)            float32
    returns: (N, Cout, H, W)    same dtype as x
    """
    N, Cin, H, W = x_nchw.shape
    Cout = weight.shape[0]
    out_dtype = x_nchw.dtype

    # Lane-align output channels (lane-dense stores / VPU epilogue).
    Cout_p = -(-Cout // _LANE) * _LANE
    TCout = 256 if Cout_p % 256 == 0 else _LANE
    nC = Cout_p // TCout

    # Row-tile height: bound per-step VMEM (double-buffered halo tile,
    # f32 accumulator, double-buffered output tile) to a few MiB.
    if row_tile is None:
        per_row = (2 * (W + 2) * Cin * 2            # input halo rows, bf16, x2 buffers
                   + W * TCout * 4                  # f32 accumulator
                   + 2 * W * TCout * jnp.dtype(out_dtype).itemsize)
        row_tile = max(8, (8 * 1024 * 1024) // max(per_row, 1))
    TH = int(max(1, min(row_tile, H)))
    nH = -(-H // TH)            # cdiv
    Hp = nH * TH

    # Wrapper glue: layout + zero pad, bf16 operands for the MXU, and halo
    # row-tiles laid out so BlockSpec pipelining can fetch them directly.
    # TODO(synk): for stacked ConvLayers keep activations NHWC end-to-end and
    # skip these transposes (kept so the public API matches the NCHW module).
    x_nhwc = jnp.transpose(x_nchw, (0, 2, 3, 1)).astype(jnp.bfloat16)
    x_pad = jnp.pad(x_nhwc, ((0, 0), (1, 1 + Hp - H), (1, 1), (0, 0)))
    tiles = jnp.stack([x_pad[:, h * TH:h * TH + TH + 2] for h in range(nH)],
                      axis=1)                       # (N, nH, TH+2, W+2, Cin)

    w_hwio = jnp.transpose(weight, (2, 3, 1, 0))    # (3, 3, Cin, Cout)
    w_hwio = jnp.pad(w_hwio, ((0, 0), (0, 0), (0, 0), (0, Cout_p - Cout)))
    w_hwio = w_hwio.astype(jnp.bfloat16)
    b2d = jnp.pad(bias, (0, Cout_p - Cout)).reshape(1, Cout_p).astype(jnp.float32)

    out_nhwc = pl.pallas_call(
        _conv3x3_relu_kernel,
        out_shape=jax.ShapeDtypeStruct((N, Hp, W, Cout_p), out_dtype),
        grid_spec=pltpu.PrefetchScalarGridSpec(
            num_scalar_prefetch=0,
            grid=(N, nH, nC),
            in_specs=[
                pl.BlockSpec((None, None, TH + 2, W + 2, Cin),
                             lambda n, h, j: (n, h, 0, 0, 0)),
                pl.BlockSpec((3, 3, Cin, TCout), lambda n, h, j: (0, 0, 0, j)),
                pl.BlockSpec((1, TCout), lambda n, h, j: (0, j)),
            ],
            out_specs=pl.BlockSpec((None, TH, W, TCout),
                                   lambda n, h, j: (n, h, 0, j)),
            scratch_shapes=[pltpu.VMEM((TH * W, TCout), jnp.float32)],
        ),
        compiler_params=pltpu.CompilerParams(
            dimension_semantics=("parallel", "parallel", "arbitrary"),
        ),
    )(tiles, w_hwio, b2d)

    out = out_nhwc[:, :H, :, :Cout]                 # drop row/channel padding
    return jnp.transpose(out, (0, 3, 1, 2))         # back to NCHW


if __name__ == "__main__":
    key = jax.random.PRNGKey(0)
    k_x, k_w, k_b = jax.random.split(key, 3)

    N, Cin, H, W = 2, 4, 16, 16
    Cout = 8

    x = jax.random.normal(k_x, (N, Cin, H, W), dtype=jnp.float32)
    fan_in = Cin * 3 * 3
    bound = 1.0 / (fan_in ** 0.5)
    weight = jax.random.uniform(k_w, (Cout, Cin, 3, 3), jnp.float32, -bound, bound)
    bias = jax.random.uniform(k_b, (Cout,), jnp.float32, -bound, bound)

    # row_tile=8 forces 2 row tiles per image -> exercises the halo-tile path.
    out = conv_layer_forward(x, weight, bias, row_tile=8)
    out = jax.block_until_ready(out)

    # Sanity check against XLA's conv (f32 reference; kernel uses bf16 operands
    # with f32 accumulation, so use a slightly loosened tolerance).
    ref = jax.lax.conv_general_dilated(
        x, weight, window_strides=(1, 1), padding="SAME",
        dimension_numbers=("NCHW", "OIHW", "NCHW"))
    ref = jnp.maximum(ref + bias[None, :, None, None], 0.0)
    assert out.shape == (N, Cout, H, W)
    assert jnp.allclose(out, ref, atol=5e-2, rtol=5e-2), \
        float(jnp.max(jnp.abs(out - ref)))

    print("KERNEL_OK")
</pallas_src>

<mosaic_0001>
module attributes {stable_mosaic.version = 11 : i64} {
  func.func @_conv3x3_relu_kernel(%arg0: i32, %arg1: i32, %arg2: i32, %arg3: memref<1x1x10x18x4xbf16, #tpu.memory_space<vmem>>, %arg4: memref<3x3x4x128xbf16, #tpu.memory_space<vmem>>, %arg5: memref<1x128xf32, #tpu.memory_space<vmem>>, %arg6: memref<1x8x16x128xf32, #tpu.memory_space<vmem>>, %arg7: memref<128x128xf32, #tpu.memory_space<vmem>>) attributes {dimension_semantics = [#tpu.dimension_semantics<parallel>, #tpu.dimension_semantics<parallel>, #tpu.dimension_semantics<arbitrary>], iteration_bounds = array<i64: 2, 2, 1>, scalar_prefetch = 0 : i64, scratch_operands = 1 : i64, tpu.core_type = #tpu.core_type<tc>, window_params = [{transform_indices = @transform_0, window_bounds = array<i64: 1, 1, 10, 18, 4>}, {transform_indices = @transform_1, window_bounds = array<i64: 3, 3, 4, 128>}, {transform_indices = @transform_2, window_bounds = array<i64: 1, 128>}, {transform_indices = @transform_3, window_bounds = array<i64: 1, 8, 16, 128>}]} {
    %c0 = arith.constant 0 : index
    %c0_0 = arith.constant 0 : index
    %c0_1 = arith.constant 0 : index
    %c0_2 = arith.constant 0 : index
    %c0_3 = arith.constant 0 : index
    %0 = vector.load %arg3[%c0, %c0_0, %c0_1, %c0_2, %c0_3] : memref<1x1x10x18x4xbf16, #tpu.memory_space<vmem>>, vector<1x1x8x16x4xbf16>
    %1 = vector.shape_cast %0 : vector<1x1x8x16x4xbf16> to vector<8x16x4xbf16>
    %2 = vector.shape_cast %1 : vector<8x16x4xbf16> to vector<128x4xbf16>
    %c0_4 = arith.constant 0 : index
    %c0_5 = arith.constant 0 : index
    %c0_6 = arith.constant 0 : index
    %c0_7 = arith.constant 0 : index
    %3 = vector.load %arg4[%c0_4, %c0_5, %c0_6, %c0_7] : memref<3x3x4x128xbf16, #tpu.memory_space<vmem>>, vector<1x1x4x128xbf16>
    %4 = vector.shape_cast %3 : vector<1x1x4x128xbf16> to vector<4x128xbf16>
    %cst = arith.constant dense<0.000000e+00> : vector<128x128xf32>
    %5 = tpu.matmul %2, %4, %cst {dimension_numbers = #tpu.dot_dimension_numbers<[1], [0], [0], [1], [0, 0, 1, 1], [], []>} : vector<128x4xbf16>, vector<4x128xbf16>, vector<128x128xf32> -> vector<128x128xf32>
    %c0_8 = arith.constant 0 : index
    %c0_9 = arith.constant 0 : index
    %6 = vector.load %arg7[%c0_8, %c0_9] : memref<128x128xf32, #tpu.memory_space<vmem>>, vector<128x128xf32>
    tpu.vector_store %arg7[%c0_8, %c0_9], %5 {strides = array<i32>} : memref<128x128xf32, #tpu.memory_space<vmem>>, vector<128x128xf32>,
    %c0_10 = arith.constant 0 : index
    %c0_11 = arith.constant 0 : index
    %c0_12 = arith.constant 0 : index
    %c1 = arith.constant 1 : index
    %c0_13 = arith.constant 0 : index
    %7 = vector.load %arg3[%c0_10, %c0_11, %c0_12, %c1, %c0_13] : memref<1x1x10x18x4xbf16, #tpu.memory_space<vmem>>, vector<1x1x8x16x4xbf16>
    %8 = vector.shape_cast %7 : vector<1x1x8x16x4xbf16> to vector<8x16x4xbf16>
    %9 = vector.shape_cast %8 : vector<8x16x4xbf16> to vector<128x4xbf16>
    %c0_14 = arith.constant 0 : index
    %c1_15 = arith.constant 1 : index
    %c0_16 = arith.constant 0 : index
    %c0_17 = arith.constant 0 : index
    %10 = vector.load %arg4[%c0_14, %c1_15, %c0_16, %c0_17] : memref<3x3x4x128xbf16, #tpu.memory_space<vmem>>, vector<1x1x4x128xbf16>
    %11 = vector.shape_cast %10 : vector<1x1x4x128xbf16> to vector<4x128xbf16>
    %cst_18 = arith.constant dense<0.000000e+00> : vector<128x128xf32>
    %12 = tpu.matmul %9, %11, %cst_18 {dimension_numbers = #tpu.dot_dimension_numbers<[1], [0], [0], [1], [0, 0, 1, 1], [], []>} : vector<128x4xbf16>, vector<4x128xbf16>, vector<128x128xf32> -> vector<128x128xf32>
    %c0_19 = arith.constant 0 : index
    %c0_20 = arith.constant 0 : index
    %13 = vector.load %arg7[%c0_19, %c0_20] : memref<128x128xf32, #tpu.memory_space<vmem>>, vector<128x128xf32>
    %14 = arith.addf %13, %12 : vector<128x128xf32>
    %c0_21 = arith.constant 0 : index
    %c0_22 = arith.constant 0 : index
    %15 = vector.load %arg7[%c0_21, %c0_22] : memref<128x128xf32, #tpu.memory_space<vmem>>, vector<128x128xf32>
    tpu.vector_store %arg7[%c0_21, %c0_22], %14 {strides = array<i32>} : memref<128x128xf32, #tpu.memory_space<vmem>>, vector<128x128xf32>,
    %c0_23 = arith.constant 0 : index
    %c0_24 = arith.constant 0 : index
    %c0_25 = arith.constant 0 : index
    %c2 = arith.constant 2 : index
    %c0_26 = arith.constant 0 : index
    %16 = vector.load %arg3[%c0_23, %c0_24, %c0_25, %c2, %c0_26] : memref<1x1x10x18x4xbf16, #tpu.memory_space<vmem>>, vector<1x1x8x16x4xbf16>
    %17 = vector.shape_cast %16 : vector<1x1x8x16x4xbf16> to vector<8x16x4xbf16>
    %18 = vector.shape_cast %17 : vector<8x16x4xbf16> to vector<128x4xbf16>
    %c0_27 = arith.constant 0 : index
    %c2_28 = arith.constant 2 : index
    %c0_29 = arith.constant 0 : index
    %c0_30 = arith.constant 0 : index
    %19 = vector.load %arg4[%c0_27, %c2_28, %c0_29, %c0_30] : memref<3x3x4x128xbf16, #tpu.memory_space<vmem>>, vector<1x1x4x128xbf16>
    %20 = vector.shape_cast %19 : vector<1x1x4x128xbf16> to vector<4x128xbf16>
    %cst_31 = arith.constant dense<0.000000e+00> : vector<128x128xf32>
    %21 = tpu.matmul %18, %20, %cst_31 {dimension_numbers = #tpu.dot_dimension_numbers<[1], [0], [0], [1], [0, 0, 1, 1], [], []>} : vector<128x4xbf16>, vector<4x128xbf16>, vector<128x128xf32> -> vector<128x128xf32>
    %c0_32 = arith.constant 0 : index
    %c0_33 = arith.constant 0 : index
    %22 = vector.load %arg7[%c0_32, %c0_33] : memref<128x128xf32, #tpu.memory_space<vmem>>, vector<128x128xf32>
    %23 = arith.addf %22, %21 : vector<128x128xf32>
    %c0_34 = arith.constant 0 : index
    %c0_35 = arith.constant 0 : index
    %24 = vector.load %arg7[%c0_34, %c0_35] : memref<128x128xf32, #tpu.memory_space<vmem>>, vector<128x128xf32>
    tpu.vector_store %arg7[%c0_34, %c0_35], %23 {strides = array<i32>} : memref<128x128xf32, #tpu.memory_space<vmem>>, vector<128x128xf32>,
    %c0_36 = arith.constant 0 : index
    %c0_37 = arith.constant 0 : index
    %c1_38 = arith.constant 1 : index
    %c0_39 = arith.constant 0 : index
    %c0_40 = arith.constant 0 : index
    %25 = vector.load %arg3[%c0_36, %c0_37, %c1_38, %c0_39, %c0_40] : memref<1x1x10x18x4xbf16, #tpu.memory_space<vmem>>, vector<1x1x8x16x4xbf16>
    %26 = vector.shape_cast %25 : vector<1x1x8x16x4xbf16> to vector<8x16x4xbf16>
    %27 = vector.shape_cast %26 : vector<8x16x4xbf16> to vector<128x4xbf16>
    %c1_41 = arith.constant 1 : index
    %c0_42 = arith.constant 0 : index
    %c0_43 = arith.constant 0 : index
    %c0_44 = arith.constant 0 : index
    %28 = vector.load %arg4[%c1_41, %c0_42, %c0_43, %c0_44] : memref<3x3x4x128xbf16, #tpu.memory_space<vmem>>, vector<1x1x4x128xbf16>
    %29 = vector.shape_cast %28 : vector<1x1x4x128xbf16> to vector<4x128xbf16>
    %cst_45 = arith.constant dense<0.000000e+00> : vector<128x128xf32>
    %30 = tpu.matmul %27, %29, %cst_45 {dimension_numbers = #tpu.dot_dimension_numbers<[1], [0], [0], [1], [0, 0, 1, 1], [], []>} : vector<128x4xbf16>, vector<4x128xbf16>, vector<128x128xf32> -> vector<128x128xf32>
    %c0_46 = arith.constant 0 : index
    %c0_47 = arith.constant 0 : index
    %31 = vector.load %arg7[%c0_46, %c0_47] : memref<128x128xf32, #tpu.memory_space<vmem>>, vector<128x128xf32>
    %32 = arith.addf %31, %30 : vector<128x128xf32>
    %c0_48 = arith.constant 0 : index
    %c0_49 = arith.constant 0 : index
    %33 = vector.load %arg7[%c0_48, %c0_49] : memref<128x128xf32, #tpu.memory_space<vmem>>, vector<128x128xf32>
    tpu.vector_store %arg7[%c0_48, %c0_49], %32 {strides = array<i32>} : memref<128x128xf32, #tpu.memory_space<vmem>>, vector<128x128xf32>,
    %c0_50 = arith.constant 0 : index
    %c0_51 = arith.constant 0 : index
    %c1_52 = arith.constant 1 : index
    %c1_53 = arith.constant 1 : index
    %c0_54 = arith.constant 0 : index
    %34 = vector.load %arg3[%c0_50, %c0_51, %c1_52, %c1_53, %c0_54] : memref<1x1x10x18x4xbf16, #tpu.memory_space<vmem>>, vector<1x1x8x16x4xbf16>
    %35 = vector.shape_cast %34 : vector<1x1x8x16x4xbf16> to vector<8x16x4xbf16>
    %36 = vector.shape_cast %35 : vector<8x16x4xbf16> to vector<128x4xbf16>
    %c1_55 = arith.constant 1 : index
    %c1_56 = arith.constant 1 : index
    %c0_57 = arith.constant 0 : index
    %c0_58 = arith.constant 0 : index
    %37 = vector.load %arg4[%c1_55, %c1_56, %c0_57, %c0_58] : memref<3x3x4x128xbf16, #tpu.memory_space<vmem>>, vector<1x1x4x128xbf16>
    %38 = vector.shape_cast %37 : vector<1x1x4x128xbf16> to vector<4x128xbf16>
    %cst_59 = arith.constant dense<0.000000e+00> : vector<128x128xf32>
    %39 = tpu.matmul %36, %38, %cst_59 {dimension_numbers = #tpu.dot_dimension_numbers<[1], [0], [0], [1], [0, 0, 1, 1], [], []>} : vector<128x4xbf16>, vector<4x128xbf16>, vector<128x128xf32> -> vector<128x128xf32>
    %c0_60 = arith.constant 0 : index
    %c0_61 = arith.constant 0 : index
    %40 = vector.load %arg7[%c0_60, %c0_61] : memref<128x128xf32, #tpu.memory_space<vmem>>, vector<128x128xf32>
    %41 = arith.addf %40, %39 : vector<128x128xf32>
    %c0_62 = arith.constant 0 : index
    %c0_63 = arith.constant 0 : index
    %42 = vector.load %arg7[%c0_62, %c0_63] : memref<128x128xf32, #tpu.memory_space<vmem>>, vector<128x128xf32>
    tpu.vector_store %arg7[%c0_62, %c0_63], %41 {strides = array<i32>} : memref<128x128xf32, #tpu.memory_space<vmem>>, vector<128x128xf32>,
    %c0_64 = arith.constant 0 : index
    %c0_65 = arith.constant 0 : index
    %c1_66 = arith.constant 1 : index
    %c2_67 = arith.constant 2 : index
    %c0_68 = arith.constant 0 : index
    %43 = vector.load %arg3[%c0_64, %c0_65, %c1_66, %c2_67, %c0_68] : memref<1x1x10x18x4xbf16, #tpu.memory_space<vmem>>, vector<1x1x8x16x4xbf16>
    %44 = vector.shape_cast %43 : vector<1x1x8x16x4xbf16> to vector<8x16x4xbf16>
    %45 = vector.shape_cast %44 : vector<8x16x4xbf16> to vector<128x4xbf16>
    %c1_69 = arith.constant 1 : index
    %c2_70 = arith.constant 2 : index
    %c0_71 = arith.constant 0 : index
    %c0_72 = arith.constant 0 : index
    %46 = vector.load %arg4[%c1_69, %c2_70, %c0_71, %c0_72] : memref<3x3x4x128xbf16, #tpu.memory_space<vmem>>, vector<1x1x4x128xbf16>
    %47 = vector.shape_cast %46 : vector<1x1x4x128xbf16> to vector<4x128xbf16>
    %cst_73 = arith.constant dense<0.000000e+00> : vector<128x128xf32>
    %48 = tpu.matmul %45, %47, %cst_73 {dimension_numbers = #tpu.dot_dimension_numbers<[1], [0], [0], [1], [0, 0, 1, 1], [], []>} : vector<128x4xbf16>, vector<4x128xbf16>, vector<128x128xf32> -> vector<128x128xf32>
    %c0_74 = arith.constant 0 : index
    %c0_75 = arith.constant 0 : index
    %49 = vector.load %arg7[%c0_74, %c0_75] : memref<128x128xf32, #tpu.memory_space<vmem>>, vector<128x128xf32>
    %50 = arith.addf %49, %48 : vector<128x128xf32>
    %c0_76 = arith.constant 0 : index
    %c0_77 = arith.constant 0 : index
    %51 = vector.load %arg7[%c0_76, %c0_77] : memref<128x128xf32, #tpu.memory_space<vmem>>, vector<128x128xf32>
    tpu.vector_store %arg7[%c0_76, %c0_77], %50 {strides = array<i32>} : memref<128x128xf32, #tpu.memory_space<vmem>>, vector<128x128xf32>,
    %c0_78 = arith.constant 0 : index
    %c0_79 = arith.constant 0 : index
    %c2_80 = arith.constant 2 : index
    %c0_81 = arith.constant 0 : index
    %c0_82 = arith.constant 0 : index
    %52 = vector.load %arg3[%c0_78, %c0_79, %c2_80, %c0_81, %c0_82] : memref<1x1x10x18x4xbf16, #tpu.memory_space<vmem>>, vector<1x1x8x16x4xbf16>
    %53 = vector.shape_cast %52 : vector<1x1x8x16x4xbf16> to vector<8x16x4xbf16>
    %54 = vector.shape_cast %53 : vector<8x16x4xbf16> to vector<128x4xbf16>
    %c2_83 = arith.constant 2 : index
    %c0_84 = arith.constant 0 : index
    %c0_85 = arith.constant 0 : index
    %c0_86 = arith.constant 0 : index
    %55 = vector.load %arg4[%c2_83, %c0_84, %c0_85, %c0_86] : memref<3x3x4x128xbf16, #tpu.memory_space<vmem>>, vector<1x1x4x128xbf16>
    %56 = vector.shape_cast %55 : vector<1x1x4x128xbf16> to vector<4x128xbf16>
    %cst_87 = arith.constant dense<0.000000e+00> : vector<128x128xf32>
    %57 = tpu.matmul %54, %56, %cst_87 {dimension_numbers = #tpu.dot_dimension_numbers<[1], [0], [0], [1], [0, 0, 1, 1], [], []>} : vector<128x4xbf16>, vector<4x128xbf16>, vector<128x128xf32> -> vector<128x128xf32>
    %c0_88 = arith.constant 0 : index
    %c0_89 = arith.constant 0 : index
    %58 = vector.load %arg7[%c0_88, %c0_89] : memref<128x128xf32, #tpu.memory_space<vmem>>, vector<128x128xf32>
    %59 = arith.addf %58, %57 : vector<128x128xf32>
    %c0_90 = arith.constant 0 : index
    %c0_91 = arith.constant 0 : index
    %60 = vector.load %arg7[%c0_90, %c0_91] : memref<128x128xf32, #tpu.memory_space<vmem>>, vector<128x128xf32>
    tpu.vector_store %arg7[%c0_90, %c0_91], %59 {strides = array<i32>} : memref<128x128xf32, #tpu.memory_space<vmem>>, vector<128x128xf32>,
    %c0_92 = arith.constant 0 : index
    %c0_93 = arith.constant 0 : index
    %c2_94 = arith.constant 2 : index
    %c1_95 = arith.constant 1 : index
    %c0_96 = arith.constant 0 : index
    %61 = vector.load %arg3[%c0_92, %c0_93, %c2_94, %c1_95, %c0_96] : memref<1x1x10x18x4xbf16, #tpu.memory_space<vmem>>, vector<1x1x8x16x4xbf16>
    %62 = vector.shape_cast %61 : vector<1x1x8x16x4xbf16> to vector<8x16x4xbf16>
    %63 = vector.shape_cast %62 : vector<8x16x4xbf16> to vector<128x4xbf16>
    %c2_97 = arith.constant 2 : index
    %c1_98 = arith.constant 1 : index
    %c0_99 = arith.constant 0 : index
    %c0_100 = arith.constant 0 : index
    %64 = vector.load %arg4[%c2_97, %c1_98, %c0_99, %c0_100] : memref<3x3x4x128xbf16, #tpu.memory_space<vmem>>, vector<1x1x4x128xbf16>
    %65 = vector.shape_cast %64 : vector<1x1x4x128xbf16> to vector<4x128xbf16>
    %cst_101 = arith.constant dense<0.000000e+00> : vector<128x128xf32>
    %66 = tpu.matmul %63, %65, %cst_101 {dimension_numbers = #tpu.dot_dimension_numbers<[1], [0], [0], [1], [0, 0, 1, 1], [], []>} : vector<128x4xbf16>, vector<4x128xbf16>, vector<128x128xf32> -> vector<128x128xf32>
    %c0_102 = arith.constant 0 : index
    %c0_103 = arith.constant 0 : index
    %67 = vector.load %arg7[%c0_102, %c0_103] : memref<128x128xf32, #tpu.memory_space<vmem>>, vector<128x128xf32>
    %68 = arith.addf %67, %66 : vector<128x128xf32>
    %c0_104 = arith.constant 0 : index
    %c0_105 = arith.constant 0 : index
    %69 = vector.load %arg7[%c0_104, %c0_105] : memref<128x128xf32, #tpu.memory_space<vmem>>, vector<128x128xf32>
    tpu.vector_store %arg7[%c0_104, %c0_105], %68 {strides = array<i32>} : memref<128x128xf32, #tpu.memory_space<vmem>>, vector<128x128xf32>,
    %c0_106 = arith.constant 0 : index
    %c0_107 = arith.constant 0 : index
    %c2_108 = arith.constant 2 : index
    %c2_109 = arith.constant 2 : index
    %c0_110 = arith.constant 0 : index
    %70 = vector.load %arg3[%c0_106, %c0_107, %c2_108, %c2_109, %c0_110] : memref<1x1x10x18x4xbf16, #tpu.memory_space<vmem>>, vector<1x1x8x16x4xbf16>
    %71 = vector.shape_cast %70 : vector<1x1x8x16x4xbf16> to vector<8x16x4xbf16>
    %72 = vector.shape_cast %71 : vector<8x16x4xbf16> to vector<128x4xbf16>
    %c2_111 = arith.constant 2 : index
    %c2_112 = arith.constant 2 : index
    %c0_113 = arith.constant 0 : index
    %c0_114 = arith.constant 0 : index
    %73 = vector.load %arg4[%c2_111, %c2_112, %c0_113, %c0_114] : memref<3x3x4x128xbf16, #tpu.memory_space<vmem>>, vector<1x1x4x128xbf16>
    %74 = vector.shape_cast %73 : vector<1x1x4x128xbf16> to vector<4x128xbf16>
    %cst_115 = arith.constant dense<0.000000e+00> : vector<128x128xf32>
    %75 = tpu.matmul %72, %74, %cst_115 {dimension_numbers = #tpu.dot_dimension_numbers<[1], [0], [0], [1], [0, 0, 1, 1], [], []>} : vector<128x4xbf16>, vector<4x128xbf16>, vector<128x128xf32> -> vector<128x128xf32>
    %c0_116 = arith.constant 0 : index
    %c0_117 = arith.constant 0 : index
    %76 = vector.load %arg7[%c0_116, %c0_117] : memref<128x128xf32, #tpu.memory_space<vmem>>, vector<128x128xf32>
    %77 = arith.addf %76, %75 : vector<128x128xf32>
    %c0_118 = arith.constant 0 : index
    %c0_119 = arith.constant 0 : index
    %78 = vector.load %arg7[%c0_118, %c0_119] : memref<128x128xf32, #tpu.memory_space<vmem>>, vector<128x128xf32>
    tpu.vector_store %arg7[%c0_118, %c0_119], %77 {strides = array<i32>} : memref<128x128xf32, #tpu.memory_space<vmem>>, vector<128x128xf32>,
    %c0_120 = arith.constant 0 : index
    %c0_121 = arith.constant 0 : index
    %79 = vector.load %arg7[%c0_120, %c0_121] : memref<128x128xf32, #tpu.memory_space<vmem>>, vector<128x128xf32>
    %c0_122 = arith.constant 0 : index
    %c0_123 = arith.constant 0 : index
    %80 = vector.load %arg5[%c0_122, %c0_123] : memref<1x128xf32, #tpu.memory_space<vmem>>, vector<1x128xf32>
    %81 = vector.broadcast %80 : vector<1x128xf32> to vector<128x128xf32>
    %82 = arith.addf %79, %81 : vector<128x128xf32>
    %cst_124 = arith.constant 0.000000e+00 : f32
    %83 = vector.broadcast %cst_124 : f32 to vector<128x128xf32>
    %84 = arith.maximumf %82, %83 : vector<128x128xf32>
    %85 = vector.shape_cast %84 : vector<128x128xf32> to vector<8x16x128xf32>
    %c0_125 = arith.constant 0 : index
    %c0_126 = arith.constant 0 : index
    %c0_127 = arith.constant 0 : index
    %c0_128 = arith.constant 0 : index
    %86 = vector.load %arg6[%c0_125, %c0_126, %c0_127, %c0_128] : memref<1x8x16x128xf32, #tpu.memory_space<vmem>>, vector<1x8x16x128xf32>
    %87 = vector.shape_cast %86 : vector<1x8x16x128xf32> to vector<8x16x128xf32>
    %88 = vector.shape_cast %85 : vector<8x16x128xf32> to vector<1x8x16x128xf32>
    tpu.vector_store %arg6[%c0_125, %c0_126, %c0_127, %c0_128], %88 {strides = array<i32>} : memref<1x8x16x128xf32, #tpu.memory_space<vmem>>, vector<1x8x16x128xf32>,
    return
  }
  func.func @transform_0(%arg0: i32, %arg1: i32, %arg2: i32) -> (i32, i32, i32, i32, i32) {
    %c0_i32 = arith.constant 0 : i32
    %c0_i32_0 = arith.constant 0 : i32
    %c0_i32_1 = arith.constant 0 : i32
    %c0_i32_2 = arith.constant 0 : i32
    return %arg0, %arg1, %c0_i32, %c0_i32_0, %c0_i32_1 : i32, i32, i32, i32, i32
  }
  func.func @transform_1(%arg0: i32, %arg1: i32, %arg2: i32) -> (i32, i32, i32, i32) {
    %c0_i32 = arith.constant 0 : i32
    %c0_i32_0 = arith.constant 0 : i32
    %c0_i32_1 = arith.constant 0 : i32
    %c0_i32_2 = arith.constant 0 : i32
    return %c0_i32, %c0_i32_0, %c0_i32_1, %arg2 : i32, i32, i32, i32
  }
  func.func @transform_2(%arg0: i32, %arg1: i32, %arg2: i32) -> (i32, i32) {
    %c0_i32 = arith.constant 0 : i32
    %c0_i32_0 = arith.constant 0 : i32
    return %c0_i32, %arg2 : i32, i32
  }
  func.func @transform_3(%arg0: i32, %arg1: i32, %arg2: i32) -> (i32, i32, i32, i32) {
    %c0_i32 = arith.constant 0 : i32
    %c0_i32_0 = arith.constant 0 : i32
    return %arg0, %arg1, %c0_i32, %arg2 : i32, i32, i32, i32
  }
}

</mosaic_0001>

<llo_original>
// kernel: tpu_custom_call.1
$region0: #{tpu_custom_call.1}
  #allocation0 [shape = 'u32[]', space=smem, size = 0x4, offset = 0x4, fixed_abs, tag = 'smem constant byte address 0x4 - core index']
  #allocation1 [shape = 'u32[144,128]{1,0:T(1,128)}', space=vmem, size = 0x12000, scoped, tag = 'internal scratch']
  #allocation2 [shape = 'f32[128,128]{1,0:T(8,128)}', space=vmem, size = 0x10000, scoped, tag = 'scratch operand']
  %s0 = inlined_call_operand.vmem [shape: bf16[2,2,10,18,4], index: 0, kind: input, shape index: {}]
  %s1 = inlined_call_operand.vmem [shape: bf16[3,3,4,128], index: 1, kind: input, shape index: {}]
  %s2 = inlined_call_operand.vmem [shape: f32[1,128], index: 2, kind: input, shape index: {}]
  %s3 = inlined_call_operand.hbm [shape: f32[2,16,16,128], index: 3, kind: output, shape index: {}]
  %s4 = sld [smem:[#allocation0]]
  $region45: #{tpu_custom_call.1} parent=0
    _
  %s6 = ssub.s32 1, %s4
  %s7 = scalar_select 0, %s6, %s4
  $region1: #{tpu_custom_call.1} parent=0
    #allocation3 [shape = 'u8[131072]{0}', space=vmem, size = 0x20000, scoped, tag = 'output window, operand 0']
    #allocation4 [shape = 's32[2]{0}', space=sflag, size = 0x8, scoped, tag = 'scoped memory for tpu_custom_call.1']
    %8 = vsyncpa [#allocation4], 0
    %s9 = scalar_lea.sflag [#allocation4], 1
    %10 = vsyncpa %s9, 0
    loop: start=0, step=1, limit=6
    $region2: #{tpu_custom_call.1} parent=1 // loop_pre_header
      _
    $region3: #{tpu_custom_call.1} parent=1 // loop_header
      %s12 = sphi 0, %s16
      %p13 = scmp.ge.s32.totalorder %s12, 6
      %s19 = sphi 0, %s38
      %s20 = sphi 0, %s34
      %s21 = sphi 0, %s30
      %s22 = sphi 0, %s19
      %s23 = sphi 0, %s20
      %s24 = sphi 0, %s21
      %s25 = sphi 0, %s22
      %s26 = sphi 0, %s23
      %s27 = sphi 0, %s24
      %s43 = sphi 0, %s45
      %s46 = sphi 0, %s43
      %s47 = sphi 0, %s46
      %s63 = sphi 0, %s47
      %s69 = sphi 0, %s71
      %s72 = sphi 0, %s69
      %s73 = sphi 0, %s72
      %s89 = sphi 0, %s73
      %s95 = sphi 0, %s97
      %s98 = sphi 0, %s95
      %s99 = sphi 0, %s98
      %s115 = sphi 0, %s99
      %s125 = sphi 0, %s127
      %s128 = sphi 0, %s125
      %s129 = sphi 0, %s128
      %s145 = sphi 0, %s129
    $region4: #{tpu_custom_call.1} parent=1 // loop_header_branch
      %15 = sbr.rel (%p13) target = $region8
    $region5: #{tpu_custom_call.1} parent=1 // loop_body
      %s17 = ssub.s32 %s12, 1
      %s18 = ssub.s32 %s12, 2
      %s28 = sadd.s32 1, %s21
      %p29 = scmp.ge.s32.totalorder %s28, 1
      %s30 = scalar_select %p29, 0, %s28
      %s31 = sadd.s32 1, %s20
      %s32 = scalar_select %p29, %s31, %s20
      %p33 = scmp.ge.s32.totalorder %s32, 2
      %s34 = scalar_select %p33, 0, %s32
      %s35 = sadd.s32 1, %s19
      %s36 = scalar_select %p33, %s35, %s19
      %p37 = scmp.ge.s32.totalorder %s36, 2
      %s38 = scalar_select %p37, 0, %s36
      %s39 = ssub.s32 %s19, %s38
      %s40 = ssub.s32 %s20, %s34
      %s41 = sor.u32 %s39, %s40
      %p42 = scmp.eq.s32.totalorder %s41, 0
      %s44 = sadd.s32 %s43, 1
      %s45 = scalar_select %p42, %s43, %s44
      %p48 = pneg %p42
      %p49 = scmp.eq.s32.totalorder %s12, 3
      %p50 = por %p48, %p49
      %p51 = scmp.ne.s32.totalorder %s43, %s46
      %p52 = scmp.eq.s32.totalorder %s12, 0
      %p53 = por %p51, %p52
      %p54 = scmp.ne.s32.totalorder %s43, %s46
      %p55 = scmp.eq.s32.totalorder %s17, 3
      %p56 = por %p54, %p55
      %p57 = scmp.ne.s32.totalorder %s46, %s47
      %p58 = scmp.eq.s32.totalorder %s17, 0
      %p59 = por %p57, %p58
      %p60 = scmp.ne.s32.totalorder %s46, %s47
      %p61 = scmp.eq.s32.totalorder %s18, 3
      %p62 = por %p60, %p61
      %p64 = scmp.ne.s32.totalorder %s47, %s63
      %p65 = scmp.eq.s32.totalorder %s18, 0
      %p66 = por %p64, %p65
      %s67 = ssub.s32 %s21, %s30
      %p68 = scmp.eq.s32.totalorder %s67, 0
      %s70 = sadd.s32 %s69, 1
      %s71 = scalar_select %p68, %s69, %s70
      %p74 = pneg %p68
      %p75 = scmp.eq.s32.totalorder %s12, 3
      %p76 = por %p74, %p75
      %p77 = scmp.ne.s32.totalorder %s69, %s72
      %p78 = scmp.eq.s32.totalorder %s12, 0
      %p79 = por %p77, %p78
      %p80 = scmp.ne.s32.totalorder %s69, %s72
      %p81 = scmp.eq.s32.totalorder %s17, 3
      %p82 = por %p80, %p81
      %p83 = scmp.ne.s32.totalorder %s72, %s73
      %p84 = scmp.eq.s32.totalorder %s17, 0
      %p85 = por %p83, %p84
      %p86 = scmp.ne.s32.totalorder %s72, %s73
      %p87 = scmp.eq.s32.totalorder %s18, 3
      %p88 = por %p86, %p87
      %p90 = scmp.ne.s32.totalorder %s73, %s89
      %p91 = scmp.eq.s32.totalorder %s18, 0
      %p92 = por %p90, %p91
      %s93 = ssub.s32 %s21, %s30
      %p94 = scmp.eq.s32.totalorder %s93, 0
      %s96 = sadd.s32 %s95, 1
      %s97 = scalar_select %p94, %s95, %s96
      %p100 = pneg %p94
      %p101 = scmp.eq.s32.totalorder %s12, 3
      %p102 = por %p100, %p101
      %p103 = scmp.ne.s32.totalorder %s95, %s98
      %p104 = scmp.eq.s32.totalorder %s12, 0
      %p105 = por %p103, %p104
      %p106 = scmp.ne.s32.totalorder %s95, %s98
      %p107 = scmp.eq.s32.totalorder %s17, 3
      %p108 = por %p106, %p107
      %p109 = scmp.ne.s32.totalorder %s98, %s99
      %p110 = scmp.eq.s32.totalorder %s17, 0
      %p111 = por %p109, %p110
      %p112 = scmp.ne.s32.totalorder %s98, %s99
      %p113 = scmp.eq.s32.totalorder %s18, 3
      %p114 = por %p112, %p113
      %p116 = scmp.ne.s32.totalorder %s99, %s115
      %p117 = scmp.eq.s32.totalorder %s18, 0
      %p118 = por %p116, %p117
      %s119 = ssub.s32 %s19, %s38
      %s120 = ssub.s32 %s20, %s34
      %s121 = sor.u32 %s119, %s120
      %s122 = ssub.s32 %s21, %s30
      %s123 = sor.u32 %s121, %s122
      %p124 = scmp.eq.s32.totalorder %s123, 0
      %s126 = sadd.s32 %s125, 1
      %s127 = scalar_select %p124, %s125, %s126
      %p130 = pneg %p124
      %p131 = scmp.eq.s32.totalorder %s12, 3
      %p132 = por %p130, %p131
      %p133 = scmp.ne.s32.totalorder %s125, %s128
      %p134 = scmp.eq.s32.totalorder %s12, 0
      %p135 = por %p133, %p134
      %p136 = scmp.ne.s32.totalorder %s125, %s128
      %p137 = scmp.eq.s32.totalorder %s17, 3
      %p138 = por %p136, %p137
      %p139 = scmp.ne.s32.totalorder %s128, %s129
      %p140 = scmp.eq.s32.totalorder %s17, 0
      %p141 = por %p139, %p140
      %p142 = scmp.ne.s32.totalorder %s128, %s129
      %p143 = scmp.eq.s32.totalorder %s18, 3
      %p144 = por %p142, %p143
      %p146 = scmp.ne.s32.totalorder %s129, %s145
      %p147 = scmp.eq.s32.totalorder %s18, 0
      %p148 = por %p146, %p147
      %p149 = scmp.le.s32.totalorder 1, %s12
      %p150 = scmp.lt.s32.totalorder %s12, 5
      %p151 = pnand %p149, %p150
      %p152 = pneg %p151
      // Predicated region
      $region9: #{tpu_custom_call.1} parent=5 // pred_check
        _
      $region10: #{tpu_custom_call.1} parent=5 // pred_check_branch
        %154 = sbr.rel (%p151) target = $region12
      $region11: #{tpu_custom_call.1} parent=5 // pred_region
        %s155 = ssub.s32 %s12, 1
        // Predicated region
        $region13: #{tpu_custom_call.1} parent=11 // pred_check
          %p156 = pneg %p85
        $region14: #{tpu_custom_call.1} parent=11 // pred_check_branch
          %158 = sbr.rel (%p156) target = $region16
        $region15: #{tpu_custom_call.1} parent=11 // pred_region
          %p159 = scmp.lt.s32.totalorder %s24, 0
          %s160 = scalar_select %p159, %s24, 0
          %s161 = smul.addr %s160, 2
          %s162 = scalar_lea.vmem %s1, %s161
        $region16: #{tpu_custom_call.1} parent=11 // pred_fallthru
          _
        // Predicated region
        $region17: #{tpu_custom_call.1} parent=11 // pred_check
          %p163 = pneg %p111
        $region18: #{tpu_custom_call.1} parent=11 // pred_check_branch
          %165 = sbr.rel (%p163) target = $region20
        $region19: #{tpu_custom_call.1} parent=11 // pred_region
          %p166 = scmp.lt.s32.totalorder %s24, 0
          %s167 = scalar_select %p166, %s24, 0
          %s168 = scalar_lea.vmem %s2, %s167
        $region20: #{tpu_custom_call.1} parent=11 // pred_fallthru
          _
      $region12: #{tpu_custom_call.1} parent=5 // pred_fallthru
        _
      %p169 = scmp.lt.s32.totalorder %s12, 4
      // Predicated region
      $region21: #{tpu_custom_call.1} parent=5 // pred_check
        %p170 = pneg %p169
      $region22: #{tpu_custom_call.1} parent=5 // pred_check_branch
        %172 = sbr.rel (%p170) target = $region24
      $region23: #{tpu_custom_call.1} parent=5 // pred_region
        // Predicated region
        $region25: #{tpu_custom_call.1} parent=23 // pred_check
          %p173 = pneg %p53
        $region26: #{tpu_custom_call.1} parent=23 // pred_check_branch
          %175 = sbr.rel (%p173) target = $region28
        $region27: #{tpu_custom_call.1} parent=23 // pred_region
          %p176 = scmp.lt.s32.totalorder %s19, 1
          %s177 = scalar_select %p176, %s19, 1
          %p178 = scmp.lt.s32.totalorder %s20, 1
          %s179 = scalar_select %p178, %s20, 1
          %s180 = smul.addr %s179, 30
          %s181 = smul.addr %s177, 60
          %s182 = sadd.s32 %s180, %s181
          %s183 = smul.addr %s182, 4
          %s184 = scalar_lea.vmem %s0, %s183
        $region28: #{tpu_custom_call.1} parent=23 // pred_fallthru
          _
      $region24: #{tpu_custom_call.1} parent=5 // pred_fallthru
        _
      %p185 = scmp.le.s32.totalorder 1, %s12
      %p186 = scmp.lt.s32.totalorder %s12, 5
      %p187 = pnand %p185, %p186
      %p188 = pneg %p187
      // Predicated region
      $region29: #{tpu_custom_call.1} parent=5 // pred_check
        _
      $region30: #{tpu_custom_call.1} parent=5 // pred_check_branch
        %190 = sbr.rel (%p187) target = $region32
      $region31: #{tpu_custom_call.1} parent=5 // pred_region
        %s191 = ssub.s32 %s12, 1
        %p192 = scmp.lt.s32.totalorder %s22, 1
        %s193 = scalar_select %p192, %s22, 1
        %p194 = scmp.lt.s32.totalorder %s23, 1
        %s195 = scalar_select %p194, %s23, 1
        %s196 = smul.addr %s195, 30
        %s197 = smul.addr %s193, 60
        %s198 = sadd.s32 %s196, %s197
        %s199 = smul.addr %s198, 4
        %s200 = scalar_lea.vmem %s0, %s199
        %p201 = pneg %p59
        %p202 = pneg %p56
        %p203 = scmp.lt.s32.totalorder %s24, 0
        %s204 = scalar_select %p203, %s24, 0
        %s205 = smul.addr %s204, 2
        %s206 = scalar_lea.vmem %s1, %s205
        %p207 = pneg %p85
        %p208 = pneg %p82
        %p209 = scmp.lt.s32.totalorder %s24, 0
        %s210 = scalar_select %p209, %s24, 0
        %s211 = scalar_lea.vmem %s2, %s210
        %p212 = pneg %p111
        %p213 = pneg %p108
        %p214 = pneg %p141
        %p215 = pneg %p138
        %s216 = sand.u32 %s128, 1
        %s217 = scalar_lea.sflag [#allocation4], %s216
        %s218 = sand.u32 %s128, 1
        %s219 = smul.addr %s218, 128
        %s220 = scalar_lea.vmem [#allocation3], %s219
        %p221 = scmp.lt.s32.totalorder %s22, 1
        %s222 = scalar_select %p221, %s22, 1
        %p223 = scmp.lt.s32.totalorder %s23, 1
        %s224 = scalar_select %p223, %s23, 1
        %s225 = smul.addr %s224, 30
        %s226 = smul.addr %s222, 60
        %s227 = sadd.s32 %s225, %s226
        %s228 = smul.addr %s227, 4
        %s229 = scalar_lea.vmem %s0, %s228
        %p230 = scmp.lt.s32.totalorder %s24, 0
        %s231 = scalar_select %p230, %s24, 0
        %s232 = smul.addr %s231, 2
        %s233 = scalar_lea.vmem %s1, %s232
        %p234 = scmp.lt.s32.totalorder %s24, 0
        %s235 = scalar_select %p234, %s24, 0
        %s236 = scalar_lea.vmem %s2, %s235
        %s237 = smul.u32 8, %s23
        %v239 = vld [vmem:[%s229] sm:$0xf]
        %v240 = vld [vmem:[%s229 + $0x4] sm:$0xf]
        %v241 = vld [vmem:[%s229 + $0xc] sm:$0xf]
        %v242 = vld [vmem:[%s229 + $0x10] sm:$0xf]
        %v243 = vld [vmem:[%s229 + $0x18] sm:$0xf]
        %v244 = vld [vmem:[%s229 + $0x1c] sm:$0xf]
        %v245 = vld [vmem:[%s229 + $0x24] sm:$0xf]
        %v246 = vld [vmem:[%s229 + $0x28] sm:$0xf]
        %v247 = vld [vmem:[%s229 + $0x30] sm:$0xf]
        %v248 = vld [vmem:[%s229 + $0x34] sm:$0xf]
        %v249 = vld [vmem:[%s229 + $0x3c] sm:$0xf]
        %v250 = vld [vmem:[%s229 + $0x40] sm:$0xf]
        %v251 = vld [vmem:[%s229 + $0x48] sm:$0xf]
        %v252 = vld [vmem:[%s229 + $0x4c] sm:$0xf]
        %v253 = vld [vmem:[%s229 + $0x54] sm:$0xf]
        %v254 = vld [vmem:[%s229 + $0x58] sm:$0xf]
        %v255 = vld [vmem:[%s233] sm:$0x3]
        %v272 = vunpack.c.l.b16 %v239
        %v273 = vunpack.c.l.b16 %v240
        %v274 = vunpack.c.l.b16 %v241
        %v275 = vunpack.c.l.b16 %v242
        %v276 = vunpack.c.l.b16 %v243
        %v277 = vunpack.c.l.b16 %v244
        %v278 = vunpack.c.l.b16 %v245
        %v279 = vunpack.c.l.b16 %v246
        %v280 = vunpack.c.l.b16 %v247
        %v281 = vunpack.c.l.b16 %v248
        %v282 = vunpack.c.l.b16 %v249
        %v283 = vunpack.c.l.b16 %v250
        %v284 = vunpack.c.l.b16 %v251
        %v285 = vunpack.c.l.b16 %v252
        %v286 = vunpack.c.l.b16 %v253
        %v287 = vunpack.c.l.b16 %v254
        %v288 = vpack.c.b16 %v273, %v272
        %v289 = vpack.c.b16 %v275, %v274
        %v290 = vpack.c.b16 %v277, %v276
        %v291 = vpack.c.b16 %v279, %v278
        %v292 = vpack.c.b16 %v281, %v280
        %v293 = vpack.c.b16 %v283, %v282
        %v294 = vpack.c.b16 %v285, %v284
        %v295 = vpack.c.b16 %v287, %v286
        %vm296 = vcmask 31744
        %v298 = vsel %vm296, %v288, 0
        %v301 = vsel %vm296, %v289, 0
        %v304 = vsel %vm296, %v290, 0
        %v307 = vsel %vm296, %v291, 0
        %v310 = vsel %vm296, %v292, 0
        %v313 = vsel %vm296, %v293, 0
        %v316 = vsel %vm296, %v294, 0
        %v319 = vsel %vm296, %v295, 0
        %vm321 = vcmask 1041408
        %v323 = vsel %vm321, %v255, 0
        %325 = vmatprep.subr.bf16.mxu0 0
        %326 = vmatpush1.bf16.msra.mxu0 %v323
        %327 = vmatprep.subr.bf16.mxu0 0
        %328 = vmatpush1.bf16.msra.mxu0 0
        %329 = vmatprep.subr.bf16.mxu0 0
        %330 = vmatpush1.bf16.msra.mxu0 0
        %331 = vmatprep.subr.bf16.mxu0 0
        %332 = vmatpush1.bf16.msra.mxu0 0
        %333 = vmatprep.subr.bf16.mxu0 0
        %334 = vmatpush1.bf16.msra.mxu0 0
        %335 = vmatprep.subr.bf16.mxu0 0
        %336 = vmatpush1.bf16.msra.mxu0 0
        %337 = vmatprep.subr.bf16.mxu0 0
        %338 = vmatpush1.bf16.msra.mxu0 0
        %339 = vmatprep.subr.bf16.mxu0 0
        %340 = vmatpush1.bf16.msra.mxu0 0
        %341 = vmatprep.subr.bf16.mxu0 0
        %342 = vmatpush1.bf16.msra.mxu0 0
        %343 = vmatprep.subr.bf16.mxu0 0
        %344 = vmatpush1.bf16.msra.mxu0 0
        %345 = vmatprep.subr.bf16.mxu0 0
        %346 = vmatpush1.bf16.msra.mxu0 0
        %347 = vmatprep.subr.bf16.mxu0 0
        %348 = vmatpush1.bf16.msra.mxu0 0
        %349 = vmatprep.subr.bf16.mxu0 0
        %350 = vmatpush1.bf16.msra.mxu0 0
        %351 = vmatprep.subr.bf16.mxu0 0
        %352 = vmatpush1.bf16.msra.mxu0 0
        %353 = vmatprep.subr.bf16.mxu0 0
        %354 = vmatpush1.bf16.msra.mxu0 0
        %355 = vmatprep.subr.bf16.mxu0 0
        %356 = vmatpush1.bf16.msra.mxu0 0
        %357 = vmatprep.mubr.bf16.mxu0 0
        %358 = vmatmul.mubr.bf16.gmra.mrb[0].mxu0 %v298
        %v359 = vpop.f32.mrb[0].mxu0
        %v360 = vadd.f32 0.0, %v359
        %v361 = vpop.f32.mrb[0].mxu0
        %v362 = vpop.f32.mrb[0].mxu0
        %v363 = vadd.f32 0.0, %v362
        %v364 = vpop.f32.mrb[0].mxu0
        %365 = vmatprep.mubr.bf16.mxu0 0
        %366 = vmatmul.mubr.bf16.gmra.mrb[0].mxu0 %v301
        %v367 = vpop.f32.mrb[0].mxu0
        %v368 = vadd.f32 0.0, %v367
        %v369 = vpop.f32.mrb[0].mxu0
        %v370 = vpop.f32.mrb[0].mxu0
        %v371 = vadd.f32 0.0, %v370
        %v372 = vpop.f32.mrb[0].mxu0
        %373 = vmatprep.mubr.bf16.mxu0 0
        %374 = vmatmul.mubr.bf16.gmra.mrb[0].mxu0 %v304
        %v375 = vpop.f32.mrb[0].mxu0
        %v376 = vadd.f32 0.0, %v375
        %v377 = vpop.f32.mrb[0].mxu0
        %v378 = vpop.f32.mrb[0].mxu0
        %v379 = vadd.f32 0.0, %v378
        %v380 = vpop.f32.mrb[0].mxu0
        %381 = vmatprep.mubr.bf16.mxu0 0
        %382 = vmatmul.mubr.bf16.gmra.mrb[0].mxu0 %v307
        %v383 = vpop.f32.mrb[0].mxu0
        %v384 = vadd.f32 0.0, %v383
        %v385 = vpop.f32.mrb[0].mxu0
        %v386 = vpop.f32.mrb[0].mxu0
        %v387 = vadd.f32 0.0, %v386
        %v388 = vpop.f32.mrb[0].mxu0
        %389 = vmatprep.mubr.bf16.mxu0 0
        %390 = vmatmul.mubr.bf16.gmra.mrb[0].mxu0 %v310
        %v391 = vpop.f32.mrb[0].mxu0
        %v392 = vadd.f32 0.0, %v391
        %v393 = vpop.f32.mrb[0].mxu0
        %v394 = vpop.f32.mrb[0].mxu0
        %v395 = vadd.f32 0.0, %v394
        %v396 = vpop.f32.mrb[0].mxu0
        %397 = vmatprep.mubr.bf16.mxu0 0
        %398 = vmatmul.mubr.bf16.gmra.mrb[0].mxu0 %v313
        %v399 = vpop.f32.mrb[0].mxu0
        %v400 = vadd.f32 0.0, %v399
        %v401 = vpop.f32.mrb[0].mxu0
        %v402 = vpop.f32.mrb[0].mxu0
        %v403 = vadd.f32 0.0, %v402
        %v404 = vpop.f32.mrb[0].mxu0
        %405 = vmatprep.mubr.bf16.mxu0 0
        %406 = vmatmul.mubr.bf16.gmra.mrb[0].mxu0 %v316
        %v407 = vpop.f32.mrb[0].mxu0
        %v408 = vadd.f32 0.0, %v407
        %v409 = vpop.f32.mrb[0].mxu0
        %v410 = vpop.f32.mrb[0].mxu0
        %v411 = vadd.f32 0.0, %v410
        %v412 = vpop.f32.mrb[0].mxu0
        %413 = vmatprep.mubr.bf16.mxu0 0
        %414 = vmatmul.mubr.bf16.gmra.mrb[0].mxu0 %v319
        %v415 = vpop.f32.mrb[0].mxu0
        %v416 = vadd.f32 0.0, %v415
        %v417 = vpop.f32.mrb[0].mxu0
        %v418 = vpop.f32.mrb[0].mxu0
        %v419 = vadd.f32 0.0, %v418
        %v420 = vpop.f32.mrb[0].mxu0
        %421 = vdwg.mxu0
        %422 = vst [vmem:[#allocation2] sm:$0xff] %v360
        %423 = vst [vmem:[#allocation2 + $0x8] sm:$0xff] %v363
        %424 = vst [vmem:[#allocation2 + $0x10] sm:$0xff] %v368
        %425 = vst [vmem:[#allocation2 + $0x18] sm:$0xff] %v371
        %426 = vst [vmem:[#allocation2 + $0x20] sm:$0xff] %v376
        %427 = vst [vmem:[#allocation2 + $0x28] sm:$0xff] %v379
        %428 = vst [vmem:[#allocation2 + $0x30] sm:$0xff] %v384
        %429 = vst [vmem:[#allocation2 + $0x38] sm:$0xff] %v387
        %430 = vst [vmem:[#allocation2 + $0x40] sm:$0xff] %v392
        %431 = vst [vmem:[#allocation2 + $0x48] sm:$0xff] %v395
        %432 = vst [vmem:[#allocation2 + $0x50] sm:$0xff] %v400
        %433 = vst [vmem:[#allocation2 + $0x58] sm:$0xff] %v403
        %434 = vst [vmem:[#allocation2 + $0x60] sm:$0xff] %v408
        %435 = vst [vmem:[#allocation2 + $0x68] sm:$0xff] %v411
        %436 = vst [vmem:[#allocation2 + $0x70] sm:$0xff] %v416
        %437 = vst [vmem:[#allocation2 + $0x78] sm:$0xff] %v419
        %v438 = vld [vmem:[%s229] sm:$0xf]
        %v439 = vld [vmem:[%s229 + $0x4] sm:$0xf]
        %v440 = vld [vmem:[%s229 + $0x8] sm:$0x1]
        %v441 = vld [vmem:[%s229 + $0xc] sm:$0xf]
        %v442 = vld [vmem:[%s229 + $0x10] sm:$0xf]
        %v443 = vld [vmem:[%s229 + $0x14] sm:$0x1]
        %v444 = vld [vmem:[%s229 + $0x18] sm:$0xf]
        %v445 = vld [vmem:[%s229 + $0x1c] sm:$0xf]
        %v446 = vld [vmem:[%s229 + $0x20] sm:$0x1]
        %v447 = vld [vmem:[%s229 + $0x24] sm:$0xf]
        %v448 = vld [vmem:[%s229 + $0x28] sm:$0xf]
        %v449 = vld [vmem:[%s229 + $0x2c] sm:$0x1]
        %v450 = vld [vmem:[%s229 + $0x30] sm:$0xf]
        %v451 = vld [vmem:[%s229 + $0x34] sm:$0xf]
        %v452 = vld [vmem:[%s229 + $0x38] sm:$0x1]
        %v453 = vld [vmem:[%s229 + $0x3c] sm:$0xf]
        %v454 = vld [vmem:[%s229 + $0x40] sm:$0xf]
        %v455 = vld [vmem:[%s229 + $0x44] sm:$0x1]
        %v456 = vld [vmem:[%s229 + $0x48] sm:$0xf]
        %v457 = vld [vmem:[%s229 + $0x4c] sm:$0xf]
        %v458 = vld [vmem:[%s229 + $0x50] sm:$0x1]
        %v459 = vld [vmem:[%s229 + $0x54] sm:$0xf]
        %v460 = vld [vmem:[%s229 + $0x58] sm:$0xf]
        %v461 = vld [vmem:[%s229 + $0x5c] sm:$0x1]
        %vm462 = vsmask.f32 3328
        %vm463 = vsmask.f32 7440
        %vm464 = vmor %vm462, %vm463
        %v466 = vshrl.u32 %v438, 16
        %v468 = vrot.slane %v466, 4
        %v469 = vshll.u32 %v438, 16
        %v471 = vrot.slane %v469, 5
        %v472 = vor.u32 %v468, %v471
        %v473 = vrot.slane %v472, 4
        %v475 = vshll.u32 %v439, 16
        %v477 = vrot.slane %v475, 5
        %v478 = vsel %vm464, %v473, %v477
        %v479 = vshrl.u32 %v439, 16
        %v481 = vrot.slane %v479, 4
        %v482 = vor.u32 %v481, %v477
        %v483 = vrot.slane %v482, 4
        %v485 = vshll.u32 %v440, 16
        %v487 = vrot.slane %v485, 5
        %v488 = vsel %vm464, %v483, %v487
        %v490 = vshrl.u32 %v441, 16
        %v492 = vrot.slane %v490, 4
        %v493 = vshll.u32 %v441, 16
        %v495 = vrot.slane %v493, 5
        %v496 = vor.u32 %v492, %v495
        %v497 = vrot.slane %v496, 4
        %v499 = vshll.u32 %v442, 16
        %v501 = vrot.slane %v499, 5
        %v502 = vsel %vm464, %v497, %v501
        %v503 = vshrl.u32 %v442, 16
        %v505 = vrot.slane %v503, 4
        %v506 = vor.u32 %v505, %v501
        %v507 = vrot.slane %v506, 4
        %v509 = vshll.u32 %v443, 16
        %v511 = vrot.slane %v509, 5
        %v512 = vsel %vm464, %v507, %v511
        %v514 = vshrl.u32 %v444, 16
        %v516 = vrot.slane %v514, 4
        %v517 = vshll.u32 %v444, 16
        %v519 = vrot.slane %v517, 5
        %v520 = vor.u32 %v516, %v519
        %v521 = vrot.slane %v520, 4
        %v523 = vshll.u32 %v445, 16
        %v525 = vrot.slane %v523, 5
        %v526 = vsel %vm464, %v521, %v525
        %v527 = vshrl.u32 %v445, 16
        %v529 = vrot.slane %v527, 4
        %v530 = vor.u32 %v529, %v525
        %v531 = vrot.slane %v530, 4
        %v533 = vshll.u32 %v446, 16
        %v535 = vrot.slane %v533, 5
        %v536 = vsel %vm464, %v531, %v535
        %v538 = vshrl.u32 %v447, 16
        %v540 = vrot.slane %v538, 4
        %v541 = vshll.u32 %v447, 16
        %v543 = vrot.slane %v541, 5
        %v544 = vor.u32 %v540, %v543
        %v545 = vrot.slane %v544, 4
        %v547 = vshll.u32 %v448, 16
        %v549 = vrot.slane %v547, 5
        %v550 = vsel %vm464, %v545, %v549
        %v551 = vshrl.u32 %v448, 16
        %v553 = vrot.slane %v551, 4
        %v554 = vor.u32 %v553, %v549
        %v555 = vrot.slane %v554, 4
        %v557 = vshll.u32 %v449, 16
        %v559 = vrot.slane %v557, 5
        %v560 = vsel %vm464, %v555, %v559
        %v562 = vshrl.u32 %v450, 16
        %v564 = vrot.slane %v562, 4
        %v565 = vshll.u32 %v450, 16
        %v567 = vrot.slane %v565, 5
        %v568 = vor.u32 %v564, %v567
        %v569 = vrot.slane %v568, 4
        %v571 = vshll.u32 %v451, 16
        %v573 = vrot.slane %v571, 5
        %v574 = vsel %vm464, %v569, %v573
        %v575 = vshrl.u32 %v451, 16
        %v577 = vrot.slane %v575, 4
        %v578 = vor.u32 %v577, %v573
        %v579 = vrot.slane %v578, 4
        %v581 = vshll.u32 %v452, 16
        %v583 = vrot.slane %v581, 5
        %v584 = vsel %vm464, %v579, %v583
        %v586 = vshrl.u32 %v453, 16
        %v588 = vrot.slane %v586, 4
        %v589 = vshll.u32 %v453, 16
        %v591 = vrot.slane %v589, 5
        %v592 = vor.u32 %v588, %v591
        %v593 = vrot.slane %v592, 4
        %v595 = vshll.u32 %v454, 16
        %v597 = vrot.slane %v595, 5
        %v598 = vsel %vm464, %v593, %v597
        %v599 = vshrl.u32 %v454, 16
        %v601 = vrot.slane %v599, 4
        %v602 = vor.u32 %v601, %v597
        %v603 = vrot.slane %v602, 4
        %v605 = vshll.u32 %v455, 16
        %v607 = vrot.slane %v605, 5
        %v608 = vsel %vm464, %v603, %v607
        %v610 = vshrl.u32 %v456, 16
        %v612 = vrot.slane %v610, 4
        %v613 = vshll.u32 %v456, 16
        %v615 = vrot.slane %v613, 5
        %v616 = vor.u32 %v612, %v615
        %v617 = vrot.slane %v616, 4
        %v619 = vshll.u32 %v457, 16
        %v621 = vrot.slane %v619, 5
        %v622 = vsel %vm464, %v617, %v621
        %v623 = vshrl.u32 %v457, 16
        %v625 = vrot.slane %v623, 4
        %v626 = vor.u32 %v625, %v621
        %v627 = vrot.slane %v626, 4
        %v629 = vshll.u32 %v458, 16
        %v631 = vrot.slane %v629, 5
        %v632 = vsel %vm464, %v627, %v631
        %v634 = vshrl.u32 %v459, 16
        %v636 = vrot.slane %v634, 4
        %v637 = vshll.u32 %v459, 16
        %v639 = vrot.slane %v637, 5
        %v640 = vor.u32 %v636, %v639
        %v641 = vrot.slane %v640, 4
        %v643 = vshll.u32 %v460, 16
        %v645 = vrot.slane %v643, 5
        %v646 = vsel %vm464, %v641, %v645
        %v647 = vshrl.u32 %v460, 16
        %v649 = vrot.slane %v647, 4
        %v650 = vor.u32 %v649, %v645
        %v651 = vrot.slane %v650, 4
        %v653 = vshll.u32 %v461, 16
        %v655 = vrot.slane %v653, 5
        %v656 = vsel %vm464, %v651, %v655
        %s657 = scalar_lea.vmem %s233, 2
        %v658 = vld [vmem:[%s657] sm:$0x3]
        %v659 = vunpack.c.l.b16 %v478
        %v660 = vunpack.c.l.b16 %v488
        %v661 = vunpack.c.l.b16 %v502
        %v662 = vunpack.c.l.b16 %v512
        %v663 = vunpack.c.l.b16 %v526
        %v664 = vunpack.c.l.b16 %v536
        %v665 = vunpack.c.l.b16 %v550
        %v666 = vunpack.c.l.b16 %v560
        %v667 = vunpack.c.l.b16 %v574
        %v668 = vunpack.c.l.b16 %v584
        %v669 = vunpack.c.l.b16 %v598
        %v670 = vunpack.c.l.b16 %v608
        %v671 = vunpack.c.l.b16 %v622
        %v672 = vunpack.c.l.b16 %v632
        %v673 = vunpack.c.l.b16 %v646
        %v674 = vunpack.c.l.b16 %v656
        %v675 = vpack.c.b16 %v660, %v659
        %v676 = vpack.c.b16 %v662, %v661
        %v677 = vpack.c.b16 %v664, %v663
        %v678 = vpack.c.b16 %v666, %v665
        %v679 = vpack.c.b16 %v668, %v667
        %v680 = vpack.c.b16 %v670, %v669
        %v681 = vpack.c.b16 %v672, %v671
        %v682 = vpack.c.b16 %v674, %v673
        %v684 = vsel %vm296, %v675, 0
        %v687 = vsel %vm296, %v676, 0
        %v690 = vsel %vm296, %v677, 0
        %v693 = vsel %vm296, %v678, 0
        %v696 = vsel %vm296, %v679, 0
        %v699 = vsel %vm296, %v680, 0
        %v702 = vsel %vm296, %v681, 0
        %v705 = vsel %vm296, %v682, 0
        %v708 = vsel %vm321, %v658, 0
        %710 = vmatprep.subr.bf16.mxu0 0
        %711 = vmatpush1.bf16.msra.mxu0 %v708
        %712 = vmatprep.subr.bf16.mxu0 0
        %713 = vmatpush1.bf16.msra.mxu0 0
        %714 = vmatprep.subr.bf16.mxu0 0
        %715 = vmatpush1.bf16.msra.mxu0 0
        %716 = vmatprep.subr.bf16.mxu0 0
        %717 = vmatpush1.bf16.msra.mxu0 0
        %718 = vmatprep.subr.bf16.mxu0 0
        %719 = vmatpush1.bf16.msra.mxu0 0
        %720 = vmatprep.subr.bf16.mxu0 0
        %721 = vmatpush1.bf16.msra.mxu0 0
        %722 = vmatprep.subr.bf16.mxu0 0
        %723 = vmatpush1.bf16.msra.mxu0 0
        %724 = vmatprep.subr.bf16.mxu0 0
        %725 = vmatpush1.bf16.msra.mxu0 0
        %726 = vmatprep.subr.bf16.mxu0 0
        %727 = vmatpush1.bf16.msra.mxu0 0
        %728 = vmatprep.subr.bf16.mxu0 0
        %729 = vmatpush1.bf16.msra.mxu0 0
        %730 = vmatprep.subr.bf16.mxu0 0
        %731 = vmatpush1.bf16.msra.mxu0 0
        %732 = vmatprep.subr.bf16.mxu0 0
        %733 = vmatpush1.bf16.msra.mxu0 0
        %734 = vmatprep.subr.bf16.mxu0 0
        %735 = vmatpush1.bf16.msra.mxu0 0
        %736 = vmatprep.subr.bf16.mxu0 0
        %737 = vmatpush1.bf16.msra.mxu0 0
        %738 = vmatprep.subr.bf16.mxu0 0
        %739 = vmatpush1.bf16.msra.mxu0 0
        %740 = vmatprep.subr.bf16.mxu0 0
        %741 = vmatpush1.bf16.msra.mxu0 0
        %742 = vmatprep.mubr.bf16.mxu0 0
        %743 = vmatmul.mubr.bf16.gmra.mrb[0].mxu0 %v684
        %v744 = vpop.f32.mrb[0].mxu0
        %v745 = vadd.f32 0.0, %v744
        %v746 = vpop.f32.mrb[0].mxu0
        %v747 = vpop.f32.mrb[0].mxu0
        %v748 = vadd.f32 0.0, %v747
        %v749 = vpop.f32.mrb[0].mxu0
        %750 = vmatprep.mubr.bf16.mxu0 0
        %751 = vmatmul.mubr.bf16.gmra.mrb[0].mxu0 %v687
        %v752 = vpop.f32.mrb[0].mxu0
        %v753 = vadd.f32 0.0, %v752
        %v754 = vpop.f32.mrb[0].mxu0
        %v755 = vpop.f32.mrb[0].mxu0
        %v756 = vadd.f32 0.0, %v755
        %v757 = vpop.f32.mrb[0].mxu0
        %758 = vmatprep.mubr.bf16.mxu0 0
        %759 = vmatmul.mubr.bf16.gmra.mrb[0].mxu0 %v690
        %v760 = vpop.f32.mrb[0].mxu0
        %v761 = vadd.f32 0.0, %v760
        %v762 = vpop.f32.mrb[0].mxu0
        %v763 = vpop.f32.mrb[0].mxu0
        %v764 = vadd.f32 0.0, %v763
        %v765 = vpop.f32.mrb[0].mxu0
        %766 = vmatprep.mubr.bf16.mxu0 0
        %767 = vmatmul.mubr.bf16.gmra.mrb[0].mxu0 %v693
        %v768 = vpop.f32.mrb[0].mxu0
        %v769 = vadd.f32 0.0, %v768
        %v770 = vpop.f32.mrb[0].mxu0
        %v771 = vpop.f32.mrb[0].mxu0
        %v772 = vadd.f32 0.0, %v771
        %v773 = vpop.f32.mrb[0].mxu0
        %774 = vmatprep.mubr.bf16.mxu0 0
        %775 = vmatmul.mubr.bf16.gmra.mrb[0].mxu0 %v696
        %v776 = vpop.f32.mrb[0].mxu0
        %v777 = vadd.f32 0.0, %v776
        %v778 = vpop.f32.mrb[0].mxu0
        %v779 = vpop.f32.mrb[0].mxu0
        %v780 = vadd.f32 0.0, %v779
        %v781 = vpop.f32.mrb[0].mxu0
        %782 = vmatprep.mubr.bf16.mxu0 0
        %783 = vmatmul.mubr.bf16.gmra.mrb[0].mxu0 %v699
        %v784 = vpop.f32.mrb[0].mxu0
        %v785 = vadd.f32 0.0, %v784
        %v786 = vpop.f32.mrb[0].mxu0
        %v787 = vpop.f32.mrb[0].mxu0
        %v788 = vadd.f32 0.0, %v787
        %v789 = vpop.f32.mrb[0].mxu0
        %790 = vmatprep.mubr.bf16.mxu0 0
        %791 = vmatmul.mubr.bf16.gmra.mrb[0].mxu0 %v702
        %v792 = vpop.f32.mrb[0].mxu0
        %v793 = vadd.f32 0.0, %v792
        %v794 = vpop.f32.mrb[0].mxu0
        %v795 = vpop.f32.mrb[0].mxu0
        %v796 = vadd.f32 0.0, %v795
        %v797 = vpop.f32.mrb[0].mxu0
        %798 = vmatprep.mubr.bf16.mxu0 0
        %799 = vmatmul.mubr.bf16.gmra.mrb[0].mxu0 %v705
        %v800 = vpop.f32.mrb[0].mxu0
        %v801 = vadd.f32 0.0, %v800
        %v802 = vpop.f32.mrb[0].mxu0
        %v803 = vpop.f32.mrb[0].mxu0
        %v804 = vadd.f32 0.0, %v803
        %v805 = vpop.f32.mrb[0].mxu0
        %806 = vdwg.mxu0
        %v807 = vld [vmem:[#allocation2] sm:$0xff]
        %v808 = vld [vmem:[#allocation2 + $0x8] sm:$0xff]
        %v809 = vld [vmem:[#allocation2 + $0x10] sm:$0xff]
        %v810 = vld [vmem:[#allocation2 + $0x18] sm:$0xff]
        %v811 = vld [vmem:[#allocation2 + $0x20] sm:$0xff]
        %v812 = vld [vmem:[#allocation2 + $0x28] sm:$0xff]
        %v813 = vld [vmem:[#allocation2 + $0x30] sm:$0xff]
        %v814 = vld [vmem:[#allocation2 + $0x38] sm:$0xff]
        %v815 = vld [vmem:[#allocation2 + $0x40] sm:$0xff]
        %v816 = vld [vmem:[#allocation2 + $0x48] sm:$0xff]
        %v817 = vld [vmem:[#allocation2 + $0x50] sm:$0xff]
        %v818 = vld [vmem:[#allocation2 + $0x58] sm:$0xff]
        %v819 = vld [vmem:[#allocation2 + $0x60] sm:$0xff]
        %v820 = vld [vmem:[#allocation2 + $0x68] sm:$0xff]
        %v821 = vld [vmem:[#allocation2 + $0x70] sm:$0xff]
        %v822 = vld [vmem:[#allocation2 + $0x78] sm:$0xff]
        %v823 = vadd.f32 %v807, %v745
        %v824 = vadd.f32 %v808, %v748
        %v825 = vadd.f32 %v809, %v753
        %v826 = vadd.f32 %v810, %v756
        %v827 = vadd.f32 %v811, %v761
        %v828 = vadd.f32 %v812, %v764
        %v829 = vadd.f32 %v813, %v769
        %v830 = vadd.f32 %v814, %v772
        %v831 = vadd.f32 %v815, %v777
        %v832 = vadd.f32 %v816, %v780
        %v833 = vadd.f32 %v817, %v785
        %v834 = vadd.f32 %v818, %v788
        %v835 = vadd.f32 %v819, %v793
        %v836 = vadd.f32 %v820, %v796
        %v837 = vadd.f32 %v821, %v801
        %v838 = vadd.f32 %v822, %v804
        %839 = vst [vmem:[#allocation2] sm:$0xff] %v823
        %840 = vst [vmem:[#allocation2 + $0x8] sm:$0xff] %v824
        %841 = vst [vmem:[#allocation2 + $0x10] sm:$0xff] %v825
        %842 = vst [vmem:[#allocation2 + $0x18] sm:$0xff] %v826
        %843 = vst [vmem:[#allocation2 + $0x20] sm:$0xff] %v827
        %844 = vst [vmem:[#allocation2 + $0x28] sm:$0xff] %v828
        %845 = vst [vmem:[#allocation2 + $0x30] sm:$0xff] %v829
        %846 = vst [vmem:[#allocation2 + $0x38] sm:$0xff] %v830
        %847 = vst [vmem:[#allocation2 + $0x40] sm:$0xff] %v831
        %848 = vst [vmem:[#allocation2 + $0x48] sm:$0xff] %v832
        %849 = vst [vmem:[#allocation2 + $0x50] sm:$0xff] %v833
        %850 = vst [vmem:[#allocation2 + $0x58] sm:$0xff] %v834
        %851 = vst [vmem:[#allocation2 + $0x60] sm:$0xff] %v835
        %852 = vst [vmem:[#allocation2 + $0x68] sm:$0xff] %v836
        %853 = vst [vmem:[#allocation2 + $0x70] sm:$0xff] %v837
        %854 = vst [vmem:[#allocation2 + $0x78] sm:$0xff] %v838
        %v855 = vld [vmem:[%s229] sm:$0xe]
        %v856 = vld [vmem:[%s229 + $0x4] sm:$0xf]
        %v857 = vld [vmem:[%s229 + $0x8] sm:$0x1]
        %v858 = vld [vmem:[%s229 + $0xc] sm:$0xe]
        %v859 = vld [vmem:[%s229 + $0x10] sm:$0xf]
        %v860 = vld [vmem:[%s229 + $0x14] sm:$0x1]
        %v861 = vld [vmem:[%s229 + $0x18] sm:$0xe]
        %v862 = vld [vmem:[%s229 + $0x1c] sm:$0xf]
        %v863 = vld [vmem:[%s229 + $0x20] sm:$0x1]
        %v864 = vld [vmem:[%s229 + $0x24] sm:$0xe]
        %v865 = vld [vmem:[%s229 + $0x28] sm:$0xf]
        %v866 = vld [vmem:[%s229 + $0x2c] sm:$0x1]
        %v867 = vld [vmem:[%s229 + $0x30] sm:$0xe]
        %v868 = vld [vmem:[%s229 + $0x34] sm:$0xf]
        %v869 = vld [vmem:[%s229 + $0x38] sm:$0x1]
        %v870 = vld [vmem:[%s229 + $0x3c] sm:$0xe]
        %v871 = vld [vmem:[%s229 + $0x40] sm:$0xf]
        %v872 = vld [vmem:[%s229 + $0x44] sm:$0x1]
        %v873 = vld [vmem:[%s229 + $0x48] sm:$0xe]
        %v874 = vld [vmem:[%s229 + $0x4c] sm:$0xf]
        %v875 = vld [vmem:[%s229 + $0x50] sm:$0x1]
        %v876 = vld [vmem:[%s229 + $0x54] sm:$0xe]
        %v877 = vld [vmem:[%s229 + $0x58] sm:$0xf]
        %v878 = vld [vmem:[%s229 + $0x5c] sm:$0x1]
        %vm903 = vcmask 1042432
        %vm904 = vcmask 1046532
        %vm905 = vmor %vm903, %vm904
        %v906 = vrot.slane %v855, 5
        %v907 = vrot.slane %v906, 4
        %v908 = vrot.slane %v856, 5
        %v909 = vsel %vm905, %v907, %v908
        %v910 = vrot.slane %v908, 4
        %v911 = vrot.slane %v857, 5
        %v912 = vsel %vm905, %v910, %v911
        %v913 = vrot.slane %v858, 5
        %v914 = vrot.slane %v913, 4
        %v915 = vrot.slane %v859, 5
        %v916 = vsel %vm905, %v914, %v915
        %v917 = vrot.slane %v915, 4
        %v918 = vrot.slane %v860, 5
        %v919 = vsel %vm905, %v917, %v918
        %v920 = vrot.slane %v861, 5
        %v921 = vrot.slane %v920, 4
        %v922 = vrot.slane %v862, 5
        %v923 = vsel %vm905, %v921, %v922
        %v924 = vrot.slane %v922, 4
        %v925 = vrot.slane %v863, 5
        %v926 = vsel %vm905, %v924, %v925
        %v927 = vrot.slane %v864, 5
        %v928 = vrot.slane %v927, 4
        %v929 = vrot.slane %v865, 5
        %v930 = vsel %vm905, %v928, %v929
        %v931 = vrot.slane %v929, 4
        %v932 = vrot.slane %v866, 5
        %v933 = vsel %vm905, %v931, %v932
        %v934 = vrot.slane %v867, 5
        %v935 = vrot.slane %v934, 4
        %v936 = vrot.slane %v868, 5
        %v937 = vsel %vm905, %v935, %v936
        %v938 = vrot.slane %v936, 4
        %v939 = vrot.slane %v869, 5
        %v940 = vsel %vm905, %v938, %v939
        %v941 = vrot.slane %v870, 5
        %v942 = vrot.slane %v941, 4
        %v943 = vrot.slane %v871, 5
        %v944 = vsel %vm905, %v942, %v943
        %v945 = vrot.slane %v943, 4
        %v946 = vrot.slane %v872, 5
        %v947 = vsel %vm905, %v945, %v946
        %v948 = vrot.slane %v873, 5
        %v949 = vrot.slane %v948, 4
        %v950 = vrot.slane %v874, 5
        %v951 = vsel %vm905, %v949, %v950
        %v952 = vrot.slane %v950, 4
        %v953 = vrot.slane %v875, 5
        %v954 = vsel %vm905, %v952, %v953
        %v955 = vrot.slane %v876, 5
        %v956 = vrot.slane %v955, 4
        %v957 = vrot.slane %v877, 5
        %v958 = vsel %vm905, %v956, %v957
        %v959 = vrot.slane %v957, 4
        %v960 = vrot.slane %v878, 5
        %v961 = vsel %vm905, %v959, %v960
        %s962 = scalar_lea.vmem %s233, 4
        %v963 = vld [vmem:[%s962] sm:$0x3]
        %v964 = vunpack.c.l.b16 %v909
        %v965 = vunpack.c.l.b16 %v912
        %v966 = vunpack.c.l.b16 %v916
        %v967 = vunpack.c.l.b16 %v919
        %v968 = vunpack.c.l.b16 %v923
        %v969 = vunpack.c.l.b16 %v926
        %v970 = vunpack.c.l.b16 %v930
        %v971 = vunpack.c.l.b16 %v933
        %v972 = vunpack.c.l.b16 %v937
        %v973 = vunpack.c.l.b16 %v940
        %v974 = vunpack.c.l.b16 %v944
        %v975 = vunpack.c.l.b16 %v947
        %v976 = vunpack.c.l.b16 %v951
        %v977 = vunpack.c.l.b16 %v954
        %v978 = vunpack.c.l.b16 %v958
        %v979 = vunpack.c.l.b16 %v961
        %v980 = vpack.c.b16 %v965, %v964
        %v981 = vpack.c.b16 %v967, %v966
        %v982 = vpack.c.b16 %v969, %v968
        %v983 = vpack.c.b16 %v971, %v970
        %v984 = vpack.c.b16 %v973, %v972
        %v985 = vpack.c.b16 %v975, %v974
        %v986 = vpack.c.b16 %v977, %v976
        %v987 = vpack.c.b16 %v979, %v978
        %v989 = vsel %vm296, %v980, 0
        %v992 = vsel %vm296, %v981, 0
        %v995 = vsel %vm296, %v982, 0
        %v998 = vsel %vm296, %v983, 0
        %v1001 = vsel %vm296, %v984, 0
        %v1004 = vsel %vm296, %v985, 0
        %v1007 = vsel %vm296, %v986, 0
        %v1010 = vsel %vm296, %v987, 0
        %v1013 = vsel %vm321, %v963, 0
        %1015 = vmatprep.subr.bf16.mxu0 0
        %1016 = vmatpush1.bf16.msra.mxu0 %v1013
        %1017 = vmatprep.subr.bf16.mxu0 0
        %1018 = vmatpush1.bf16.msra.mxu0 0
        %1019 = vmatprep.subr.bf16.mxu0 0
        %1020 = vmatpush1.bf16.msra.mxu0 0
        %1021 = vmatprep.subr.bf16.mxu0 0
        %1022 = vmatpush1.bf16.msra.mxu0 0
        %1023 = vmatprep.subr.bf16.mxu0 0
        %1024 = vmatpush1.bf16.msra.mxu0 0
        %1025 = vmatprep.subr.bf16.mxu0 0
        %1026 = vmatpush1.bf16.msra.mxu0 0
        %1027 = vmatprep.subr.bf16.mxu0 0
        %1028 = vmatpush1.bf16.msra.mxu0 0
        %1029 = vmatprep.subr.bf16.mxu0 0
        %1030 = vmatpush1.bf16.msra.mxu0 0
        %1031 = vmatprep.subr.bf16.mxu0 0
        %1032 = vmatpush1.bf16.msra.mxu0 0
        %1033 = vmatprep.subr.bf16.mxu0 0
        %1034 = vmatpush1.bf16.msra.mxu0 0
        %1035 = vmatprep.subr.bf16.mxu0 0
        %1036 = vmatpush1.bf16.msra.mxu0 0
        %1037 = vmatprep.subr.bf16.mxu0 0
        %1038 = vmatpush1.bf16.msra.mxu0 0
        %1039 = vmatprep.subr.bf16.mxu0 0
        %1040 = vmatpush1.bf16.msra.mxu0 0
        %1041 = vmatprep.subr.bf16.mxu0 0
        %1042 = vmatpush1.bf16.msra.mxu0 0
        %1043 = vmatprep.subr.bf16.mxu0 0
        %1044 = vmatpush1.bf16.msra.mxu0 0
        %1045 = vmatprep.subr.bf16.mxu0 0
        %1046 = vmatpush1.bf16.msra.mxu0 0
        %1047 = vmatprep.mubr.bf16.mxu0 0
        %1048 = vmatmul.mubr.bf16.gmra.mrb[0].mxu0 %v989
        %v1049 = vpop.f32.mrb[0].mxu0
        %v1050 = vadd.f32 0.0, %v1049
        %v1051 = vpop.f32.mrb[0].mxu0
        %v1052 = vpop.f32.mrb[0].mxu0
        %v1053 = vadd.f32 0.0, %v1052
        %v1054 = vpop.f32.mrb[0].mxu0
        %1055 = vmatprep.mubr.bf16.mxu0 0
        %1056 = vmatmul.mubr.bf16.gmra.mrb[0].mxu0 %v992
        %v1057 = vpop.f32.mrb[0].mxu0
        %v1058 = vadd.f32 0.0, %v1057
        %v1059 = vpop.f32.mrb[0].mxu0
        %v1060 = vpop.f32.mrb[0].mxu0
        %v1061 = vadd.f32 0.0, %v1060
        %v1062 = vpop.f32.mrb[0].mxu0
        %1063 = vmatprep.mubr.bf16.mxu0 0
        %1064 = vmatmul.mubr.bf16.gmra.mrb[0].mxu0 %v995
        %v1065 = vpop.f32.mrb[0].mxu0
        %v1066 = vadd.f32 0.0, %v1065
        %v1067 = vpop.f32.mrb[0].mxu0
        %v1068 = vpop.f32.mrb[0].mxu0
        %v1069 = vadd.f32 0.0, %v1068
        %v1070 = vpop.f32.mrb[0].mxu0
        %1071 = vmatprep.mubr.bf16.mxu0 0
        %1072 = vmatmul.mubr.bf16.gmra.mrb[0].mxu0 %v998
        %v1073 = vpop.f32.mrb[0].mxu0
        %v1074 = vadd.f32 0.0, %v1073
        %v1075 = vpop.f32.mrb[0].mxu0
        %v1076 = vpop.f32.mrb[0].mxu0
        %v1077 = vadd.f32 0.0, %v1076
        %v1078 = vpop.f32.mrb[0].mxu0
        %1079 = vmatprep.mubr.bf16.mxu0 0
        %1080 = vmatmul.mubr.bf16.gmra.mrb[0].mxu0 %v1001
        %v1081 = vpop.f32.mrb[0].mxu0
        %v1082 = vadd.f32 0.0, %v1081
        %v1083 = vpop.f32.mrb[0].mxu0
        %v1084 = vpop.f32.mrb[0].mxu0
        %v1085 = vadd.f32 0.0, %v1084
        %v1086 = vpop.f32.mrb[0].mxu0
        %1087 = vmatprep.mubr.bf16.mxu0 0
        %1088 = vmatmul.mubr.bf16.gmra.mrb[0].mxu0 %v1004
        %v1089 = vpop.f32.mrb[0].mxu0
        %v1090 = vadd.f32 0.0, %v1089
        %v1091 = vpop.f32.mrb[0].mxu0
        %v1092 = vpop.f32.mrb[0].mxu0
        %v1093 = vadd.f32 0.0, %v1092
        %v1094 = vpop.f32.mrb[0].mxu0
        %1095 = vmatprep.mubr.bf16.mxu0 0
        %1096 = vmatmul.mubr.bf16.gmra.mrb[0].mxu0 %v1007
        %v1097 = vpop.f32.mrb[0].mxu0
        %v1098 = vadd.f32 0.0, %v1097
        %v1099 = vpop.f32.mrb[0].mxu0
        %v1100 = vpop.f32.mrb[0].mxu0
        %v1101 = vadd.f32 0.0, %v1100
        %v1102 = vpop.f32.mrb[0].mxu0
        %1103 = vmatprep.mubr.bf16.mxu0 0
        %1104 = vmatmul.mubr.bf16.gmra.mrb[0].mxu0 %v1010
        %v1105 = vpop.f32.mrb[0].mxu0
        %v1106 = vadd.f32 0.0, %v1105
        %v1107 = vpop.f32.mrb[0].mxu0
        %v1108 = vpop.f32.mrb[0].mxu0
        %v1109 = vadd.f32 0.0, %v1108
        %v1110 = vpop.f32.mrb[0].mxu0
        %1111 = vdwg.mxu0
        %v1112 = vld [vmem:[#allocation2] sm:$0xff]
        %v1113 = vld [vmem:[#allocation2 + $0x8] sm:$0xff]
        %v1114 = vld [vmem:[#allocation2 + $0x10] sm:$0xff]
        %v1115 = vld [vmem:[#allocation2 + $0x18] sm:$0xff]
        %v1116 = vld [vmem:[#allocation2 + $0x20] sm:$0xff]
        %v1117 = vld [vmem:[#allocation2 + $0x28] sm:$0xff]
        %v1118 = vld [vmem:[#allocation2 + $0x30] sm:$0xff]
        %v1119 = vld [vmem:[#allocation2 + $0x38] sm:$0xff]
        %v1120 = vld [vmem:[#allocation2 + $0x40] sm:$0xff]
        %v1121 = vld [vmem:[#allocation2 + $0x48] sm:$0xff]
        %v1122 = vld [vmem:[#allocation2 + $0x50] sm:$0xff]
        %v1123 = vld [vmem:[#allocation2 + $0x58] sm:$0xff]
        %v1124 = vld [vmem:[#allocation2 + $0x60] sm:$0xff]
        %v1125 = vld [vmem:[#allocation2 + $0x68] sm:$0xff]
        %v1126 = vld [vmem:[#allocation2 + $0x70] sm:$0xff]
        %v1127 = vld [vmem:[#allocation2 + $0x78] sm:$0xff]
        %v1128 = vadd.f32 %v1112, %v1050
        %v1129 = vadd.f32 %v1113, %v1053
        %v1130 = vadd.f32 %v1114, %v1058
        %v1131 = vadd.f32 %v1115, %v1061
        %v1132 = vadd.f32 %v1116, %v1066
        %v1133 = vadd.f32 %v1117, %v1069
        %v1134 = vadd.f32 %v1118, %v1074
        %v1135 = vadd.f32 %v1119, %v1077
        %v1136 = vadd.f32 %v1120, %v1082
        %v1137 = vadd.f32 %v1121, %v1085
        %v1138 = vadd.f32 %v1122, %v1090
        %v1139 = vadd.f32 %v1123, %v1093
        %v1140 = vadd.f32 %v1124, %v1098
        %v1141 = vadd.f32 %v1125, %v1101
        %v1142 = vadd.f32 %v1126, %v1106
        %v1143 = vadd.f32 %v1127, %v1109
        %1144 = vst [vmem:[#allocation2] sm:$0xff] %v1128
        %1145 = vst [vmem:[#allocation2 + $0x8] sm:$0xff] %v1129
        %1146 = vst [vmem:[#allocation2 + $0x10] sm:$0xff] %v1130
        %1147 = vst [vmem:[#allocation2 + $0x18] sm:$0xff] %v1131
        %1148 = vst [vmem:[#allocation2 + $0x20] sm:$0xff] %v1132
        %1149 = vst [vmem:[#allocation2 + $0x28] sm:$0xff] %v1133
        %1150 = vst [vmem:[#allocation2 + $0x30] sm:$0xff] %v1134
        %1151 = vst [vmem:[#allocation2 + $0x38] sm:$0xff] %v1135
        %1152 = vst [vmem:[#allocation2 + $0x40] sm:$0xff] %v1136
        %1153 = vst [vmem:[#allocation2 + $0x48] sm:$0xff] %v1137
        %1154 = vst [vmem:[#allocation2 + $0x50] sm:$0xff] %v1138
        %1155 = vst [vmem:[#allocation2 + $0x58] sm:$0xff] %v1139
        %1156 = vst [vmem:[#allocation2 + $0x60] sm:$0xff] %v1140
        %1157 = vst [vmem:[#allocation2 + $0x68] sm:$0xff] %v1141
        %1158 = vst [vmem:[#allocation2 + $0x70] sm:$0xff] %v1142
        %1159 = vst [vmem:[#allocation2 + $0x78] sm:$0xff] %v1143
        %s1160 = scalar_lea.vmem %s229, 12
        %v1161 = vld [vmem:[%s1160] sm:$0xf]
        %v1162 = vld [vmem:[%s1160 + $0x4] sm:$0xf]
        %v1163 = vld [vmem:[%s1160 + $0xc] sm:$0xf]
        %v1164 = vld [vmem:[%s1160 + $0x10] sm:$0xf]
        %v1165 = vld [vmem:[%s1160 + $0x18] sm:$0xf]
        %v1166 = vld [vmem:[%s1160 + $0x1c] sm:$0xf]
        %v1167 = vld [vmem:[%s1160 + $0x24] sm:$0xf]
        %v1168 = vld [vmem:[%s1160 + $0x28] sm:$0xf]
        %v1169 = vld [vmem:[%s1160 + $0x30] sm:$0xf]
        %v1170 = vld [vmem:[%s1160 + $0x34] sm:$0xf]
        %v1171 = vld [vmem:[%s1160 + $0x3c] sm:$0xf]
        %v1172 = vld [vmem:[%s1160 + $0x40] sm:$0xf]
        %v1173 = vld [vmem:[%s1160 + $0x48] sm:$0xf]
        %v1174 = vld [vmem:[%s1160 + $0x4c] sm:$0xf]
        %v1175 = vld [vmem:[%s1160 + $0x54] sm:$0xf]
        %v1176 = vld [vmem:[%s1160 + $0x58] sm:$0xf]
        %s1177 = scalar_lea.vmem %s233, 6
        %v1178 = vld [vmem:[%s1177] sm:$0x3]
        %v1195 = vunpack.c.l.b16 %v1161
        %v1196 = vunpack.c.l.b16 %v1162
        %v1197 = vunpack.c.l.b16 %v1163
        %v1198 = vunpack.c.l.b16 %v1164
        %v1199 = vunpack.c.l.b16 %v1165
        %v1200 = vunpack.c.l.b16 %v1166
        %v1201 = vunpack.c.l.b16 %v1167
        %v1202 = vunpack.c.l.b16 %v1168
        %v1203 = vunpack.c.l.b16 %v1169
        %v1204 = vunpack.c.l.b16 %v1170
        %v1205 = vunpack.c.l.b16 %v1171
        %v1206 = vunpack.c.l.b16 %v1172
        %v1207 = vunpack.c.l.b16 %v1173
        %v1208 = vunpack.c.l.b16 %v1174
        %v1209 = vunpack.c.l.b16 %v1175
        %v1210 = vunpack.c.l.b16 %v1176
        %v1211 = vpack.c.b16 %v1196, %v1195
        %v1212 = vpack.c.b16 %v1198, %v1197
        %v1213 = vpack.c.b16 %v1200, %v1199
        %v1214 = vpack.c.b16 %v1202, %v1201
        %v1215 = vpack.c.b16 %v1204, %v1203
        %v1216 = vpack.c.b16 %v1206, %v1205
        %v1217 = vpack.c.b16 %v1208, %v1207
        %v1218 = vpack.c.b16 %v1210, %v1209
        %v1220 = vsel %vm296, %v1211, 0
        %v1223 = vsel %vm296, %v1212, 0
        %v1226 = vsel %vm296, %v1213, 0
        %v1229 = vsel %vm296, %v1214, 0
        %v1232 = vsel %vm296, %v1215, 0
        %v1235 = vsel %vm296, %v1216, 0
        %v1238 = vsel %vm296, %v1217, 0
        %v1241 = vsel %vm296, %v1218, 0
        %v1244 = vsel %vm321, %v1178, 0
        %1246 = vmatprep.subr.bf16.mxu0 0
        %1247 = vmatpush1.bf16.msra.mxu0 %v1244
        %1248 = vmatprep.subr.bf16.mxu0 0
        %1249 = vmatpush1.bf16.msra.mxu0 0
        %1250 = vmatprep.subr.bf16.mxu0 0
        %1251 = vmatpush1.bf16.msra.mxu0 0
        %1252 = vmatprep.subr.bf16.mxu0 0
        %1253 = vmatpush1.bf16.msra.mxu0 0
        %1254 = vmatprep.subr.bf16.mxu0 0
        %1255 = vmatpush1.bf16.msra.mxu0 0
        %1256 = vmatprep.subr.bf16.mxu0 0
        %1257 = vmatpush1.bf16.msra.mxu0 0
        %1258 = vmatprep.subr.bf16.mxu0 0
        %1259 = vmatpush1.bf16.msra.mxu0 0
        %1260 = vmatprep.subr.bf16.mxu0 0
        %1261 = vmatpush1.bf16.msra.mxu0 0
        %1262 = vmatprep.subr.bf16.mxu0 0
        %1263 = vmatpush1.bf16.msra.mxu0 0
        %1264 = vmatprep.subr.bf16.mxu0 0
        %1265 = vmatpush1.bf16.msra.mxu0 0
        %1266 = vmatprep.subr.bf16.mxu0 0
        %1267 = vmatpush1.bf16.msra.mxu0 0
        %1268 = vmatprep.subr.bf16.mxu0 0
        %1269 = vmatpush1.bf16.msra.mxu0 0
        %1270 = vmatprep.subr.bf16.mxu0 0
        %1271 = vmatpush1.bf16.msra.mxu0 0
        %1272 = vmatprep.subr.bf16.mxu0 0
        %1273 = vmatpush1.bf16.msra.mxu0 0
        %1274 = vmatprep.subr.bf16.mxu0 0
        %1275 = vmatpush1.bf16.msra.mxu0 0
        %1276 = vmatprep.subr.bf16.mxu0 0
        %1277 = vmatpush1.bf16.msra.mxu0 0
        %1278 = vmatprep.mubr.bf16.mxu0 0
        %1279 = vmatmul.mubr.bf16.gmra.mrb[0].mxu0 %v1220
        %v1280 = vpop.f32.mrb[0].mxu0
        %v1281 = vadd.f32 0.0, %v1280
        %v1282 = vpop.f32.mrb[0].mxu0
        %v1283 = vpop.f32.mrb[0].mxu0
        %v1284 = vadd.f32 0.0, %v1283
        %v1285 = vpop.f32.mrb[0].mxu0
        %1286 = vmatprep.mubr.bf16.mxu0 0
        %1287 = vmatmul.mubr.bf16.gmra.mrb[0].mxu0 %v1223
        %v1288 = vpop.f32.mrb[0].mxu0
        %v1289 = vadd.f32 0.0, %v1288
        %v1290 = vpop.f32.mrb[0].mxu0
        %v1291 = vpop.f32.mrb[0].mxu0
        %v1292 = vadd.f32 0.0, %v1291
        %v1293 = vpop.f32.mrb[0].mxu0
        %1294 = vmatprep.mubr.bf16.mxu0 0
        %1295 = vmatmul.mubr.bf16.gmra.mrb[0].mxu0 %v1226
        %v1296 = vpop.f32.mrb[0].mxu0
        %v1297 = vadd.f32 0.0, %v1296
        %v1298 = vpop.f32.mrb[0].mxu0
        %v1299 = vpop.f32.mrb[0].mxu0
        %v1300 = vadd.f32 0.0, %v1299
        %v1301 = vpop.f32.mrb[0].mxu0
        %1302 = vmatprep.mubr.bf16.mxu0 0
        %1303 = vmatmul.mubr.bf16.gmra.mrb[0].mxu0 %v1229
        %v1304 = vpop.f32.mrb[0].mxu0
        %v1305 = vadd.f32 0.0, %v1304
        %v1306 = vpop.f32.mrb[0].mxu0
        %v1307 = vpop.f32.mrb[0].mxu0
        %v1308 = vadd.f32 0.0, %v1307
        %v1309 = vpop.f32.mrb[0].mxu0
        %1310 = vmatprep.mubr.bf16.mxu0 0
        %1311 = vmatmul.mubr.bf16.gmra.mrb[0].mxu0 %v1232
        %v1312 = vpop.f32.mrb[0].mxu0
        %v1313 = vadd.f32 0.0, %v1312
        %v1314 = vpop.f32.mrb[0].mxu0
        %v1315 = vpop.f32.mrb[0].mxu0
        %v1316 = vadd.f32 0.0, %v1315
        %v1317 = vpop.f32.mrb[0].mxu0
        %1318 = vmatprep.mubr.bf16.mxu0 0
        %1319 = vmatmul.mubr.bf16.gmra.mrb[0].mxu0 %v1235
        %v1320 = vpop.f32.mrb[0].mxu0
        %v1321 = vadd.f32 0.0, %v1320
        %v1322 = vpop.f32.mrb[0].mxu0
        %v1323 = vpop.f32.mrb[0].mxu0
        %v1324 = vadd.f32 0.0, %v1323
        %v1325 = vpop.f32.mrb[0].mxu0
        %1326 = vmatprep.mubr.bf16.mxu0 0
        %1327 = vmatmul.mubr.bf16.gmra.mrb[0].mxu0 %v1238
        %v1328 = vpop.f32.mrb[0].mxu0
        %v1329 = vadd.f32 0.0, %v1328
        %v1330 = vpop.f32.mrb[0].mxu0
        %v1331 = vpop.f32.mrb[0].mxu0
        %v1332 = vadd.f32 0.0, %v1331
        %v1333 = vpop.f32.mrb[0].mxu0
        %1334 = vmatprep.mubr.bf16.mxu0 0
        %1335 = vmatmul.mubr.bf16.gmra.mrb[0].mxu0 %v1241
        %v1336 = vpop.f32.mrb[0].mxu0
        %v1337 = vadd.f32 0.0, %v1336
        %v1338 = vpop.f32.mrb[0].mxu0
        %v1339 = vpop.f32.mrb[0].mxu0
        %v1340 = vadd.f32 0.0, %v1339
        %v1341 = vpop.f32.mrb[0].mxu0
        %1342 = vdwg.mxu0
        %v1343 = vld [vmem:[#allocation2] sm:$0xff]
        %v1344 = vld [vmem:[#allocation2 + $0x8] sm:$0xff]
        %v1345 = vld [vmem:[#allocation2 + $0x10] sm:$0xff]
        %v1346 = vld [vmem:[#allocation2 + $0x18] sm:$0xff]
        %v1347 = vld [vmem:[#allocation2 + $0x20] sm:$0xff]
        %v1348 = vld [vmem:[#allocation2 + $0x28] sm:$0xff]
        %v1349 = vld [vmem:[#allocation2 + $0x30] sm:$0xff]
        %v1350 = vld [vmem:[#allocation2 + $0x38] sm:$0xff]
        %v1351 = vld [vmem:[#allocation2 + $0x40] sm:$0xff]
        %v1352 = vld [vmem:[#allocation2 + $0x48] sm:$0xff]
        %v1353 = vld [vmem:[#allocation2 + $0x50] sm:$0xff]
        %v1354 = vld [vmem:[#allocation2 + $0x58] sm:$0xff]
        %v1355 = vld [vmem:[#allocation2 + $0x60] sm:$0xff]
        %v1356 = vld [vmem:[#allocation2 + $0x68] sm:$0xff]
        %v1357 = vld [vmem:[#allocation2 + $0x70] sm:$0xff]
        %v1358 = vld [vmem:[#allocation2 + $0x78] sm:$0xff]
        %v1359 = vadd.f32 %v1343, %v1281
        %v1360 = vadd.f32 %v1344, %v1284
        %v1361 = vadd.f32 %v1345, %v1289
        %v1362 = vadd.f32 %v1346, %v1292
        %v1363 = vadd.f32 %v1347, %v1297
        %v1364 = vadd.f32 %v1348, %v1300
        %v1365 = vadd.f32 %v1349, %v1305
        %v1366 = vadd.f32 %v1350, %v1308
        %v1367 = vadd.f32 %v1351, %v1313
        %v1368 = vadd.f32 %v1352, %v1316
        %v1369 = vadd.f32 %v1353, %v1321
        %v1370 = vadd.f32 %v1354, %v1324
        %v1371 = vadd.f32 %v1355, %v1329
        %v1372 = vadd.f32 %v1356, %v1332
        %v1373 = vadd.f32 %v1357, %v1337
        %v1374 = vadd.f32 %v1358, %v1340
        %1375 = vst [vmem:[#allocation2] sm:$0xff] %v1359
        %1376 = vst [vmem:[#allocation2 + $0x8] sm:$0xff] %v1360
        %1377 = vst [vmem:[#allocation2 + $0x10] sm:$0xff] %v1361
        %1378 = vst [vmem:[#allocation2 + $0x18] sm:$0xff] %v1362
        %1379 = vst [vmem:[#allocation2 + $0x20] sm:$0xff] %v1363
        %1380 = vst [vmem:[#allocation2 + $0x28] sm:$0xff] %v1364
        %1381 = vst [vmem:[#allocation2 + $0x30] sm:$0xff] %v1365
        %1382 = vst [vmem:[#allocation2 + $0x38] sm:$0xff] %v1366
        %1383 = vst [vmem:[#allocation2 + $0x40] sm:$0xff] %v1367
        %1384 = vst [vmem:[#allocation2 + $0x48] sm:$0xff] %v1368
        %1385 = vst [vmem:[#allocation2 + $0x50] sm:$0xff] %v1369
        %1386 = vst [vmem:[#allocation2 + $0x58] sm:$0xff] %v1370
        %1387 = vst [vmem:[#allocation2 + $0x60] sm:$0xff] %v1371
        %1388 = vst [vmem:[#allocation2 + $0x68] sm:$0xff] %v1372
        %1389 = vst [vmem:[#allocation2 + $0x70] sm:$0xff] %v1373
        %1390 = vst [vmem:[#allocation2 + $0x78] sm:$0xff] %v1374
        %v1391 = vld [vmem:[%s1160] sm:$0xf]
        %v1392 = vld [vmem:[%s1160 + $0x4] sm:$0xf]
        %v1393 = vld [vmem:[%s1160 + $0x8] sm:$0x1]
        %v1394 = vld [vmem:[%s1160 + $0xc] sm:$0xf]
        %v1395 = vld [vmem:[%s1160 + $0x10] sm:$0xf]
        %v1396 = vld [vmem:[%s1160 + $0x14] sm:$0x1]
        %v1397 = vld [vmem:[%s1160 + $0x18] sm:$0xf]
        %v1398 = vld [vmem:[%s1160 + $0x1c] sm:$0xf]
        %v1399 = vld [vmem:[%s1160 + $0x20] sm:$0x1]
        %v1400 = vld [vmem:[%s1160 + $0x24] sm:$0xf]
        %v1401 = vld [vmem:[%s1160 + $0x28] sm:$0xf]
        %v1402 = vld [vmem:[%s1160 + $0x2c] sm:$0x1]
        %v1403 = vld [vmem:[%s1160 + $0x30] sm:$0xf]
        %v1404 = vld [vmem:[%s1160 + $0x34] sm:$0xf]
        %v1405 = vld [vmem:[%s1160 + $0x38] sm:$0x1]
        %v1406 = vld [vmem:[%s1160 + $0x3c] sm:$0xf]
        %v1407 = vld [vmem:[%s1160 + $0x40] sm:$0xf]
        %v1408 = vld [vmem:[%s1160 + $0x44] sm:$0x1]
        %v1409 = vld [vmem:[%s1160 + $0x48] sm:$0xf]
        %v1410 = vld [vmem:[%s1160 + $0x4c] sm:$0xf]
        %v1411 = vld [vmem:[%s1160 + $0x50] sm:$0x1]
        %v1412 = vld [vmem:[%s1160 + $0x54] sm:$0xf]
        %v1413 = vld [vmem:[%s1160 + $0x58] sm:$0xf]
        %v1414 = vld [vmem:[%s1160 + $0x5c] sm:$0x1]
        %v1416 = vshrl.u32 %v1391, 16
        %v1418 = vrot.slane %v1416, 4
        %v1419 = vshll.u32 %v1391, 16
        %v1421 = vrot.slane %v1419, 5
        %v1422 = vor.u32 %v1418, %v1421
        %v1423 = vrot.slane %v1422, 4
        %v1425 = vshll.u32 %v1392, 16
        %v1427 = vrot.slane %v1425, 5
        %v1428 = vsel %vm464, %v1423, %v1427
        %v1429 = vshrl.u32 %v1392, 16
        %v1431 = vrot.slane %v1429, 4
        %v1432 = vor.u32 %v1431, %v1427
        %v1433 = vrot.slane %v1432, 4
        %v1435 = vshll.u32 %v1393, 16
        %v1437 = vrot.slane %v1435, 5
        %v1438 = vsel %vm464, %v1433, %v1437
        %v1440 = vshrl.u32 %v1394, 16
        %v1442 = vrot.slane %v1440, 4
        %v1443 = vshll.u32 %v1394, 16
        %v1445 = vrot.slane %v1443, 5
        %v1446 = vor.u32 %v1442, %v1445
        %v1447 = vrot.slane %v1446, 4
        %v1449 = vshll.u32 %v1395, 16
        %v1451 = vrot.slane %v1449, 5
        %v1452 = vsel %vm464, %v1447, %v1451
        %v1453 = vshrl.u32 %v1395, 16
        %v1455 = vrot.slane %v1453, 4
        %v1456 = vor.u32 %v1455, %v1451
        %v1457 = vrot.slane %v1456, 4
        %v1459 = vshll.u32 %v1396, 16
        %v1461 = vrot.slane %v1459, 5
        %v1462 = vsel %vm464, %v1457, %v1461
        %v1464 = vshrl.u32 %v1397, 16
        %v1466 = vrot.slane %v1464, 4
        %v1467 = vshll.u32 %v1397, 16
        %v1469 = vrot.slane %v1467, 5
        %v1470 = vor.u32 %v1466, %v1469
        %v1471 = vrot.slane %v1470, 4
        %v1473 = vshll.u32 %v1398, 16
        %v1475 = vrot.slane %v1473, 5
        %v1476 = vsel %vm464, %v1471, %v1475
        %v1477 = vshrl.u32 %v1398, 16
        %v1479 = vrot.slane %v1477, 4
        %v1480 = vor.u32 %v1479, %v1475
        %v1481 = vrot.slane %v1480, 4
        %v1483 = vshll.u32 %v1399, 16
        %v1485 = vrot.slane %v1483, 5
        %v1486 = vsel %vm464, %v1481, %v1485
        %v1488 = vshrl.u32 %v1400, 16
        %v1490 = vrot.slane %v1488, 4
        %v1491 = vshll.u32 %v1400, 16
        %v1493 = vrot.slane %v1491, 5
        %v1494 = vor.u32 %v1490, %v1493
        %v1495 = vrot.slane %v1494, 4
        %v1497 = vshll.u32 %v1401, 16
        %v1499 = vrot.slane %v1497, 5
        %v1500 = vsel %vm464, %v1495, %v1499
        %v1501 = vshrl.u32 %v1401, 16
        %v1503 = vrot.slane %v1501, 4
        %v1504 = vor.u32 %v1503, %v1499
        %v1505 = vrot.slane %v1504, 4
        %v1507 = vshll.u32 %v1402, 16
        %v1509 = vrot.slane %v1507, 5
        %v1510 = vsel %vm464, %v1505, %v1509
        %v1512 = vshrl.u32 %v1403, 16
        %v1514 = vrot.slane %v1512, 4
        %v1515 = vshll.u32 %v1403, 16
        %v1517 = vrot.slane %v1515, 5
        %v1518 = vor.u32 %v1514, %v1517
        %v1519 = vrot.slane %v1518, 4
        %v1521 = vshll.u32 %v1404, 16
        %v1523 = vrot.slane %v1521, 5
        %v1524 = vsel %vm464, %v1519, %v1523
        %v1525 = vshrl.u32 %v1404, 16
        %v1527 = vrot.slane %v1525, 4
        %v1528 = vor.u32 %v1527, %v1523
        %v1529 = vrot.slane %v1528, 4
        %v1531 = vshll.u32 %v1405, 16
        %v1533 = vrot.slane %v1531, 5
        %v1534 = vsel %vm464, %v1529, %v1533
        %v1536 = vshrl.u32 %v1406, 16
        %v1538 = vrot.slane %v1536, 4
        %v1539 = vshll.u32 %v1406, 16
        %v1541 = vrot.slane %v1539, 5
        %v1542 = vor.u32 %v1538, %v1541
        %v1543 = vrot.slane %v1542, 4
        %v1545 = vshll.u32 %v1407, 16
        %v1547 = vrot.slane %v1545, 5
        %v1548 = vsel %vm464, %v1543, %v1547
        %v1549 = vshrl.u32 %v1407, 16
        %v1551 = vrot.slane %v1549, 4
        %v1552 = vor.u32 %v1551, %v1547
        %v1553 = vrot.slane %v1552, 4
        %v1555 = vshll.u32 %v1408, 16
        %v1557 = vrot.slane %v1555, 5
        %v1558 = vsel %vm464, %v1553, %v1557
        %v1560 = vshrl.u32 %v1409, 16
        %v1562 = vrot.slane %v1560, 4
        %v1563 = vshll.u32 %v1409, 16
        %v1565 = vrot.slane %v1563, 5
        %v1566 = vor.u32 %v1562, %v1565
        %v1567 = vrot.slane %v1566, 4
        %v1569 = vshll.u32 %v1410, 16
        %v1571 = vrot.slane %v1569, 5
        %v1572 = vsel %vm464, %v1567, %v1571
        %v1573 = vshrl.u32 %v1410, 16
        %v1575 = vrot.slane %v1573, 4
        %v1576 = vor.u32 %v1575, %v1571
        %v1577 = vrot.slane %v1576, 4
        %v1579 = vshll.u32 %v1411, 16
        %v1581 = vrot.slane %v1579, 5
        %v1582 = vsel %vm464, %v1577, %v1581
        %v1584 = vshrl.u32 %v1412, 16
        %v1586 = vrot.slane %v1584, 4
        %v1587 = vshll.u32 %v1412, 16
        %v1589 = vrot.slane %v1587, 5
        %v1590 = vor.u32 %v1586, %v1589
        %v1591 = vrot.slane %v1590, 4
        %v1593 = vshll.u32 %v1413, 16
        %v1595 = vrot.slane %v1593, 5
        %v1596 = vsel %vm464, %v1591, %v1595
        %v1597 = vshrl.u32 %v1413, 16
        %v1599 = vrot.slane %v1597, 4
        %v1600 = vor.u32 %v1599, %v1595
        %v1601 = vrot.slane %v1600, 4
        %v1603 = vshll.u32 %v1414, 16
        %v1605 = vrot.slane %v1603, 5
        %v1606 = vsel %vm464, %v1601, %v1605
        %s1607 = scalar_lea.vmem %s233, 8
        %v1608 = vld [vmem:[%s1607] sm:$0x3]
        %v1609 = vunpack.c.l.b16 %v1428
        %v1610 = vunpack.c.l.b16 %v1438
        %v1611 = vunpack.c.l.b16 %v1452
        %v1612 = vunpack.c.l.b16 %v1462
        %v1613 = vunpack.c.l.b16 %v1476
        %v1614 = vunpack.c.l.b16 %v1486
        %v1615 = vunpack.c.l.b16 %v1500
        %v1616 = vunpack.c.l.b16 %v1510
        %v1617 = vunpack.c.l.b16 %v1524
        %v1618 = vunpack.c.l.b16 %v1534
        %v1619 = vunpack.c.l.b16 %v1548
        %v1620 = vunpack.c.l.b16 %v1558
        %v1621 = vunpack.c.l.b16 %v1572
        %v1622 = vunpack.c.l.b16 %v1582
        %v1623 = vunpack.c.l.b16 %v1596
        %v1624 = vunpack.c.l.b16 %v1606
        %v1625 = vpack.c.b16 %v1610, %v1609
        %v1626 = vpack.c.b16 %v1612, %v1611
        %v1627 = vpack.c.b16 %v1614, %v1613
        %v1628 = vpack.c.b16 %v1616, %v1615
        %v1629 = vpack.c.b16 %v1618, %v1617
        %v1630 = vpack.c.b16 %v1620, %v1619
        %v1631 = vpack.c.b16 %v1622, %v1621
        %v1632 = vpack.c.b16 %v1624, %v1623
        %v1634 = vsel %vm296, %v1625, 0
        %v1637 = vsel %vm296, %v1626, 0
        %v1640 = vsel %vm296, %v1627, 0
        %v1643 = vsel %vm296, %v1628, 0
        %v1646 = vsel %vm296, %v1629, 0
        %v1649 = vsel %vm296, %v1630, 0
        %v1652 = vsel %vm296, %v1631, 0
        %v1655 = vsel %vm296, %v1632, 0
        %v1658 = vsel %vm321, %v1608, 0
        %1660 = vmatprep.subr.bf16.mxu0 0
        %1661 = vmatpush1.bf16.msra.mxu0 %v1658
        %1662 = vmatprep.subr.bf16.mxu0 0
        %1663 = vmatpush1.bf16.msra.mxu0 0
        %1664 = vmatprep.subr.bf16.mxu0 0
        %1665 = vmatpush1.bf16.msra.mxu0 0
        %1666 = vmatprep.subr.bf16.mxu0 0
        %1667 = vmatpush1.bf16.msra.mxu0 0
        %1668 = vmatprep.subr.bf16.mxu0 0
        %1669 = vmatpush1.bf16.msra.mxu0 0
        %1670 = vmatprep.subr.bf16.mxu0 0
        %1671 = vmatpush1.bf16.msra.mxu0 0
        %1672 = vmatprep.subr.bf16.mxu0 0
        %1673 = vmatpush1.bf16.msra.mxu0 0
        %1674 = vmatprep.subr.bf16.mxu0 0
        %1675 = vmatpush1.bf16.msra.mxu0 0
        %1676 = vmatprep.subr.bf16.mxu0 0
        %1677 = vmatpush1.bf16.msra.mxu0 0
        %1678 = vmatprep.subr.bf16.mxu0 0
        %1679 = vmatpush1.bf16.msra.mxu0 0
        %1680 = vmatprep.subr.bf16.mxu0 0
        %1681 = vmatpush1.bf16.msra.mxu0 0
        %1682 = vmatprep.subr.bf16.mxu0 0
        %1683 = vmatpush1.bf16.msra.mxu0 0
        %1684 = vmatprep.subr.bf16.mxu0 0
        %1685 = vmatpush1.bf16.msra.mxu0 0
        %1686 = vmatprep.subr.bf16.mxu0 0
        %1687 = vmatpush1.bf16.msra.mxu0 0
        %1688 = vmatprep.subr.bf16.mxu0 0
        %1689 = vmatpush1.bf16.msra.mxu0 0
        %1690 = vmatprep.subr.bf16.mxu0 0
        %1691 = vmatpush1.bf16.msra.mxu0 0
        %1692 = vmatprep.mubr.bf16.mxu0 0
        %1693 = vmatmul.mubr.bf16.gmra.mrb[0].mxu0 %v1634
        %v1694 = vpop.f32.mrb[0].mxu0
        %v1695 = vadd.f32 0.0, %v1694
        %v1696 = vpop.f32.mrb[0].mxu0
        %v1697 = vpop.f32.mrb[0].mxu0
        %v1698 = vadd.f32 0.0, %v1697
        %v1699 = vpop.f32.mrb[0].mxu0
        %1700 = vmatprep.mubr.bf16.mxu0 0
        %1701 = vmatmul.mubr.bf16.gmra.mrb[0].mxu0 %v1637
        %v1702 = vpop.f32.mrb[0].mxu0
        %v1703 = vadd.f32 0.0, %v1702
        %v1704 = vpop.f32.mrb[0].mxu0
        %v1705 = vpop.f32.mrb[0].mxu0
        %v1706 = vadd.f32 0.0, %v1705
        %v1707 = vpop.f32.mrb[0].mxu0
        %1708 = vmatprep.mubr.bf16.mxu0 0
        %1709 = vmatmul.mubr.bf16.gmra.mrb[0].mxu0 %v1640
        %v1710 = vpop.f32.mrb[0].mxu0
        %v1711 = vadd.f32 0.0, %v1710
        %v1712 = vpop.f32.mrb[0].mxu0
        %v1713 = vpop.f32.mrb[0].mxu0
        %v1714 = vadd.f32 0.0, %v1713
        %v1715 = vpop.f32.mrb[0].mxu0
        %1716 = vmatprep.mubr.bf16.mxu0 0
        %1717 = vmatmul.mubr.bf16.gmra.mrb[0].mxu0 %v1643
        %v1718 = vpop.f32.mrb[0].mxu0
        %v1719 = vadd.f32 0.0, %v1718
        %v1720 = vpop.f32.mrb[0].mxu0
        %v1721 = vpop.f32.mrb[0].mxu0
        %v1722 = vadd.f32 0.0, %v1721
        %v1723 = vpop.f32.mrb[0].mxu0
        %1724 = vmatprep.mubr.bf16.mxu0 0
        %1725 = vmatmul.mubr.bf16.gmra.mrb[0].mxu0 %v1646
        %v1726 = vpop.f32.mrb[0].mxu0
        %v1727 = vadd.f32 0.0, %v1726
        %v1728 = vpop.f32.mrb[0].mxu0
        %v1729 = vpop.f32.mrb[0].mxu0
        %v1730 = vadd.f32 0.0, %v1729
        %v1731 = vpop.f32.mrb[0].mxu0
        %1732 = vmatprep.mubr.bf16.mxu0 0
        %1733 = vmatmul.mubr.bf16.gmra.mrb[0].mxu0 %v1649
        %v1734 = vpop.f32.mrb[0].mxu0
        %v1735 = vadd.f32 0.0, %v1734
        %v1736 = vpop.f32.mrb[0].mxu0
        %v1737 = vpop.f32.mrb[0].mxu0
        %v1738 = vadd.f32 0.0, %v1737
        %v1739 = vpop.f32.mrb[0].mxu0
        %1740 = vmatprep.mubr.bf16.mxu0 0
        %1741 = vmatmul.mubr.bf16.gmra.mrb[0].mxu0 %v1652
        %v1742 = vpop.f32.mrb[0].mxu0
        %v1743 = vadd.f32 0.0, %v1742
        %v1744 = vpop.f32.mrb[0].mxu0
        %v1745 = vpop.f32.mrb[0].mxu0
        %v1746 = vadd.f32 0.0, %v1745
        %v1747 = vpop.f32.mrb[0].mxu0
        %1748 = vmatprep.mubr.bf16.mxu0 0
        %1749 = vmatmul.mubr.bf16.gmra.mrb[0].mxu0 %v1655
        %v1750 = vpop.f32.mrb[0].mxu0
        %v1751 = vadd.f32 0.0, %v1750
        %v1752 = vpop.f32.mrb[0].mxu0
        %v1753 = vpop.f32.mrb[0].mxu0
        %v1754 = vadd.f32 0.0, %v1753
        %v1755 = vpop.f32.mrb[0].mxu0
        %1756 = vdwg.mxu0
        %v1757 = vld [vmem:[#allocation2] sm:$0xff]
        %v1758 = vld [vmem:[#allocation2 + $0x8] sm:$0xff]
        %v1759 = vld [vmem:[#allocation2 + $0x10] sm:$0xff]
        %v1760 = vld [vmem:[#allocation2 + $0x18] sm:$0xff]
        %v1761 = vld [vmem:[#allocation2 + $0x20] sm:$0xff]
        %v1762 = vld [vmem:[#allocation2 + $0x28] sm:$0xff]
        %v1763 = vld [vmem:[#allocation2 + $0x30] sm:$0xff]
        %v1764 = vld [vmem:[#allocation2 + $0x38] sm:$0xff]
        %v1765 = vld [vmem:[#allocation2 + $0x40] sm:$0xff]
        %v1766 = vld [vmem:[#allocation2 + $0x48] sm:$0xff]
        %v1767 = vld [vmem:[#allocation2 + $0x50] sm:$0xff]
        %v1768 = vld [vmem:[#allocation2 + $0x58] sm:$0xff]
        %v1769 = vld [vmem:[#allocation2 + $0x60] sm:$0xff]
        %v1770 = vld [vmem:[#allocation2 + $0x68] sm:$0xff]
        %v1771 = vld [vmem:[#allocation2 + $0x70] sm:$0xff]
        %v1772 = vld [vmem:[#allocation2 + $0x78] sm:$0xff]
        %v1773 = vadd.f32 %v1757, %v1695
        %v1774 = vadd.f32 %v1758, %v1698
        %v1775 = vadd.f32 %v1759, %v1703
        %v1776 = vadd.f32 %v1760, %v1706
        %v1777 = vadd.f32 %v1761, %v1711
        %v1778 = vadd.f32 %v1762, %v1714
        %v1779 = vadd.f32 %v1763, %v1719
        %v1780 = vadd.f32 %v1764, %v1722
        %v1781 = vadd.f32 %v1765, %v1727
        %v1782 = vadd.f32 %v1766, %v1730
        %v1783 = vadd.f32 %v1767, %v1735
        %v1784 = vadd.f32 %v1768, %v1738
        %v1785 = vadd.f32 %v1769, %v1743
        %v1786 = vadd.f32 %v1770, %v1746
        %v1787 = vadd.f32 %v1771, %v1751
        %v1788 = vadd.f32 %v1772, %v1754
        %1789 = vst [vmem:[#allocation2] sm:$0xff] %v1773
        %1790 = vst [vmem:[#allocation2 + $0x8] sm:$0xff] %v1774
        %1791 = vst [vmem:[#allocation2 + $0x10] sm:$0xff] %v1775
        %1792 = vst [vmem:[#allocation2 + $0x18] sm:$0xff] %v1776
        %1793 = vst [vmem:[#allocation2 + $0x20] sm:$0xff] %v1777
        %1794 = vst [vmem:[#allocation2 + $0x28] sm:$0xff] %v1778
        %1795 = vst [vmem:[#allocation2 + $0x30] sm:$0xff] %v1779
        %1796 = vst [vmem:[#allocation2 + $0x38] sm:$0xff] %v1780
        %1797 = vst [vmem:[#allocation2 + $0x40] sm:$0xff] %v1781
        %1798 = vst [vmem:[#allocation2 + $0x48] sm:$0xff] %v1782
        %1799 = vst [vmem:[#allocation2 + $0x50] sm:$0xff] %v1783
        %1800 = vst [vmem:[#allocation2 + $0x58] sm:$0xff] %v1784
        %1801 = vst [vmem:[#allocation2 + $0x60] sm:$0xff] %v1785
        %1802 = vst [vmem:[#allocation2 + $0x68] sm:$0xff] %v1786
        %1803 = vst [vmem:[#allocation2 + $0x70] sm:$0xff] %v1787
        %1804 = vst [vmem:[#allocation2 + $0x78] sm:$0xff] %v1788
        %v1805 = vld [vmem:[%s1160] sm:$0xe]
        %v1806 = vld [vmem:[%s1160 + $0x4] sm:$0xf]
        %v1807 = vld [vmem:[%s1160 + $0x8] sm:$0x1]
        %v1808 = vld [vmem:[%s1160 + $0xc] sm:$0xe]
        %v1809 = vld [vmem:[%s1160 + $0x10] sm:$0xf]
        %v1810 = vld [vmem:[%s1160 + $0x14] sm:$0x1]
        %v1811 = vld [vmem:[%s1160 + $0x18] sm:$0xe]
        %v1812 = vld [vmem:[%s1160 + $0x1c] sm:$0xf]
        %v1813 = vld [vmem:[%s1160 + $0x20] sm:$0x1]
        %v1814 = vld [vmem:[%s1160 + $0x24] sm:$0xe]
        %v1815 = vld [vmem:[%s1160 + $0x28] sm:$0xf]
        %v1816 = vld [vmem:[%s1160 + $0x2c] sm:$0x1]
        %v1817 = vld [vmem:[%s1160 + $0x30] sm:$0xe]
        %v1818 = vld [vmem:[%s1160 + $0x34] sm:$0xf]
        %v1819 = vld [vmem:[%s1160 + $0x38] sm:$0x1]
        %v1820 = vld [vmem:[%s1160 + $0x3c] sm:$0xe]
        %v1821 = vld [vmem:[%s1160 + $0x40] sm:$0xf]
        %v1822 = vld [vmem:[%s1160 + $0x44] sm:$0x1]
        %v1823 = vld [vmem:[%s1160 + $0x48] sm:$0xe]
        %v1824 = vld [vmem:[%s1160 + $0x4c] sm:$0xf]
        %v1825 = vld [vmem:[%s1160 + $0x50] sm:$0x1]
        %v1826 = vld [vmem:[%s1160 + $0x54] sm:$0xe]
        %v1827 = vld [vmem:[%s1160 + $0x58] sm:$0xf]
        %v1828 = vld [vmem:[%s1160 + $0x5c] sm:$0x1]
        %v1853 = vrot.slane %v1805, 5
        %v1854 = vrot.slane %v1853, 4
        %v1855 = vrot.slane %v1806, 5
        %v1856 = vsel %vm905, %v1854, %v1855
        %v1857 = vrot.slane %v1855, 4
        %v1858 = vrot.slane %v1807, 5
        %v1859 = vsel %vm905, %v1857, %v1858
        %v1860 = vrot.slane %v1808, 5
        %v1861 = vrot.slane %v1860, 4
        %v1862 = vrot.slane %v1809, 5
        %v1863 = vsel %vm905, %v1861, %v1862
        %v1864 = vrot.slane %v1862, 4
        %v1865 = vrot.slane %v1810, 5
        %v1866 = vsel %vm905, %v1864, %v1865
        %v1867 = vrot.slane %v1811, 5
        %v1868 = vrot.slane %v1867, 4
        %v1869 = vrot.slane %v1812, 5
        %v1870 = vsel %vm905, %v1868, %v1869
        %v1871 = vrot.slane %v1869, 4
        %v1872 = vrot.slane %v1813, 5
        %v1873 = vsel %vm905, %v1871, %v1872
        %v1874 = vrot.slane %v1814, 5
        %v1875 = vrot.slane %v1874, 4
        %v1876 = vrot.slane %v1815, 5
        %v1877 = vsel %vm905, %v1875, %v1876
        %v1878 = vrot.slane %v1876, 4
        %v1879 = vrot.slane %v1816, 5
        %v1880 = vsel %vm905, %v1878, %v1879
        %v1881 = vrot.slane %v1817, 5
        %v1882 = vrot.slane %v1881, 4
        %v1883 = vrot.slane %v1818, 5
        %v1884 = vsel %vm905, %v1882, %v1883
        %v1885 = vrot.slane %v1883, 4
        %v1886 = vrot.slane %v1819, 5
        %v1887 = vsel %vm905, %v1885, %v1886
        %v1888 = vrot.slane %v1820, 5
        %v1889 = vrot.slane %v1888, 4
        %v1890 = vrot.slane %v1821, 5
        %v1891 = vsel %vm905, %v1889, %v1890
        %v1892 = vrot.slane %v1890, 4
        %v1893 = vrot.slane %v1822, 5
        %v1894 = vsel %vm905, %v1892, %v1893
        %v1895 = vrot.slane %v1823, 5
        %v1896 = vrot.slane %v1895, 4
        %v1897 = vrot.slane %v1824, 5
        %v1898 = vsel %vm905, %v1896, %v1897
        %v1899 = vrot.slane %v1897, 4
        %v1900 = vrot.slane %v1825, 5
        %v1901 = vsel %vm905, %v1899, %v1900
        %v1902 = vrot.slane %v1826, 5
        %v1903 = vrot.slane %v1902, 4
        %v1904 = vrot.slane %v1827, 5
        %v1905 = vsel %vm905, %v1903, %v1904
        %v1906 = vrot.slane %v1904, 4
        %v1907 = vrot.slane %v1828, 5
        %v1908 = vsel %vm905, %v1906, %v1907
        %s1909 = scalar_lea.vmem %s233, 10
        %v1910 = vld [vmem:[%s1909] sm:$0x3]
        %v1911 = vunpack.c.l.b16 %v1856
        %v1912 = vunpack.c.l.b16 %v1859
        %v1913 = vunpack.c.l.b16 %v1863
        %v1914 = vunpack.c.l.b16 %v1866
        %v1915 = vunpack.c.l.b16 %v1870
        %v1916 = vunpack.c.l.b16 %v1873
        %v1917 = vunpack.c.l.b16 %v1877
        %v1918 = vunpack.c.l.b16 %v1880
        %v1919 = vunpack.c.l.b16 %v1884
        %v1920 = vunpack.c.l.b16 %v1887
        %v1921 = vunpack.c.l.b16 %v1891
        %v1922 = vunpack.c.l.b16 %v1894
        %v1923 = vunpack.c.l.b16 %v1898
        %v1924 = vunpack.c.l.b16 %v1901
        %v1925 = vunpack.c.l.b16 %v1905
        %v1926 = vunpack.c.l.b16 %v1908
        %v1927 = vpack.c.b16 %v1912, %v1911
        %v1928 = vpack.c.b16 %v1914, %v1913
        %v1929 = vpack.c.b16 %v1916, %v1915
        %v1930 = vpack.c.b16 %v1918, %v1917
        %v1931 = vpack.c.b16 %v1920, %v1919
        %v1932 = vpack.c.b16 %v1922, %v1921
        %v1933 = vpack.c.b16 %v1924, %v1923
        %v1934 = vpack.c.b16 %v1926, %v1925
        %v1936 = vsel %vm296, %v1927, 0
        %v1939 = vsel %vm296, %v1928, 0
        %v1942 = vsel %vm296, %v1929, 0
        %v1945 = vsel %vm296, %v1930, 0
        %v1948 = vsel %vm296, %v1931, 0
        %v1951 = vsel %vm296, %v1932, 0
        %v1954 = vsel %vm296, %v1933, 0
        %v1957 = vsel %vm296, %v1934, 0
        %v1960 = vsel %vm321, %v1910, 0
        %1962 = vmatprep.subr.bf16.mxu0 0
        %1963 = vmatpush1.bf16.msra.mxu0 %v1960
        %1964 = vmatprep.subr.bf16.mxu0 0
        %1965 = vmatpush1.bf16.msra.mxu0 0
        %1966 = vmatprep.subr.bf16.mxu0 0
        %1967 = vmatpush1.bf16.msra.mxu0 0
        %1968 = vmatprep.subr.bf16.mxu0 0
        %1969 = vmatpush1.bf16.msra.mxu0 0
        %1970 = vmatprep.subr.bf16.mxu0 0
        %1971 = vmatpush1.bf16.msra.mxu0 0
        %1972 = vmatprep.subr.bf16.mxu0 0
        %1973 = vmatpush1.bf16.msra.mxu0 0
        %1974 = vmatprep.subr.bf16.mxu0 0
        %1975 = vmatpush1.bf16.msra.mxu0 0
        %1976 = vmatprep.subr.bf16.mxu0 0
        %1977 = vmatpush1.bf16.msra.mxu0 0
        %1978 = vmatprep.subr.bf16.mxu0 0
        %1979 = vmatpush1.bf16.msra.mxu0 0
        %1980 = vmatprep.subr.bf16.mxu0 0
        %1981 = vmatpush1.bf16.msra.mxu0 0
        %1982 = vmatprep.subr.bf16.mxu0 0
        %1983 = vmatpush1.bf16.msra.mxu0 0
        %1984 = vmatprep.subr.bf16.mxu0 0
        %1985 = vmatpush1.bf16.msra.mxu0 0
        %1986 = vmatprep.subr.bf16.mxu0 0
        %1987 = vmatpush1.bf16.msra.mxu0 0
        %1988 = vmatprep.subr.bf16.mxu0 0
        %1989 = vmatpush1.bf16.msra.mxu0 0
        %1990 = vmatprep.subr.bf16.mxu0 0
        %1991 = vmatpush1.bf16.msra.mxu0 0
        %1992 = vmatprep.subr.bf16.mxu0 0
        %1993 = vmatpush1.bf16.msra.mxu0 0
        %1994 = vmatprep.mubr.bf16.mxu0 0
        %1995 = vmatmul.mubr.bf16.gmra.mrb[0].mxu0 %v1936
        %v1996 = vpop.f32.mrb[0].mxu0
        %v1997 = vadd.f32 0.0, %v1996
        %v1998 = vpop.f32.mrb[0].mxu0
        %v1999 = vpop.f32.mrb[0].mxu0
        %v2000 = vadd.f32 0.0, %v1999
        %v2001 = vpop.f32.mrb[0].mxu0
        %2002 = vmatprep.mubr.bf16.mxu0 0
        %2003 = vmatmul.mubr.bf16.gmra.mrb[0].mxu0 %v1939
        %v2004 = vpop.f32.mrb[0].mxu0
        %v2005 = vadd.f32 0.0, %v2004
        %v2006 = vpop.f32.mrb[0].mxu0
        %v2007 = vpop.f32.mrb[0].mxu0
        %v2008 = vadd.f32 0.0, %v2007
        %v2009 = vpop.f32.mrb[0].mxu0
        %2010 = vmatprep.mubr.bf16.mxu0 0
        %2011 = vmatmul.mubr.bf16.gmra.mrb[0].mxu0 %v1942
        %v2012 = vpop.f32.mrb[0].mxu0
        %v2013 = vadd.f32 0.0, %v2012
        %v2014 = vpop.f32.mrb[0].mxu0
        %v2015 = vpop.f32.mrb[0].mxu0
        %v2016 = vadd.f32 0.0, %v2015
        %v2017 = vpop.f32.mrb[0].mxu0
        %2018 = vmatprep.mubr.bf16.mxu0 0
        %2019 = vmatmul.mubr.bf16.gmra.mrb[0].mxu0 %v1945
        %v2020 = vpop.f32.mrb[0].mxu0
        %v2021 = vadd.f32 0.0, %v2020
        %v2022 = vpop.f32.mrb[0].mxu0
        %v2023 = vpop.f32.mrb[0].mxu0
        %v2024 = vadd.f32 0.0, %v2023
        %v2025 = vpop.f32.mrb[0].mxu0
        %2026 = vmatprep.mubr.bf16.mxu0 0
        %2027 = vmatmul.mubr.bf16.gmra.mrb[0].mxu0 %v1948
        %v2028 = vpop.f32.mrb[0].mxu0
        %v2029 = vadd.f32 0.0, %v2028
        %v2030 = vpop.f32.mrb[0].mxu0
        %v2031 = vpop.f32.mrb[0].mxu0
        %v2032 = vadd.f32 0.0, %v2031
        %v2033 = vpop.f32.mrb[0].mxu0
        %2034 = vmatprep.mubr.bf16.mxu0 0
        %2035 = vmatmul.mubr.bf16.gmra.mrb[0].mxu0 %v1951
        %v2036 = vpop.f32.mrb[0].mxu0
        %v2037 = vadd.f32 0.0, %v2036
        %v2038 = vpop.f32.mrb[0].mxu0
        %v2039 = vpop.f32.mrb[0].mxu0
        %v2040 = vadd.f32 0.0, %v2039
        %v2041 = vpop.f32.mrb[0].mxu0
        %2042 = vmatprep.mubr.bf16.mxu0 0
        %2043 = vmatmul.mubr.bf16.gmra.mrb[0].mxu0 %v1954
        %v2044 = vpop.f32.mrb[0].mxu0
        %v2045 = vadd.f32 0.0, %v2044
        %v2046 = vpop.f32.mrb[0].mxu0
        %v2047 = vpop.f32.mrb[0].mxu0
        %v2048 = vadd.f32 0.0, %v2047
        %v2049 = vpop.f32.mrb[0].mxu0
        %2050 = vmatprep.mubr.bf16.mxu0 0
        %2051 = vmatmul.mubr.bf16.gmra.mrb[0].mxu0 %v1957
        %v2052 = vpop.f32.mrb[0].mxu0
        %v2053 = vadd.f32 0.0, %v2052
        %v2054 = vpop.f32.mrb[0].mxu0
        %v2055 = vpop.f32.mrb[0].mxu0
        %v2056 = vadd.f32 0.0, %v2055
        %v2057 = vpop.f32.mrb[0].mxu0
        %2058 = vdwg.mxu0
        %v2059 = vld [vmem:[#allocation2] sm:$0xff]
        %v2060 = vld [vmem:[#allocation2 + $0x8] sm:$0xff]
        %v2061 = vld [vmem:[#allocation2 + $0x10] sm:$0xff]
        %v2062 = vld [vmem:[#allocation2 + $0x18] sm:$0xff]
        %v2063 = vld [vmem:[#allocation2 + $0x20] sm:$0xff]
        %v2064 = vld [vmem:[#allocation2 + $0x28] sm:$0xff]
        %v2065 = vld [vmem:[#allocation2 + $0x30] sm:$0xff]
        %v2066 = vld [vmem:[#allocation2 + $0x38] sm:$0xff]
        %v2067 = vld [vmem:[#allocation2 + $0x40] sm:$0xff]
        %v2068 = vld [vmem:[#allocation2 + $0x48] sm:$0xff]
        %v2069 = vld [vmem:[#allocation2 + $0x50] sm:$0xff]
        %v2070 = vld [vmem:[#allocation2 + $0x58] sm:$0xff]
        %v2071 = vld [vmem:[#allocation2 + $0x60] sm:$0xff]
        %v2072 = vld [vmem:[#allocation2 + $0x68] sm:$0xff]
        %v2073 = vld [vmem:[#allocation2 + $0x70] sm:$0xff]
        %v2074 = vld [vmem:[#allocation2 + $0x78] sm:$0xff]
        %v2075 = vadd.f32 %v2059, %v1997
        %v2076 = vadd.f32 %v2060, %v2000
        %v2077 = vadd.f32 %v2061, %v2005
        %v2078 = vadd.f32 %v2062, %v2008
        %v2079 = vadd.f32 %v2063, %v2013
        %v2080 = vadd.f32 %v2064, %v2016
        %v2081 = vadd.f32 %v2065, %v2021
        %v2082 = vadd.f32 %v2066, %v2024
        %v2083 = vadd.f32 %v2067, %v2029
        %v2084 = vadd.f32 %v2068, %v2032
        %v2085 = vadd.f32 %v2069, %v2037
        %v2086 = vadd.f32 %v2070, %v2040
        %v2087 = vadd.f32 %v2071, %v2045
        %v2088 = vadd.f32 %v2072, %v2048
        %v2089 = vadd.f32 %v2073, %v2053
        %v2090 = vadd.f32 %v2074, %v2056
        %2091 = vst [vmem:[#allocation2] sm:$0xff] %v2075
        %2092 = vst [vmem:[#allocation2 + $0x8] sm:$0xff] %v2076
        %2093 = vst [vmem:[#allocation2 + $0x10] sm:$0xff] %v2077
        %2094 = vst [vmem:[#allocation2 + $0x18] sm:$0xff] %v2078
        %2095 = vst [vmem:[#allocation2 + $0x20] sm:$0xff] %v2079
        %2096 = vst [vmem:[#allocation2 + $0x28] sm:$0xff] %v2080
        %2097 = vst [vmem:[#allocation2 + $0x30] sm:$0xff] %v2081
        %2098 = vst [vmem:[#allocation2 + $0x38] sm:$0xff] %v2082
        %2099 = vst [vmem:[#allocation2 + $0x40] sm:$0xff] %v2083
        %2100 = vst [vmem:[#allocation2 + $0x48] sm:$0xff] %v2084
        %2101 = vst [vmem:[#allocation2 + $0x50] sm:$0xff] %v2085
        %2102 = vst [vmem:[#allocation2 + $0x58] sm:$0xff] %v2086
        %2103 = vst [vmem:[#allocation2 + $0x60] sm:$0xff] %v2087
        %2104 = vst [vmem:[#allocation2 + $0x68] sm:$0xff] %v2088
        %2105 = vst [vmem:[#allocation2 + $0x70] sm:$0xff] %v2089
        %2106 = vst [vmem:[#allocation2 + $0x78] sm:$0xff] %v2090
        %s2107 = scalar_lea.vmem %s229, 24
        %v2108 = vld [vmem:[%s2107] sm:$0xf]
        %v2109 = vld [vmem:[%s2107 + $0x4] sm:$0xf]
        %v2110 = vld [vmem:[%s2107 + $0xc] sm:$0xf]
        %v2111 = vld [vmem:[%s2107 + $0x10] sm:$0xf]
        %v2112 = vld [vmem:[%s2107 + $0x18] sm:$0xf]
        %v2113 = vld [vmem:[%s2107 + $0x1c] sm:$0xf]
        %v2114 = vld [vmem:[%s2107 + $0x24] sm:$0xf]
        %v2115 = vld [vmem:[%s2107 + $0x28] sm:$0xf]
        %v2116 = vld [vmem:[%s2107 + $0x30] sm:$0xf]
        %v2117 = vld [vmem:[%s2107 + $0x34] sm:$0xf]
        %v2118 = vld [vmem:[%s2107 + $0x3c] sm:$0xf]
        %v2119 = vld [vmem:[%s2107 + $0x40] sm:$0xf]
        %v2120 = vld [vmem:[%s2107 + $0x48] sm:$0xf]
        %v2121 = vld [vmem:[%s2107 + $0x4c] sm:$0xf]
        %v2122 = vld [vmem:[%s2107 + $0x54] sm:$0xf]
        %v2123 = vld [vmem:[%s2107 + $0x58] sm:$0xf]
        %s2124 = scalar_lea.vmem %s233, 12
        %v2125 = vld [vmem:[%s2124] sm:$0x3]
        %v2142 = vunpack.c.l.b16 %v2108
        %v2143 = vunpack.c.l.b16 %v2109
        %v2144 = vunpack.c.l.b16 %v2110
        %v2145 = vunpack.c.l.b16 %v2111
        %v2146 = vunpack.c.l.b16 %v2112
        %v2147 = vunpack.c.l.b16 %v2113
        %v2148 = vunpack.c.l.b16 %v2114
        %v2149 = vunpack.c.l.b16 %v2115
        %v2150 = vunpack.c.l.b16 %v2116
        %v2151 = vunpack.c.l.b16 %v2117
        %v2152 = vunpack.c.l.b16 %v2118
        %v2153 = vunpack.c.l.b16 %v2119
        %v2154 = vunpack.c.l.b16 %v2120
        %v2155 = vunpack.c.l.b16 %v2121
        %v2156 = vunpack.c.l.b16 %v2122
        %v2157 = vunpack.c.l.b16 %v2123
        %v2158 = vpack.c.b16 %v2143, %v2142
        %v2159 = vpack.c.b16 %v2145, %v2144
        %v2160 = vpack.c.b16 %v2147, %v2146
        %v2161 = vpack.c.b16 %v2149, %v2148
        %v2162 = vpack.c.b16 %v2151, %v2150
        %v2163 = vpack.c.b16 %v2153, %v2152
        %v2164 = vpack.c.b16 %v2155, %v2154
        %v2165 = vpack.c.b16 %v2157, %v2156
        %v2167 = vsel %vm296, %v2158, 0
        %v2170 = vsel %vm296, %v2159, 0
        %v2173 = vsel %vm296, %v2160, 0
        %v2176 = vsel %vm296, %v2161, 0
        %v2179 = vsel %vm296, %v2162, 0
        %v2182 = vsel %vm296, %v2163, 0
        %v2185 = vsel %vm296, %v2164, 0
        %v2188 = vsel %vm296, %v2165, 0
        %v2191 = vsel %vm321, %v2125, 0
        %2193 = vmatprep.subr.bf16.mxu0 0
        %2194 = vmatpush1.bf16.msra.mxu0 %v2191
        %2195 = vmatprep.subr.bf16.mxu0 0
        %2196 = vmatpush1.bf16.msra.mxu0 0
        %2197 = vmatprep.subr.bf16.mxu0 0
        %2198 = vmatpush1.bf16.msra.mxu0 0
        %2199 = vmatprep.subr.bf16.mxu0 0
        %2200 = vmatpush1.bf16.msra.mxu0 0
        %2201 = vmatprep.subr.bf16.mxu0 0
        %2202 = vmatpush1.bf16.msra.mxu0 0
        %2203 = vmatprep.subr.bf16.mxu0 0
        %2204 = vmatpush1.bf16.msra.mxu0 0
        %2205 = vmatprep.subr.bf16.mxu0 0
        %2206 = vmatpush1.bf16.msra.mxu0 0
        %2207 = vmatprep.subr.bf16.mxu0 0
        %2208 = vmatpush1.bf16.msra.mxu0 0
        %2209 = vmatprep.subr.bf16.mxu0 0
        %2210 = vmatpush1.bf16.msra.mxu0 0
        %2211 = vmatprep.subr.bf16.mxu0 0
        %2212 = vmatpush1.bf16.msra.mxu0 0
        %2213 = vmatprep.subr.bf16.mxu0 0
        %2214 = vmatpush1.bf16.msra.mxu0 0
        %2215 = vmatprep.subr.bf16.mxu0 0
        %2216 = vmatpush1.bf16.msra.mxu0 0
        %2217 = vmatprep.subr.bf16.mxu0 0
        %2218 = vmatpush1.bf16.msra.mxu0 0
        %2219 = vmatprep.subr.bf16.mxu0 0
        %2220 = vmatpush1.bf16.msra.mxu0 0
        %2221 = vmatprep.subr.bf16.mxu0 0
        %2222 = vmatpush1.bf16.msra.mxu0 0
        %2223 = vmatprep.subr.bf16.mxu0 0
        %2224 = vmatpush1.bf16.msra.mxu0 0
        %2225 = vmatprep.mubr.bf16.mxu0 0
        %2226 = vmatmul.mubr.bf16.gmra.mrb[0].mxu0 %v2167
        %v2227 = vpop.f32.mrb[0].mxu0
        %v2228 = vadd.f32 0.0, %v2227
        %v2229 = vpop.f32.mrb[0].mxu0
        %v2230 = vpop.f32.mrb[0].mxu0
        %v2231 = vadd.f32 0.0, %v2230
        %v2232 = vpop.f32.mrb[0].mxu0
        %2233 = vmatprep.mubr.bf16.mxu0 0
        %2234 = vmatmul.mubr.bf16.gmra.mrb[0].mxu0 %v2170
        %v2235 = vpop.f32.mrb[0].mxu0
        %v2236 = vadd.f32 0.0, %v2235
        %v2237 = vpop.f32.mrb[0].mxu0
        %v2238 = vpop.f32.mrb[0].mxu0
        %v2239 = vadd.f32 0.0, %v2238
        %v2240 = vpop.f32.mrb[0].mxu0
        %2241 = vmatprep.mubr.bf16.mxu0 0
        %2242 = vmatmul.mubr.bf16.gmra.mrb[0].mxu0 %v2173
        %v2243 = vpop.f32.mrb[0].mxu0
        %v2244 = vadd.f32 0.0, %v2243
        %v2245 = vpop.f32.mrb[0].mxu0
        %v2246 = vpop.f32.mrb[0].mxu0
        %v2247 = vadd.f32 0.0, %v2246
        %v2248 = vpop.f32.mrb[0].mxu0
        %2249 = vmatprep.mubr.bf16.mxu0 0
        %2250 = vmatmul.mubr.bf16.gmra.mrb[0].mxu0 %v2176
        %v2251 = vpop.f32.mrb[0].mxu0
        %v2252 = vadd.f32 0.0, %v2251
        %v2253 = vpop.f32.mrb[0].mxu0
        %v2254 = vpop.f32.mrb[0].mxu0
        %v2255 = vadd.f32 0.0, %v2254
        %v2256 = vpop.f32.mrb[0].mxu0
        %2257 = vmatprep.mubr.bf16.mxu0 0
        %2258 = vmatmul.mubr.bf16.gmra.mrb[0].mxu0 %v2179
        %v2259 = vpop.f32.mrb[0].mxu0
        %v2260 = vadd.f32 0.0, %v2259
        %v2261 = vpop.f32.mrb[0].mxu0
        %v2262 = vpop.f32.mrb[0].mxu0
        %v2263 = vadd.f32 0.0, %v2262
        %v2264 = vpop.f32.mrb[0].mxu0
        %2265 = vmatprep.mubr.bf16.mxu0 0
        %2266 = vmatmul.mubr.bf16.gmra.mrb[0].mxu0 %v2182
        %v2267 = vpop.f32.mrb[0].mxu0
        %v2268 = vadd.f32 0.0, %v2267
        %v2269 = vpop.f32.mrb[0].mxu0
        %v2270 = vpop.f32.mrb[0].mxu0
        %v2271 = vadd.f32 0.0, %v2270
        %v2272 = vpop.f32.mrb[0].mxu0
        %2273 = vmatprep.mubr.bf16.mxu0 0
        %2274 = vmatmul.mubr.bf16.gmra.mrb[0].mxu0 %v2185
        %v2275 = vpop.f32.mrb[0].mxu0
        %v2276 = vadd.f32 0.0, %v2275
        %v2277 = vpop.f32.mrb[0].mxu0
        %v2278 = vpop.f32.mrb[0].mxu0
        %v2279 = vadd.f32 0.0, %v2278
        %v2280 = vpop.f32.mrb[0].mxu0
        %2281 = vmatprep.mubr.bf16.mxu0 0
        %2282 = vmatmul.mubr.bf16.gmra.mrb[0].mxu0 %v2188
        %v2283 = vpop.f32.mrb[0].mxu0
        %v2284 = vadd.f32 0.0, %v2283
        %v2285 = vpop.f32.mrb[0].mxu0
        %v2286 = vpop.f32.mrb[0].mxu0
        %v2287 = vadd.f32 0.0, %v2286
        %v2288 = vpop.f32.mrb[0].mxu0
        %2289 = vdwg.mxu0
        %v2290 = vld [vmem:[#allocation2] sm:$0xff]
        %v2291 = vld [vmem:[#allocation2 + $0x8] sm:$0xff]
        %v2292 = vld [vmem:[#allocation2 + $0x10] sm:$0xff]
        %v2293 = vld [vmem:[#allocation2 + $0x18] sm:$0xff]
        %v2294 = vld [vmem:[#allocation2 + $0x20] sm:$0xff]
        %v2295 = vld [vmem:[#allocation2 + $0x28] sm:$0xff]
        %v2296 = vld [vmem:[#allocation2 + $0x30] sm:$0xff]
        %v2297 = vld [vmem:[#allocation2 + $0x38] sm:$0xff]
        %v2298 = vld [vmem:[#allocation2 + $0x40] sm:$0xff]
        %v2299 = vld [vmem:[#allocation2 + $0x48] sm:$0xff]
        %v2300 = vld [vmem:[#allocation2 + $0x50] sm:$0xff]
        %v2301 = vld [vmem:[#allocation2 + $0x58] sm:$0xff]
        %v2302 = vld [vmem:[#allocation2 + $0x60] sm:$0xff]
        %v2303 = vld [vmem:[#allocation2 + $0x68] sm:$0xff]
        %v2304 = vld [vmem:[#allocation2 + $0x70] sm:$0xff]
        %v2305 = vld [vmem:[#allocation2 + $0x78] sm:$0xff]
        %v2306 = vadd.f32 %v2290, %v2228
        %v2307 = vadd.f32 %v2291, %v2231
        %v2308 = vadd.f32 %v2292, %v2236
        %v2309 = vadd.f32 %v2293, %v2239
        %v2310 = vadd.f32 %v2294, %v2244
        %v2311 = vadd.f32 %v2295, %v2247
        %v2312 = vadd.f32 %v2296, %v2252
        %v2313 = vadd.f32 %v2297, %v2255
        %v2314 = vadd.f32 %v2298, %v2260
        %v2315 = vadd.f32 %v2299, %v2263
        %v2316 = vadd.f32 %v2300, %v2268
        %v2317 = vadd.f32 %v2301, %v2271
        %v2318 = vadd.f32 %v2302, %v2276
        %v2319 = vadd.f32 %v2303, %v2279
        %v2320 = vadd.f32 %v2304, %v2284
        %v2321 = vadd.f32 %v2305, %v2287
        %2322 = vst [vmem:[#allocation2] sm:$0xff] %v2306
        %2323 = vst [vmem:[#allocation2 + $0x8] sm:$0xff] %v2307
        %2324 = vst [vmem:[#allocation2 + $0x10] sm:$0xff] %v2308
        %2325 = vst [vmem:[#allocation2 + $0x18] sm:$0xff] %v2309
        %2326 = vst [vmem:[#allocation2 + $0x20] sm:$0xff] %v2310
        %2327 = vst [vmem:[#allocation2 + $0x28] sm:$0xff] %v2311
        %2328 = vst [vmem:[#allocation2 + $0x30] sm:$0xff] %v2312
        %2329 = vst [vmem:[#allocation2 + $0x38] sm:$0xff] %v2313
        %2330 = vst [vmem:[#allocation2 + $0x40] sm:$0xff] %v2314
        %2331 = vst [vmem:[#allocation2 + $0x48] sm:$0xff] %v2315
        %2332 = vst [vmem:[#allocation2 + $0x50] sm:$0xff] %v2316
        %2333 = vst [vmem:[#allocation2 + $0x58] sm:$0xff] %v2317
        %2334 = vst [vmem:[#allocation2 + $0x60] sm:$0xff] %v2318
        %2335 = vst [vmem:[#allocation2 + $0x68] sm:$0xff] %v2319
        %2336 = vst [vmem:[#allocation2 + $0x70] sm:$0xff] %v2320
        %2337 = vst [vmem:[#allocation2 + $0x78] sm:$0xff] %v2321
        %v2338 = vld [vmem:[%s2107] sm:$0xf]
        %v2339 = vld [vmem:[%s2107 + $0x4] sm:$0xf]
        %v2340 = vld [vmem:[%s2107 + $0x8] sm:$0x1]
        %v2341 = vld [vmem:[%s2107 + $0xc] sm:$0xf]
        %v2342 = vld [vmem:[%s2107 + $0x10] sm:$0xf]
        %v2343 = vld [vmem:[%s2107 + $0x14] sm:$0x1]
        %v2344 = vld [vmem:[%s2107 + $0x18] sm:$0xf]
        %v2345 = vld [vmem:[%s2107 + $0x1c] sm:$0xf]
        %v2346 = vld [vmem:[%s2107 + $0x20] sm:$0x1]
        %v2347 = vld [vmem:[%s2107 + $0x24] sm:$0xf]
        %v2348 = vld [vmem:[%s2107 + $0x28] sm:$0xf]
        %v2349 = vld [vmem:[%s2107 + $0x2c] sm:$0x1]
        %v2350 = vld [vmem:[%s2107 + $0x30] sm:$0xf]
        %v2351 = vld [vmem:[%s2107 + $0x34] sm:$0xf]
        %v2352 = vld [vmem:[%s2107 + $0x38] sm:$0x1]
        %v2353 = vld [vmem:[%s2107 + $0x3c] sm:$0xf]
        %v2354 = vld [vmem:[%s2107 + $0x40] sm:$0xf]
        %v2355 = vld [vmem:[%s2107 + $0x44] sm:$0x1]
        %v2356 = vld [vmem:[%s2107 + $0x48] sm:$0xf]
        %v2357 = vld [vmem:[%s2107 + $0x4c] sm:$0xf]
        %v2358 = vld [vmem:[%s2107 + $0x50] sm:$0x1]
        %v2359 = vld [vmem:[%s2107 + $0x54] sm:$0xf]
        %v2360 = vld [vmem:[%s2107 + $0x58] sm:$0xf]
        %v2361 = vld [vmem:[%s2107 + $0x5c] sm:$0x1]
        %v2363 = vshrl.u32 %v2338, 16
        %v2365 = vrot.slane %v2363, 4
        %v2366 = vshll.u32 %v2338, 16
        %v2368 = vrot.slane %v2366, 5
        %v2369 = vor.u32 %v2365, %v2368
        %v2370 = vrot.slane %v2369, 4
        %v2372 = vshll.u32 %v2339, 16
        %v2374 = vrot.slane %v2372, 5
        %v2375 = vsel %vm464, %v2370, %v2374
        %v2376 = vshrl.u32 %v2339, 16
        %v2378 = vrot.slane %v2376, 4
        %v2379 = vor.u32 %v2378, %v2374
        %v2380 = vrot.slane %v2379, 4
        %v2382 = vshll.u32 %v2340, 16
        %v2384 = vrot.slane %v2382, 5
        %v2385 = vsel %vm464, %v2380, %v2384
        %v2387 = vshrl.u32 %v2341, 16
        %v2389 = vrot.slane %v2387, 4
        %v2390 = vshll.u32 %v2341, 16
        %v2392 = vrot.slane %v2390, 5
        %v2393 = vor.u32 %v2389, %v2392
        %v2394 = vrot.slane %v2393, 4
        %v2396 = vshll.u32 %v2342, 16
        %v2398 = vrot.slane %v2396, 5
        %v2399 = vsel %vm464, %v2394, %v2398
        %v2400 = vshrl.u32 %v2342, 16
        %v2402 = vrot.slane %v2400, 4
        %v2403 = vor.u32 %v2402, %v2398
        %v2404 = vrot.slane %v2403, 4
        %v2406 = vshll.u32 %v2343, 16
        %v2408 = vrot.slane %v2406, 5
        %v2409 = vsel %vm464, %v2404, %v2408
        %v2411 = vshrl.u32 %v2344, 16
        %v2413 = vrot.slane %v2411, 4
        %v2414 = vshll.u32 %v2344, 16
        %v2416 = vrot.slane %v2414, 5
        %v2417 = vor.u32 %v2413, %v2416
        %v2418 = vrot.slane %v2417, 4
        %v2420 = vshll.u32 %v2345, 16
        %v2422 = vrot.slane %v2420, 5
        %v2423 = vsel %vm464, %v2418, %v2422
        %v2424 = vshrl.u32 %v2345, 16
        %v2426 = vrot.slane %v2424, 4
        %v2427 = vor.u32 %v2426, %v2422
        %v2428 = vrot.slane %v2427, 4
        %v2430 = vshll.u32 %v2346, 16
        %v2432 = vrot.slane %v2430, 5
        %v2433 = vsel %vm464, %v2428, %v2432
        %v2435 = vshrl.u32 %v2347, 16
        %v2437 = vrot.slane %v2435, 4
        %v2438 = vshll.u32 %v2347, 16
        %v2440 = vrot.slane %v2438, 5
        %v2441 = vor.u32 %v2437, %v2440
        %v2442 = vrot.slane %v2441, 4
        %v2444 = vshll.u32 %v2348, 16
        %v2446 = vrot.slane %v2444, 5
        %v2447 = vsel %vm464, %v2442, %v2446
        %v2448 = vshrl.u32 %v2348, 16
        %v2450 = vrot.slane %v2448, 4
        %v2451 = vor.u32 %v2450, %v2446
        %v2452 = vrot.slane %v2451, 4
        %v2454 = vshll.u32 %v2349, 16
        %v2456 = vrot.slane %v2454, 5
        %v2457 = vsel %vm464, %v2452, %v2456
        %v2459 = vshrl.u32 %v2350, 16
        %v2461 = vrot.slane %v2459, 4
        %v2462 = vshll.u32 %v2350, 16
        %v2464 = vrot.slane %v2462, 5
        %v2465 = vor.u32 %v2461, %v2464
        %v2466 = vrot.slane %v2465, 4
        %v2468 = vshll.u32 %v2351, 16
        %v2470 = vrot.slane %v2468, 5
        %v2471 = vsel %vm464, %v2466, %v2470
        %v2472 = vshrl.u32 %v2351, 16
        %v2474 = vrot.slane %v2472, 4
        %v2475 = vor.u32 %v2474, %v2470
        %v2476 = vrot.slane %v2475, 4
        %v2478 = vshll.u32 %v2352, 16
        %v2480 = vrot.slane %v2478, 5
        %v2481 = vsel %vm464, %v2476, %v2480
        %v2483 = vshrl.u32 %v2353, 16
        %v2485 = vrot.slane %v2483, 4
        %v2486 = vshll.u32 %v2353, 16
        %v2488 = vrot.slane %v2486, 5
        %v2489 = vor.u32 %v2485, %v2488
        %v2490 = vrot.slane %v2489, 4
        %v2492 = vshll.u32 %v2354, 16
        %v2494 = vrot.slane %v2492, 5
        %v2495 = vsel %vm464, %v2490, %v2494
        %v2496 = vshrl.u32 %v2354, 16
        %v2498 = vrot.slane %v2496, 4
        %v2499 = vor.u32 %v2498, %v2494
        %v2500 = vrot.slane %v2499, 4
        %v2502 = vshll.u32 %v2355, 16
        %v2504 = vrot.slane %v2502, 5
        %v2505 = vsel %vm464, %v2500, %v2504
        %v2507 = vshrl.u32 %v2356, 16
        %v2509 = vrot.slane %v2507, 4
        %v2510 = vshll.u32 %v2356, 16
        %v2512 = vrot.slane %v2510, 5
        %v2513 = vor.u32 %v2509, %v2512
        %v2514 = vrot.slane %v2513, 4
        %v2516 = vshll.u32 %v2357, 16
        %v2518 = vrot.slane %v2516, 5
        %v2519 = vsel %vm464, %v2514, %v2518
        %v2520 = vshrl.u32 %v2357, 16
        %v2522 = vrot.slane %v2520, 4
        %v2523 = vor.u32 %v2522, %v2518
        %v2524 = vrot.slane %v2523, 4
        %v2526 = vshll.u32 %v2358, 16
        %v2528 = vrot.slane %v2526, 5
        %v2529 = vsel %vm464, %v2524, %v2528
        %v2531 = vshrl.u32 %v2359, 16
        %v2533 = vrot.slane %v2531, 4
        %v2534 = vshll.u32 %v2359, 16
        %v2536 = vrot.slane %v2534, 5
        %v2537 = vor.u32 %v2533, %v2536
        %v2538 = vrot.slane %v2537, 4
        %v2540 = vshll.u32 %v2360, 16
        %v2542 = vrot.slane %v2540, 5
        %v2543 = vsel %vm464, %v2538, %v2542
        %v2544 = vshrl.u32 %v2360, 16
        %v2546 = vrot.slane %v2544, 4
        %v2547 = vor.u32 %v2546, %v2542
        %v2548 = vrot.slane %v2547, 4
        %v2550 = vshll.u32 %v2361, 16
        %v2552 = vrot.slane %v2550, 5
        %v2553 = vsel %vm464, %v2548, %v2552
        %s2554 = scalar_lea.vmem %s233, 14
        %v2555 = vld [vmem:[%s2554] sm:$0x3]
        %v2556 = vunpack.c.l.b16 %v2375
        %v2557 = vunpack.c.l.b16 %v2385
        %v2558 = vunpack.c.l.b16 %v2399
        %v2559 = vunpack.c.l.b16 %v2409
        %v2560 = vunpack.c.l.b16 %v2423
        %v2561 = vunpack.c.l.b16 %v2433
        %v2562 = vunpack.c.l.b16 %v2447
        %v2563 = vunpack.c.l.b16 %v2457
        %v2564 = vunpack.c.l.b16 %v2471
        %v2565 = vunpack.c.l.b16 %v2481
        %v2566 = vunpack.c.l.b16 %v2495
        %v2567 = vunpack.c.l.b16 %v2505
        %v2568 = vunpack.c.l.b16 %v2519
        %v2569 = vunpack.c.l.b16 %v2529
        %v2570 = vunpack.c.l.b16 %v2543
        %v2571 = vunpack.c.l.b16 %v2553
        %v2572 = vpack.c.b16 %v2557, %v2556
        %v2573 = vpack.c.b16 %v2559, %v2558
        %v2574 = vpack.c.b16 %v2561, %v2560
        %v2575 = vpack.c.b16 %v2563, %v2562
        %v2576 = vpack.c.b16 %v2565, %v2564
        %v2577 = vpack.c.b16 %v2567, %v2566
        %v2578 = vpack.c.b16 %v2569, %v2568
        %v2579 = vpack.c.b16 %v2571, %v2570
        %v2581 = vsel %vm296, %v2572, 0
        %v2584 = vsel %vm296, %v2573, 0
        %v2587 = vsel %vm296, %v2574, 0
        %v2590 = vsel %vm296, %v2575, 0
        %v2593 = vsel %vm296, %v2576, 0
        %v2596 = vsel %vm296, %v2577, 0
        %v2599 = vsel %vm296, %v2578, 0
        %v2602 = vsel %vm296, %v2579, 0
        %v2605 = vsel %vm321, %v2555, 0
        %2607 = vmatprep.subr.bf16.mxu0 0
        %2608 = vmatpush1.bf16.msra.mxu0 %v2605
        %2609 = vmatprep.subr.bf16.mxu0 0
        %2610 = vmatpush1.bf16.msra.mxu0 0
        %2611 = vmatprep.subr.bf16.mxu0 0
        %2612 = vmatpush1.bf16.msra.mxu0 0
        %2613 = vmatprep.subr.bf16.mxu0 0
        %2614 = vmatpush1.bf16.msra.mxu0 0
        %2615 = vmatprep.subr.bf16.mxu0 0
        %2616 = vmatpush1.bf16.msra.mxu0 0
        %2617 = vmatprep.subr.bf16.mxu0 0
        %2618 = vmatpush1.bf16.msra.mxu0 0
        %2619 = vmatprep.subr.bf16.mxu0 0
        %2620 = vmatpush1.bf16.msra.mxu0 0
        %2621 = vmatprep.subr.bf16.mxu0 0
        %2622 = vmatpush1.bf16.msra.mxu0 0
        %2623 = vmatprep.subr.bf16.mxu0 0
        %2624 = vmatpush1.bf16.msra.mxu0 0
        %2625 = vmatprep.subr.bf16.mxu0 0
        %2626 = vmatpush1.bf16.msra.mxu0 0
        %2627 = vmatprep.subr.bf16.mxu0 0
        %2628 = vmatpush1.bf16.msra.mxu0 0
        %2629 = vmatprep.subr.bf16.mxu0 0
        %2630 = vmatpush1.bf16.msra.mxu0 0
        %2631 = vmatprep.subr.bf16.mxu0 0
        %2632 = vmatpush1.bf16.msra.mxu0 0
        %2633 = vmatprep.subr.bf16.mxu0 0
        %2634 = vmatpush1.bf16.msra.mxu0 0
        %2635 = vmatprep.subr.bf16.mxu0 0
        %2636 = vmatpush1.bf16.msra.mxu0 0
        %2637 = vmatprep.subr.bf16.mxu0 0
        %2638 = vmatpush1.bf16.msra.mxu0 0
        %2639 = vmatprep.mubr.bf16.mxu0 0
        %2640 = vmatmul.mubr.bf16.gmra.mrb[0].mxu0 %v2581
        %v2641 = vpop.f32.mrb[0].mxu0
        %v2642 = vadd.f32 0.0, %v2641
        %v2643 = vpop.f32.mrb[0].mxu0
        %v2644 = vpop.f32.mrb[0].mxu0
        %v2645 = vadd.f32 0.0, %v2644
        %v2646 = vpop.f32.mrb[0].mxu0
        %2647 = vmatprep.mubr.bf16.mxu0 0
        %2648 = vmatmul.mubr.bf16.gmra.mrb[0].mxu0 %v2584
        %v2649 = vpop.f32.mrb[0].mxu0
        %v2650 = vadd.f32 0.0, %v2649
        %v2651 = vpop.f32.mrb[0].mxu0
        %v2652 = vpop.f32.mrb[0].mxu0
        %v2653 = vadd.f32 0.0, %v2652
        %v2654 = vpop.f32.mrb[0].mxu0
        %2655 = vmatprep.mubr.bf16.mxu0 0
        %2656 = vmatmul.mubr.bf16.gmra.mrb[0].mxu0 %v2587
        %v2657 = vpop.f32.mrb[0].mxu0
        %v2658 = vadd.f32 0.0, %v2657
        %v2659 = vpop.f32.mrb[0].mxu0
        %v2660 = vpop.f32.mrb[0].mxu0
        %v2661 = vadd.f32 0.0, %v2660
        %v2662 = vpop.f32.mrb[0].mxu0
        %2663 = vmatprep.mubr.bf16.mxu0 0
        %2664 = vmatmul.mubr.bf16.gmra.mrb[0].mxu0 %v2590
        %v2665 = vpop.f32.mrb[0].mxu0
        %v2666 = vadd.f32 0.0, %v2665
        %v2667 = vpop.f32.mrb[0].mxu0
        %v2668 = vpop.f32.mrb[0].mxu0
        %v2669 = vadd.f32 0.0, %v2668
        %v2670 = vpop.f32.mrb[0].mxu0
        %2671 = vmatprep.mubr.bf16.mxu0 0
        %2672 = vmatmul.mubr.bf16.gmra.mrb[0].mxu0 %v2593
        %v2673 = vpop.f32.mrb[0].mxu0
        %v2674 = vadd.f32 0.0, %v2673
        %v2675 = vpop.f32.mrb[0].mxu0
        %v2676 = vpop.f32.mrb[0].mxu0
        %v2677 = vadd.f32 0.0, %v2676
        %v2678 = vpop.f32.mrb[0].mxu0
        %2679 = vmatprep.mubr.bf16.mxu0 0
        %2680 = vmatmul.mubr.bf16.gmra.mrb[0].mxu0 %v2596
        %v2681 = vpop.f32.mrb[0].mxu0
        %v2682 = vadd.f32 0.0, %v2681
        %v2683 = vpop.f32.mrb[0].mxu0
        %v2684 = vpop.f32.mrb[0].mxu0
        %v2685 = vadd.f32 0.0, %v2684
        %v2686 = vpop.f32.mrb[0].mxu0
        %2687 = vmatprep.mubr.bf16.mxu0 0
        %2688 = vmatmul.mubr.bf16.gmra.mrb[0].mxu0 %v2599
        %v2689 = vpop.f32.mrb[0].mxu0
        %v2690 = vadd.f32 0.0, %v2689
        %v2691 = vpop.f32.mrb[0].mxu0
        %v2692 = vpop.f32.mrb[0].mxu0
        %v2693 = vadd.f32 0.0, %v2692
        %v2694 = vpop.f32.mrb[0].mxu0
        %2695 = vmatprep.mubr.bf16.mxu0 0
        %2696 = vmatmul.mubr.bf16.gmra.mrb[0].mxu0 %v2602
        %v2697 = vpop.f32.mrb[0].mxu0
        %v2698 = vadd.f32 0.0, %v2697
        %v2699 = vpop.f32.mrb[0].mxu0
        %v2700 = vpop.f32.mrb[0].mxu0
        %v2701 = vadd.f32 0.0, %v2700
        %v2702 = vpop.f32.mrb[0].mxu0
        %2703 = vdwg.mxu0
        %v2704 = vld [vmem:[#allocation2] sm:$0xff]
        %v2705 = vld [vmem:[#allocation2 + $0x8] sm:$0xff]
        %v2706 = vld [vmem:[#allocation2 + $0x10] sm:$0xff]
        %v2707 = vld [vmem:[#allocation2 + $0x18] sm:$0xff]
        %v2708 = vld [vmem:[#allocation2 + $0x20] sm:$0xff]
        %v2709 = vld [vmem:[#allocation2 + $0x28] sm:$0xff]
        %v2710 = vld [vmem:[#allocation2 + $0x30] sm:$0xff]
        %v2711 = vld [vmem:[#allocation2 + $0x38] sm:$0xff]
        %v2712 = vld [vmem:[#allocation2 + $0x40] sm:$0xff]
        %v2713 = vld [vmem:[#allocation2 + $0x48] sm:$0xff]
        %v2714 = vld [vmem:[#allocation2 + $0x50] sm:$0xff]
        %v2715 = vld [vmem:[#allocation2 + $0x58] sm:$0xff]
        %v2716 = vld [vmem:[#allocation2 + $0x60] sm:$0xff]
        %v2717 = vld [vmem:[#allocation2 + $0x68] sm:$0xff]
        %v2718 = vld [vmem:[#allocation2 + $0x70] sm:$0xff]
        %v2719 = vld [vmem:[#allocation2 + $0x78] sm:$0xff]
        %v2720 = vadd.f32 %v2704, %v2642
        %v2721 = vadd.f32 %v2705, %v2645
        %v2722 = vadd.f32 %v2706, %v2650
        %v2723 = vadd.f32 %v2707, %v2653
        %v2724 = vadd.f32 %v2708, %v2658
        %v2725 = vadd.f32 %v2709, %v2661
        %v2726 = vadd.f32 %v2710, %v2666
        %v2727 = vadd.f32 %v2711, %v2669
        %v2728 = vadd.f32 %v2712, %v2674
        %v2729 = vadd.f32 %v2713, %v2677
        %v2730 = vadd.f32 %v2714, %v2682
        %v2731 = vadd.f32 %v2715, %v2685
        %v2732 = vadd.f32 %v2716, %v2690
        %v2733 = vadd.f32 %v2717, %v2693
        %v2734 = vadd.f32 %v2718, %v2698
        %v2735 = vadd.f32 %v2719, %v2701
        %2736 = vst [vmem:[#allocation2] sm:$0xff] %v2720
        %2737 = vst [vmem:[#allocation2 + $0x8] sm:$0xff] %v2721
        %2738 = vst [vmem:[#allocation2 + $0x10] sm:$0xff] %v2722
        %2739 = vst [vmem:[#allocation2 + $0x18] sm:$0xff] %v2723
        %2740 = vst [vmem:[#allocation2 + $0x20] sm:$0xff] %v2724
        %2741 = vst [vmem:[#allocation2 + $0x28] sm:$0xff] %v2725
        %2742 = vst [vmem:[#allocation2 + $0x30] sm:$0xff] %v2726
        %2743 = vst [vmem:[#allocation2 + $0x38] sm:$0xff] %v2727
        %2744 = vst [vmem:[#allocation2 + $0x40] sm:$0xff] %v2728
        %2745 = vst [vmem:[#allocation2 + $0x48] sm:$0xff] %v2729
        %2746 = vst [vmem:[#allocation2 + $0x50] sm:$0xff] %v2730
        %2747 = vst [vmem:[#allocation2 + $0x58] sm:$0xff] %v2731
        %2748 = vst [vmem:[#allocation2 + $0x60] sm:$0xff] %v2732
        %2749 = vst [vmem:[#allocation2 + $0x68] sm:$0xff] %v2733
        %2750 = vst [vmem:[#allocation2 + $0x70] sm:$0xff] %v2734
        %2751 = vst [vmem:[#allocation2 + $0x78] sm:$0xff] %v2735
        %v2752 = vld [vmem:[%s2107] sm:$0xe]
        %v2753 = vld [vmem:[%s2107 + $0x4] sm:$0xf]
        %v2754 = vld [vmem:[%s2107 + $0x8] sm:$0x1]
        %v2755 = vld [vmem:[%s2107 + $0xc] sm:$0xe]
        %v2756 = vld [vmem:[%s2107 + $0x10] sm:$0xf]
        %v2757 = vld [vmem:[%s2107 + $0x14] sm:$0x1]
        %v2758 = vld [vmem:[%s2107 + $0x18] sm:$0xe]
        %v2759 = vld [vmem:[%s2107 + $0x1c] sm:$0xf]
        %v2760 = vld [vmem:[%s2107 + $0x20] sm:$0x1]
        %v2761 = vld [vmem:[%s2107 + $0x24] sm:$0xe]
        %v2762 = vld [vmem:[%s2107 + $0x28] sm:$0xf]
        %v2763 = vld [vmem:[%s2107 + $0x2c] sm:$0x1]
        %v2764 = vld [vmem:[%s2107 + $0x30] sm:$0xe]
        %v2765 = vld [vmem:[%s2107 + $0x34] sm:$0xf]
        %v2766 = vld [vmem:[%s2107 + $0x38] sm:$0x1]
        %v2767 = vld [vmem:[%s2107 + $0x3c] sm:$0xe]
        %v2768 = vld [vmem:[%s2107 + $0x40] sm:$0xf]
        %v2769 = vld [vmem:[%s2107 + $0x44] sm:$0x1]
        %v2770 = vld [vmem:[%s2107 + $0x48] sm:$0xe]
        %v2771 = vld [vmem:[%s2107 + $0x4c] sm:$0xf]
        %v2772 = vld [vmem:[%s2107 + $0x50] sm:$0x1]
        %v2773 = vld [vmem:[%s2107 + $0x54] sm:$0xe]
        %v2774 = vld [vmem:[%s2107 + $0x58] sm:$0xf]
        %v2775 = vld [vmem:[%s2107 + $0x5c] sm:$0x1]
        %v2800 = vrot.slane %v2752, 5
        %v2801 = vrot.slane %v2800, 4
        %v2802 = vrot.slane %v2753, 5
        %v2803 = vsel %vm905, %v2801, %v2802
        %v2804 = vrot.slane %v2802, 4
        %v2805 = vrot.slane %v2754, 5
        %v2806 = vsel %vm905, %v2804, %v2805
        %v2807 = vrot.slane %v2755, 5
        %v2808 = vrot.slane %v2807, 4
        %v2809 = vrot.slane %v2756, 5
        %v2810 = vsel %vm905, %v2808, %v2809
        %v2811 = vrot.slane %v2809, 4
        %v2812 = vrot.slane %v2757, 5
        %v2813 = vsel %vm905, %v2811, %v2812
        %v2814 = vrot.slane %v2758, 5
        %v2815 = vrot.slane %v2814, 4
        %v2816 = vrot.slane %v2759, 5
        %v2817 = vsel %vm905, %v2815, %v2816
        %v2818 = vrot.slane %v2816, 4
        %v2819 = vrot.slane %v2760, 5
        %v2820 = vsel %vm905, %v2818, %v2819
        %v2821 = vrot.slane %v2761, 5
        %v2822 = vrot.slane %v2821, 4
        %v2823 = vrot.slane %v2762, 5
        %v2824 = vsel %vm905, %v2822, %v2823
        %v2825 = vrot.slane %v2823, 4
        %v2826 = vrot.slane %v2763, 5
        %v2827 = vsel %vm905, %v2825, %v2826
        %v2828 = vrot.slane %v2764, 5
        %v2829 = vrot.slane %v2828, 4
        %v2830 = vrot.slane %v2765, 5
        %v2831 = vsel %vm905, %v2829, %v2830
        %v2832 = vrot.slane %v2830, 4
        %v2833 = vrot.slane %v2766, 5
        %v2834 = vsel %vm905, %v2832, %v2833
        %v2835 = vrot.slane %v2767, 5
        %v2836 = vrot.slane %v2835, 4
        %v2837 = vrot.slane %v2768, 5
        %v2838 = vsel %vm905, %v2836, %v2837
        %v2839 = vrot.slane %v2837, 4
        %v2840 = vrot.slane %v2769, 5
        %v2841 = vsel %vm905, %v2839, %v2840
        %v2842 = vrot.slane %v2770, 5
        %v2843 = vrot.slane %v2842, 4
        %v2844 = vrot.slane %v2771, 5
        %v2845 = vsel %vm905, %v2843, %v2844
        %v2846 = vrot.slane %v2844, 4
        %v2847 = vrot.slane %v2772, 5
        %v2848 = vsel %vm905, %v2846, %v2847
        %v2849 = vrot.slane %v2773, 5
        %v2850 = vrot.slane %v2849, 4
        %v2851 = vrot.slane %v2774, 5
        %v2852 = vsel %vm905, %v2850, %v2851
        %v2853 = vrot.slane %v2851, 4
        %v2854 = vrot.slane %v2775, 5
        %v2855 = vsel %vm905, %v2853, %v2854
        %s2856 = scalar_lea.vmem %s233, 16
        %v2857 = vld [vmem:[%s2856] sm:$0x3]
        %v2858 = vunpack.c.l.b16 %v2803
        %v2859 = vunpack.c.l.b16 %v2806
        %v2860 = vunpack.c.l.b16 %v2810
        %v2861 = vunpack.c.l.b16 %v2813
        %v2862 = vunpack.c.l.b16 %v2817
        %v2863 = vunpack.c.l.b16 %v2820
        %v2864 = vunpack.c.l.b16 %v2824
        %v2865 = vunpack.c.l.b16 %v2827
        %v2866 = vunpack.c.l.b16 %v2831
        %v2867 = vunpack.c.l.b16 %v2834
        %v2868 = vunpack.c.l.b16 %v2838
        %v2869 = vunpack.c.l.b16 %v2841
        %v2870 = vunpack.c.l.b16 %v2845
        %v2871 = vunpack.c.l.b16 %v2848
        %v2872 = vunpack.c.l.b16 %v2852
        %v2873 = vunpack.c.l.b16 %v2855
        %v2874 = vpack.c.b16 %v2859, %v2858
        %v2875 = vpack.c.b16 %v2861, %v2860
        %v2876 = vpack.c.b16 %v2863, %v2862
        %v2877 = vpack.c.b16 %v2865, %v2864
        %v2878 = vpack.c.b16 %v2867, %v2866
        %v2879 = vpack.c.b16 %v2869, %v2868
        %v2880 = vpack.c.b16 %v2871, %v2870
        %v2881 = vpack.c.b16 %v2873, %v2872
        %v2883 = vsel %vm296, %v2874, 0
        %v2886 = vsel %vm296, %v2875, 0
        %v2889 = vsel %vm296, %v2876, 0
        %v2892 = vsel %vm296, %v2877, 0
        %v2895 = vsel %vm296, %v2878, 0
        %v2898 = vsel %vm296, %v2879, 0
        %v2901 = vsel %vm296, %v2880, 0
        %v2904 = vsel %vm296, %v2881, 0
        %v2907 = vsel %vm321, %v2857, 0
        %2909 = vmatprep.subr.bf16.mxu0 0
        %2910 = vmatpush1.bf16.msra.mxu0 %v2907
        %2911 = vmatprep.subr.bf16.mxu0 0
        %2912 = vmatpush1.bf16.msra.mxu0 0
        %2913 = vmatprep.subr.bf16.mxu0 0
        %2914 = vmatpush1.bf16.msra.mxu0 0
        %2915 = vmatprep.subr.bf16.mxu0 0
        %2916 = vmatpush1.bf16.msra.mxu0 0
        %2917 = vmatprep.subr.bf16.mxu0 0
        %2918 = vmatpush1.bf16.msra.mxu0 0
        %2919 = vmatprep.subr.bf16.mxu0 0
        %2920 = vmatpush1.bf16.msra.mxu0 0
        %2921 = vmatprep.subr.bf16.mxu0 0
        %2922 = vmatpush1.bf16.msra.mxu0 0
        %2923 = vmatprep.subr.bf16.mxu0 0
        %2924 = vmatpush1.bf16.msra.mxu0 0
        %2925 = vmatprep.subr.bf16.mxu0 0
        %2926 = vmatpush1.bf16.msra.mxu0 0
        %2927 = vmatprep.subr.bf16.mxu0 0
        %2928 = vmatpush1.bf16.msra.mxu0 0
        %2929 = vmatprep.subr.bf16.mxu0 0
        %2930 = vmatpush1.bf16.msra.mxu0 0
        %2931 = vmatprep.subr.bf16.mxu0 0
        %2932 = vmatpush1.bf16.msra.mxu0 0
        %2933 = vmatprep.subr.bf16.mxu0 0
        %2934 = vmatpush1.bf16.msra.mxu0 0
        %2935 = vmatprep.subr.bf16.mxu0 0
        %2936 = vmatpush1.bf16.msra.mxu0 0
        %2937 = vmatprep.subr.bf16.mxu0 0
        %2938 = vmatpush1.bf16.msra.mxu0 0
        %2939 = vmatprep.subr.bf16.mxu0 0
        %2940 = vmatpush1.bf16.msra.mxu0 0
        %2941 = vmatprep.mubr.bf16.mxu0 0
        %2942 = vmatmul.mubr.bf16.gmra.mrb[0].mxu0 %v2883
        %v2943 = vpop.f32.mrb[0].mxu0
        %v2944 = vadd.f32 0.0, %v2943
        %v2945 = vpop.f32.mrb[0].mxu0
        %v2946 = vpop.f32.mrb[0].mxu0
        %v2947 = vadd.f32 0.0, %v2946
        %v2948 = vpop.f32.mrb[0].mxu0
        %2949 = vmatprep.mubr.bf16.mxu0 0
        %2950 = vmatmul.mubr.bf16.gmra.mrb[0].mxu0 %v2886
        %v2951 = vpop.f32.mrb[0].mxu0
        %v2952 = vadd.f32 0.0, %v2951
        %v2953 = vpop.f32.mrb[0].mxu0
        %v2954 = vpop.f32.mrb[0].mxu0
        %v2955 = vadd.f32 0.0, %v2954
        %v2956 = vpop.f32.mrb[0].mxu0
        %2957 = vmatprep.mubr.bf16.mxu0 0
        %2958 = vmatmul.mubr.bf16.gmra.mrb[0].mxu0 %v2889
        %v2959 = vpop.f32.mrb[0].mxu0
        %v2960 = vadd.f32 0.0, %v2959
        %v2961 = vpop.f32.mrb[0].mxu0
        %v2962 = vpop.f32.mrb[0].mxu0
        %v2963 = vadd.f32 0.0, %v2962
        %v2964 = vpop.f32.mrb[0].mxu0
        %2965 = vmatprep.mubr.bf16.mxu0 0
        %2966 = vmatmul.mubr.bf16.gmra.mrb[0].mxu0 %v2892
        %v2967 = vpop.f32.mrb[0].mxu0
        %v2968 = vadd.f32 0.0, %v2967
        %v2969 = vpop.f32.mrb[0].mxu0
        %v2970 = vpop.f32.mrb[0].mxu0
        %v2971 = vadd.f32 0.0, %v2970
        %v2972 = vpop.f32.mrb[0].mxu0
        %2973 = vmatprep.mubr.bf16.mxu0 0
        %2974 = vmatmul.mubr.bf16.gmra.mrb[0].mxu0 %v2895
        %v2975 = vpop.f32.mrb[0].mxu0
        %v2976 = vadd.f32 0.0, %v2975
        %v2977 = vpop.f32.mrb[0].mxu0
        %v2978 = vpop.f32.mrb[0].mxu0
        %v2979 = vadd.f32 0.0, %v2978
        %v2980 = vpop.f32.mrb[0].mxu0
        %2981 = vmatprep.mubr.bf16.mxu0 0
        %2982 = vmatmul.mubr.bf16.gmra.mrb[0].mxu0 %v2898
        %v2983 = vpop.f32.mrb[0].mxu0
        %v2984 = vadd.f32 0.0, %v2983
        %v2985 = vpop.f32.mrb[0].mxu0
        %v2986 = vpop.f32.mrb[0].mxu0
        %v2987 = vadd.f32 0.0, %v2986
        %v2988 = vpop.f32.mrb[0].mxu0
        %2989 = vmatprep.mubr.bf16.mxu0 0
        %2990 = vmatmul.mubr.bf16.gmra.mrb[0].mxu0 %v2901
        %v2991 = vpop.f32.mrb[0].mxu0
        %v2992 = vadd.f32 0.0, %v2991
        %v2993 = vpop.f32.mrb[0].mxu0
        %v2994 = vpop.f32.mrb[0].mxu0
        %v2995 = vadd.f32 0.0, %v2994
        %v2996 = vpop.f32.mrb[0].mxu0
        %2997 = vmatprep.mubr.bf16.mxu0 0
        %2998 = vmatmul.mubr.bf16.gmra.mrb[0].mxu0 %v2904
        %v2999 = vpop.f32.mrb[0].mxu0
        %v3000 = vadd.f32 0.0, %v2999
        %v3001 = vpop.f32.mrb[0].mxu0
        %v3002 = vpop.f32.mrb[0].mxu0
        %v3003 = vadd.f32 0.0, %v3002
        %v3004 = vpop.f32.mrb[0].mxu0
        %3005 = vdwg.mxu0
        %v3006 = vld [vmem:[#allocation2] sm:$0xff]
        %v3007 = vld [vmem:[#allocation2 + $0x8] sm:$0xff]
        %v3008 = vld [vmem:[#allocation2 + $0x10] sm:$0xff]
        %v3009 = vld [vmem:[#allocation2 + $0x18] sm:$0xff]
        %v3010 = vld [vmem:[#allocation2 + $0x20] sm:$0xff]
        %v3011 = vld [vmem:[#allocation2 + $0x28] sm:$0xff]
        %v3012 = vld [vmem:[#allocation2 + $0x30] sm:$0xff]
        %v3013 = vld [vmem:[#allocation2 + $0x38] sm:$0xff]
        %v3014 = vld [vmem:[#allocation2 + $0x40] sm:$0xff]
        %v3015 = vld [vmem:[#allocation2 + $0x48] sm:$0xff]
        %v3016 = vld [vmem:[#allocation2 + $0x50] sm:$0xff]
        %v3017 = vld [vmem:[#allocation2 + $0x58] sm:$0xff]
        %v3018 = vld [vmem:[#allocation2 + $0x60] sm:$0xff]
        %v3019 = vld [vmem:[#allocation2 + $0x68] sm:$0xff]
        %v3020 = vld [vmem:[#allocation2 + $0x70] sm:$0xff]
        %v3021 = vld [vmem:[#allocation2 + $0x78] sm:$0xff]
        %v3022 = vadd.f32 %v3006, %v2944
        %v3023 = vadd.f32 %v3007, %v2947
        %v3024 = vadd.f32 %v3008, %v2952
        %v3025 = vadd.f32 %v3009, %v2955
        %v3026 = vadd.f32 %v3010, %v2960
        %v3027 = vadd.f32 %v3011, %v2963
        %v3028 = vadd.f32 %v3012, %v2968
        %v3029 = vadd.f32 %v3013, %v2971
        %v3030 = vadd.f32 %v3014, %v2976
        %v3031 = vadd.f32 %v3015, %v2979
        %v3032 = vadd.f32 %v3016, %v2984
        %v3033 = vadd.f32 %v3017, %v2987
        %v3034 = vadd.f32 %v3018, %v2992
        %v3035 = vadd.f32 %v3019, %v2995
        %v3036 = vadd.f32 %v3020, %v3000
        %v3037 = vadd.f32 %v3021, %v3003
        %3038 = vst [vmem:[#allocation2] sm:$0xff] %v3022
        %3039 = vst [vmem:[#allocation2 + $0x8] sm:$0xff] %v3023
        %3040 = vst [vmem:[#allocation2 + $0x10] sm:$0xff] %v3024
        %3041 = vst [vmem:[#allocation2 + $0x18] sm:$0xff] %v3025
        %3042 = vst [vmem:[#allocation2 + $0x20] sm:$0xff] %v3026
        %3043 = vst [vmem:[#allocation2 + $0x28] sm:$0xff] %v3027
        %3044 = vst [vmem:[#allocation2 + $0x30] sm:$0xff] %v3028
        %3045 = vst [vmem:[#allocation2 + $0x38] sm:$0xff] %v3029
        %3046 = vst [vmem:[#allocation2 + $0x40] sm:$0xff] %v3030
        %3047 = vst [vmem:[#allocation2 + $0x48] sm:$0xff] %v3031
        %3048 = vst [vmem:[#allocation2 + $0x50] sm:$0xff] %v3032
        %3049 = vst [vmem:[#allocation2 + $0x58] sm:$0xff] %v3033
        %3050 = vst [vmem:[#allocation2 + $0x60] sm:$0xff] %v3034
        %3051 = vst [vmem:[#allocation2 + $0x68] sm:$0xff] %v3035
        %3052 = vst [vmem:[#allocation2 + $0x70] sm:$0xff] %v3036
        %3053 = vst [vmem:[#allocation2 + $0x78] sm:$0xff] %v3037
        %v3054 = vld [vmem:[#allocation2] sm:$0xff]
        %v3055 = vld [vmem:[#allocation2 + $0x8] sm:$0xff]
        %v3056 = vld [vmem:[#allocation2 + $0x10] sm:$0xff]
        %v3057 = vld [vmem:[#allocation2 + $0x18] sm:$0xff]
        %v3058 = vld [vmem:[#allocation2 + $0x20] sm:$0xff]
        %v3059 = vld [vmem:[#allocation2 + $0x28] sm:$0xff]
        %v3060 = vld [vmem:[#allocation2 + $0x30] sm:$0xff]
        %v3061 = vld [vmem:[#allocation2 + $0x38] sm:$0xff]
        %v3062 = vld [vmem:[#allocation2 + $0x40] sm:$0xff]
        %v3063 = vld [vmem:[#allocation2 + $0x48] sm:$0xff]
        %v3064 = vld [vmem:[#allocation2 + $0x50] sm:$0xff]
        %v3065 = vld [vmem:[#allocation2 + $0x58] sm:$0xff]
        %v3066 = vld [vmem:[#allocation2 + $0x60] sm:$0xff]
        %v3067 = vld [vmem:[#allocation2 + $0x68] sm:$0xff]
        %v3068 = vld [vmem:[#allocation2 + $0x70] sm:$0xff]
        %v3069 = vld [vmem:[#allocation2 + $0x78] sm:$0xff]
        %v3070 = vld [vmem:[%s236] sm:$0x1]
        %v3072 = vlaneseq
        %v3073 = vshrl.u32 %v3072, 7
        %v3074 = vsub.s32 0, %v3073
        %v3075 = vrot.slane %v3070, %v3074
        %v3077 = vadd.f32 %v3054, %v3075
        %v3078 = vadd.f32 %v3055, %v3075
        %v3079 = vadd.f32 %v3056, %v3075
        %v3080 = vadd.f32 %v3057, %v3075
        %v3081 = vadd.f32 %v3058, %v3075
        %v3082 = vadd.f32 %v3059, %v3075
        %v3083 = vadd.f32 %v3060, %v3075
        %v3084 = vadd.f32 %v3061, %v3075
        %v3085 = vadd.f32 %v3062, %v3075
        %v3086 = vadd.f32 %v3063, %v3075
        %v3087 = vadd.f32 %v3064, %v3075
        %v3088 = vadd.f32 %v3065, %v3075
        %v3089 = vadd.f32 %v3066, %v3075
        %v3090 = vadd.f32 %v3067, %v3075
        %v3091 = vadd.f32 %v3068, %v3075
        %v3092 = vadd.f32 %v3069, %v3075
        %v3093 = vmax.f32 %v3077, 0.0
        %v3094 = vmax.f32 %v3078, 0.0
        %v3095 = vmax.f32 %v3079, 0.0
        %v3096 = vmax.f32 %v3080, 0.0
        %v3097 = vmax.f32 %v3081, 0.0
        %v3098 = vmax.f32 %v3082, 0.0
        %v3099 = vmax.f32 %v3083, 0.0
        %v3100 = vmax.f32 %v3084, 0.0
        %v3101 = vmax.f32 %v3085, 0.0
        %v3102 = vmax.f32 %v3086, 0.0
        %v3103 = vmax.f32 %v3087, 0.0
        %v3104 = vmax.f32 %v3088, 0.0
        %v3105 = vmax.f32 %v3089, 0.0
        %v3106 = vmax.f32 %v3090, 0.0
        %v3107 = vmax.f32 %v3091, 0.0
        %v3108 = vmax.f32 %v3092, 0.0
        %3109 = vst [vmem:[%s220] sm:$0xff] %v3093
        %3110 = vst [vmem:[%s220 + $0x8] sm:$0xff] %v3094
        %3111 = vst [vmem:[%s220 + $0x10] sm:$0xff] %v3095
        %3112 = vst [vmem:[%s220 + $0x18] sm:$0xff] %v3096
        %3113 = vst [vmem:[%s220 + $0x20] sm:$0xff] %v3097
        %3114 = vst [vmem:[%s220 + $0x28] sm:$0xff] %v3098
        %3115 = vst [vmem:[%s220 + $0x30] sm:$0xff] %v3099
        %3116 = vst [vmem:[%s220 + $0x38] sm:$0xff] %v3100
        %3117 = vst [vmem:[%s220 + $0x40] sm:$0xff] %v3101
        %3118 = vst [vmem:[%s220 + $0x48] sm:$0xff] %v3102
        %3119 = vst [vmem:[%s220 + $0x50] sm:$0xff] %v3103
        %3120 = vst [vmem:[%s220 + $0x58] sm:$0xff] %v3104
        %3121 = vst [vmem:[%s220 + $0x60] sm:$0xff] %v3105
        %3122 = vst [vmem:[%s220 + $0x68] sm:$0xff] %v3106
        %3123 = vst [vmem:[%s220 + $0x70] sm:$0xff] %v3107
        %3124 = vst [vmem:[%s220 + $0x78] sm:$0xff] %v3108
        %s3125 = sand.u32 %s128, 1
        %s3126 = scalar_lea.sflag [#allocation4], %s3125
        %s3127 = sand.u32 %s128, 1
        %s3128 = smul.addr %s3127, 128
        %s3129 = scalar_lea.vmem [#allocation3], %s3128
        // Predicated region
        $region33: #{tpu_custom_call.1} parent=31 // pred_check
          %p3130 = pneg %p138
        $region34: #{tpu_custom_call.1} parent=31 // pred_check_branch
          %3132 = sbr.rel (%p3130) target = $region36
        $region35: #{tpu_custom_call.1} parent=31 // pred_region
          %s3133 = smul.u32 8, %s23
          %s3135 = ssub.s32 2048, 2048
          %3136 = vsyncadd %s3126, %s3135
          %s3137 = smul.addr %s3133, 2
          %s3138 = sadd.s32 %s24, %s3137
          %s3139 = smul.addr %s22, 32
          %s3140 = sadd.s32 %s3138, %s3139
          %s3141 = smul.addr %s3140, 128
          %s3142 = scalar_lea.hbm %s3, %s3141
          %s3143 = sshll.u32 %s3129, 4
          %s3144 = int_to_ptr.vmem [resolvable:$true] %s3143
          %3149 = dma.vmem_to_hbm [thread:$0]  %s3144, 2048, %s3142, %s3126, 128, 128, 8
        $region36: #{tpu_custom_call.1} parent=31 // pred_fallthru
          _
      $region32: #{tpu_custom_call.1} parent=5 // pred_fallthru
        _
      %p3150 = scmp.le.s32.totalorder 2, %s12
      // Predicated region
      $region37: #{tpu_custom_call.1} parent=5 // pred_check
        %p3151 = pneg %p3150
      $region38: #{tpu_custom_call.1} parent=5 // pred_check_branch
        %3153 = sbr.rel (%p3151) target = $region40
      $region39: #{tpu_custom_call.1} parent=5 // pred_region
        %s3154 = ssub.s32 %s12, 2
        // Predicated region
        $region41: #{tpu_custom_call.1} parent=39 // pred_check
          %p3155 = pneg %p144
        $region42: #{tpu_custom_call.1} parent=39 // pred_check_branch
          %3157 = sbr.rel (%p3155) target = $region44
        $region43: #{tpu_custom_call.1} parent=39 // pred_region
          %s3158 = sand.u32 %s129, 1
          %s3159 = scalar_lea.sflag [#allocation4], %s3158
          %s3160 = sand.u32 %s129, 1
          %s3161 = smul.addr %s3160, 128
          %s3162 = scalar_lea.vmem [#allocation3], %s3161
          %3163 = dma.done %s3159, 2048
        $region44: #{tpu_custom_call.1} parent=39 // pred_fallthru
          _
      $region40: #{tpu_custom_call.1} parent=5 // pred_fallthru
        _
    $region6: #{tpu_custom_call.1} parent=1 // loop_footer
      %s16 = sadd.s32 1, %s12
    $region7: #{tpu_custom_call.1} parent=1 // loop_footer_branch
      %11 = sbr.rel target = $region3
    $region8: #{tpu_custom_call.1} parent=1 // loop_exit
      _
    %3164 = vsyncpa [#allocation4], 1
    %s3165 = scalar_lea.sflag [#allocation4], 1
    %3166 = vsyncpa %s3165, 1

</llo_original>
